<compile_context>
chip_gen: v5e
topology: v5e:2x2
jax: 0.10.0
libtpu: 0.0.40
codegen_flags: <defaults>
</compile_context>

<pallas_src>
import functools
import math

import jax
import jax.numpy as jnp
import numpy as np
from jax import lax
from jax.experimental import pallas as pl
from jax.experimental.pallas import tpu as pltpu


def _round_up(v, m):
    return (v + m - 1) // m * m


def _encoder_kernel(x_ref, *refs, ntot, segments, layers):
    """Fused 4-block encoder over all keys' samples stacked along rows."""
    o_ref = refs[-1]
    prefs = refs[:-1]

    h = x_ref[...]                                   # layer-0 im2col LHS (M0, K)

    for li, (K, c_in, c_out, l_in, l_pad, l_conv, lp, lp_pad) in enumerate(layers):
        w_ref, b_ref, g_ref, bt_ref, mask_ref, src_ref = prefs[6 * li:6 * li + 6]
        m_in = ntot * l_pad
        m_out = ntot * lp_pad

        # ---- Conv1d as im2col: ONE MXU matmul per layer ---------------------
        if li == 0:
            a = h                                    # built in the wrapper
        else:
            ext = jnp.concatenate([h, jnp.zeros((8, c_in), jnp.float32)], axis=0)
            a = jnp.concatenate([ext[j:j + m_in, :] for j in range(K)], axis=1)
        y = jnp.dot(a, w_ref[...], preferred_element_type=jnp.float32)
        y = (y + b_ref[...]) * mask_ref[...]         # zero padded / cross-sample rows

        # ---- BatchNorm1d per key segment (training-mode, biased variance) ---
        zs = []
        for (n0, n1) in segments:
            r0, r1 = n0 * l_pad, n1 * l_pad          # 8-aligned row range
            cnt = float((n1 - n0) * l_conv)
            ys = y[r0:r1]
            s1 = jnp.sum(ys, axis=0, keepdims=True)
            s2 = jnp.sum(ys * ys, axis=0, keepdims=True)
            mean = s1 * (1.0 / cnt)
            var = jnp.maximum(s2 * (1.0 / cnt) - mean * mean, 0.0)
            scale = g_ref[...] * lax.rsqrt(var + 1e-5)
            shift = bt_ref[...] - mean * scale
            zs.append(jnp.maximum(ys * scale + shift, 0.0))   # BN affine + ReLU
        z = zs[0] if len(zs) == 1 else jnp.concatenate(zs, axis=0)

        # ---- MaxPool1d(2): pairwise max + ONE 0/1 row-gather matmul ---------
        zext = jnp.concatenate([z, jnp.zeros((8, c_out), jnp.float32)], axis=0)
        pairmax = jnp.maximum(z, zext[1:1 + m_in, :])          # max(z[m], z[m+1])
        col = lax.broadcasted_iota(jnp.int32, (m_out, m_in), 1)
        sel = (col == src_ref[...]).astype(jnp.float32)        # (m_out, m_in)
        h = jnp.dot(sel, pairmax, preferred_element_type=jnp.float32)

    # ---- channel-major flatten (torch .view(N, -1)) + single store ----------
    _, _, c_f, _, _, _, lp_f, lp_pad_f = layers[-1]
    rows = []
    for n in range(ntot):
        seg = h[n * lp_pad_f:n * lp_pad_f + lp_f]              # (lp_f, c_f)
        if lp_f == 1:
            rows.append(seg)
        else:
            rows.append(jnp.transpose(seg, (1, 0)).reshape(1, lp_f * c_f))
    o_ref[...] = rows[0] if ntot == 1 else jnp.concatenate(rows, axis=0)


@functools.partial(jax.jit, static_argnames=("ntot", "segments", "layers"))
def _encode_group(x, params, *, ntot, segments, layers):
    """Encode all samples of one input-length group with a single pallas_call."""
    x = x.astype(jnp.float32)
    K, c_in0, _, l_in0, l_pad0, _, _, _ = layers[0]

    # layer-0 im2col LHS built outside the kernel: (ntot*l_pad0, K*c_in0)
    xp = jnp.pad(x, ((0, 0), (0, l_pad0 - l_in0 + K)))
    a0 = jnp.stack([xp[:, j:j + l_pad0] for j in range(K)], axis=-1)
    a0 = a0.reshape(ntot * l_pad0, K * c_in0)

    flat_inputs = [a0]
    for (w_pack, b, g, bt), cfg in zip(params, layers):
        _, _, _, _, l_pad, l_conv, lp, lp_pad = cfg
        m_in, m_out = ntot * l_pad, ntot * lp_pad
        # validity mask for conv rows (1 where row-in-sample < l_conv)
        r = np.arange(m_in) % l_pad
        mask = jnp.asarray((r < l_conv).astype(np.float32).reshape(m_in, 1))
        # pooling source row (stacked index of the even element; -1 => padded)
        p = np.arange(m_out)
        n_s, q = p // lp_pad, p % lp_pad
        src = np.where(q < lp, n_s * l_pad + 2 * q, -1).astype(np.int32)
        flat_inputs += [w_pack, b, g, bt, mask, jnp.asarray(src.reshape(m_out, 1))]

    lp_f, c_f = layers[-1][6], layers[-1][2]
    kernel = functools.partial(_encoder_kernel, ntot=ntot, segments=segments,
                               layers=layers)
    return pl.pallas_call(
        kernel,
        out_shape=jax.ShapeDtypeStruct((ntot, c_f * lp_f), jnp.float32),
        in_specs=[pl.BlockSpec(memory_space=pltpu.MemorySpace.VMEM)] * len(flat_inputs),
        out_specs=pl.BlockSpec(memory_space=pltpu.MemorySpace.VMEM),
    )(*flat_inputs)


def _ref_encode(x, raw_params):
    """Pure-jnp reference (NLC layout) for a structural sanity check."""
    h = x.astype(jnp.float32)[:, :, None]
    for (w, b, g, bt) in raw_params:                 # w: (K, C_in, C_out)
        K, _, C_out = w.shape
        N, L_in, _ = h.shape
        L_conv = L_in - K + 1
        acc = jnp.zeros((N, L_conv, C_out), jnp.float32)
        for j in range(K):
            acc = acc + jnp.einsum("nlc,cd->nld", h[:, j:j + L_conv, :], w[j],
                                   precision=lax.Precision.HIGHEST)
        y = acc + b[None]
        mean = jnp.mean(y, axis=(0, 1), keepdims=True)
        var = jnp.mean((y - mean) ** 2, axis=(0, 1), keepdims=True)
        y = (y - mean) * lax.rsqrt(var + 1e-5) * g[None] + bt[None]
        y = jnp.maximum(y, 0.0)
        Lp = L_conv // 2
        h = y[:, :2 * Lp, :].reshape(N, Lp, 2, C_out).max(axis=2)
    N = h.shape[0]
    return jnp.transpose(h, (0, 2, 1)).reshape(N, -1)


class HeteprotoPallas:
    """JAX/Pallas equivalent of Heteproto(x_dim=1, hid_dim=64, z_dim=64)."""

    def __init__(self, key, x_dim=1, hid_dim=64, z_dim=64, kernel_size=4):
        self.kernel_size = kernel_size
        self.layer_dims = ((x_dim, hid_dim), (hid_dim, hid_dim),
                           (hid_dim, hid_dim), (hid_dim, z_dim))
        self.raw_params = []
        packed = []
        for (ci, co) in self.layer_dims:
            key, kw, kb = jax.random.split(key, 3)
            # deterministic synthetic init (PyTorch-style uniform bound)
            bound = 1.0 / math.sqrt(ci * kernel_size)
            w = jax.random.uniform(kw, (kernel_size, ci, co), jnp.float32,
                                   -bound, bound)
            b = jax.random.uniform(kb, (1, co), jnp.float32, -bound, bound)
            g = jnp.ones((1, co), jnp.float32)       # BN gamma
            bt = jnp.zeros((1, co), jnp.float32)     # BN beta
            self.raw_params.append((w, b, g, bt))
            # im2col weight: row j*C_in + c  <->  w[j, c, :]
            packed.append((w.reshape(kernel_size * ci, co), b, g, bt))
        self.packed_params = tuple(packed)

    def _layer_chain(self, L):
        layers = []
        l_in, l_pad = L, _round_up(L, 8)
        for (ci, co) in self.layer_dims:
            l_conv = l_in - self.kernel_size + 1
            lp = l_conv // 2
            lp_pad = _round_up(max(lp, 1), 8)
            layers.append((self.kernel_size, ci, co, l_in, l_pad, l_conv, lp, lp_pad))
            l_in, l_pad = lp, lp_pad
        return tuple(layers)

    def __call__(self, features):
        # Group keys by sequence length: one pallas_call serves every key of
        # that length (encoder weights DMA'd once, single launch per group).
        # TODO(synk): a parallel grid axis / core_map over sample groups would
        # feed v7x's second TensorCore if the workload ever grows.
        groups = {}
        for name, f in features.items():
            groups.setdefault(int(f.shape[1]), []).append(name)
        out = {}
        for L, names in groups.items():
            xs = [features[n] for n in names]
            segs, off = [], 0
            for x in xs:
                segs.append((off, off + int(x.shape[0])))
                off += int(x.shape[0])
            x_cat = (jnp.concatenate([x.astype(jnp.float32) for x in xs], axis=0)
                     if len(xs) > 1 else xs[0].astype(jnp.float32))
            y = _encode_group(x_cat, self.packed_params, ntot=off,
                              segments=tuple(segs), layers=self._layer_chain(L))
            for name, (n0, n1) in zip(names, segs):
                out[name] = y[n0:n1]
        return out


if __name__ == "__main__":
    key = jax.random.PRNGKey(0)
    kp, ka, kb = jax.random.split(key, 3)
    model = HeteprotoPallas(kp)

    L = 64  # 64 -> (61,30) -> (27,13) -> (10,5) -> (2,1): final (N, 64)
    features = {
        "author": jax.random.normal(ka, (4, L), jnp.float32),
        "paper": jax.random.normal(kb, (2, L), jnp.float32),
    }

    out = model(features)
    for v in out.values():
        jax.block_until_ready(v)

    assert out["author"].shape == (4, 64), out["author"].shape
    assert out["paper"].shape == (2, 64), out["paper"].shape
    assert all(bool(jnp.all(jnp.isfinite(v))) for v in out.values())

    # structural sanity check against a pure-jnp reference (loose tolerance:
    # only guards against layout / pooling / flatten bugs, not matmul rounding)
    for name, f in features.items():
        ref = _ref_encode(f, model.raw_params)
        assert jnp.allclose(out[name], ref, atol=5e-2, rtol=5e-2), name

    print("KERNEL_OK")
</pallas_src>

<mosaic_0001>
module attributes {stable_mosaic.version = 11 : i64} {
  func.func @_encoder_kernel(%arg0: memref<384x4xf32, #tpu.memory_space<vmem>>, %arg1: memref<4x64xf32, #tpu.memory_space<vmem>>, %arg2: memref<1x64xf32, #tpu.memory_space<vmem>>, %arg3: memref<1x64xf32, #tpu.memory_space<vmem>>, %arg4: memref<1x64xf32, #tpu.memory_space<vmem>>, %arg5: memref<384x1xf32, #tpu.memory_space<vmem>>, %arg6: memref<192x1xi32, #tpu.memory_space<vmem>>, %arg7: memref<256x64xf32, #tpu.memory_space<vmem>>, %arg8: memref<1x64xf32, #tpu.memory_space<vmem>>, %arg9: memref<1x64xf32, #tpu.memory_space<vmem>>, %arg10: memref<1x64xf32, #tpu.memory_space<vmem>>, %arg11: memref<192x1xf32, #tpu.memory_space<vmem>>, %arg12: memref<96x1xi32, #tpu.memory_space<vmem>>, %arg13: memref<256x64xf32, #tpu.memory_space<vmem>>, %arg14: memref<1x64xf32, #tpu.memory_space<vmem>>, %arg15: memref<1x64xf32, #tpu.memory_space<vmem>>, %arg16: memref<1x64xf32, #tpu.memory_space<vmem>>, %arg17: memref<96x1xf32, #tpu.memory_space<vmem>>, %arg18: memref<48x1xi32, #tpu.memory_space<vmem>>, %arg19: memref<256x64xf32, #tpu.memory_space<vmem>>, %arg20: memref<1x64xf32, #tpu.memory_space<vmem>>, %arg21: memref<1x64xf32, #tpu.memory_space<vmem>>, %arg22: memref<1x64xf32, #tpu.memory_space<vmem>>, %arg23: memref<48x1xf32, #tpu.memory_space<vmem>>, %arg24: memref<48x1xi32, #tpu.memory_space<vmem>>, %arg25: memref<6x64xf32, #tpu.memory_space<vmem>>) attributes {dimension_semantics = [], scalar_prefetch = 0 : i64, scratch_operands = 0 : i64, tpu.core_type = #tpu.core_type<tc>} {
    %c0 = arith.constant 0 : index
    %c0_0 = arith.constant 0 : index
    %0 = vector.load %arg0[%c0, %c0_0] : memref<384x4xf32, #tpu.memory_space<vmem>>, vector<384x4xf32>
    %c0_1 = arith.constant 0 : index
    %c0_2 = arith.constant 0 : index
    %1 = vector.load %arg1[%c0_1, %c0_2] : memref<4x64xf32, #tpu.memory_space<vmem>>, vector<4x64xf32>
    %cst = arith.constant dense<0.000000e+00> : vector<384x64xf32>
    %2 = tpu.matmul %0, %1, %cst {dimension_numbers = #tpu.dot_dimension_numbers<[1], [0], [0], [1], [0, 0, 1, 1], [], []>} : vector<384x4xf32>, vector<4x64xf32>, vector<384x64xf32> -> vector<384x64xf32>
    %c0_3 = arith.constant 0 : index
    %c0_4 = arith.constant 0 : index
    %3 = vector.load %arg2[%c0_3, %c0_4] : memref<1x64xf32, #tpu.memory_space<vmem>>, vector<1x64xf32>
    %4 = vector.broadcast %3 : vector<1x64xf32> to vector<384x64xf32>
    %5 = arith.addf %2, %4 : vector<384x64xf32>
    %c0_5 = arith.constant 0 : index
    %c0_6 = arith.constant 0 : index
    %6 = vector.load %arg5[%c0_5, %c0_6] : memref<384x1xf32, #tpu.memory_space<vmem>>, vector<384x1xf32>
    %7 = vector.broadcast %6 : vector<384x1xf32> to vector<384x64xf32>
    %8 = arith.mulf %5, %7 : vector<384x64xf32>
    %9 = vector.extract_strided_slice %8 {offsets = [0, 0], sizes = [256, 64], strides = [1, 1]} : vector<384x64xf32> to vector<256x64xf32>
    %cst_7 = arith.constant dense<0.000000e+00> : vector<64xf32>
    %10 = vector.multi_reduction <add>, %9, %cst_7 [0] : vector<256x64xf32> to vector<64xf32>
    %11 = vector.shape_cast %10 : vector<64xf32> to vector<1x64xf32>
    %12 = arith.mulf %9, %9 : vector<256x64xf32>
    %cst_8 = arith.constant dense<0.000000e+00> : vector<64xf32>
    %13 = vector.multi_reduction <add>, %12, %cst_8 [0] : vector<256x64xf32> to vector<64xf32>
    %14 = vector.shape_cast %13 : vector<64xf32> to vector<1x64xf32>
    %cst_9 = arith.constant 0.00409836043 : f32
    %15 = vector.broadcast %cst_9 : f32 to vector<1x64xf32>
    %16 = arith.mulf %11, %15 : vector<1x64xf32>
    %cst_10 = arith.constant 0.00409836043 : f32
    %17 = vector.broadcast %cst_10 : f32 to vector<1x64xf32>
    %18 = arith.mulf %14, %17 : vector<1x64xf32>
    %19 = arith.mulf %16, %16 : vector<1x64xf32>
    %20 = arith.subf %18, %19 : vector<1x64xf32>
    %cst_11 = arith.constant 0.000000e+00 : f32
    %21 = vector.broadcast %cst_11 : f32 to vector<1x64xf32>
    %22 = arith.maximumf %20, %21 : vector<1x64xf32>
    %c0_12 = arith.constant 0 : index
    %c0_13 = arith.constant 0 : index
    %23 = vector.load %arg3[%c0_12, %c0_13] : memref<1x64xf32, #tpu.memory_space<vmem>>, vector<1x64xf32>
    %cst_14 = arith.constant 9.99999974E-6 : f32
    %24 = vector.broadcast %cst_14 : f32 to vector<1x64xf32>
    %25 = arith.addf %22, %24 : vector<1x64xf32>
    %26 = math.rsqrt %25 : vector<1x64xf32>
    %27 = arith.mulf %23, %26 : vector<1x64xf32>
    %c0_15 = arith.constant 0 : index
    %c0_16 = arith.constant 0 : index
    %28 = vector.load %arg4[%c0_15, %c0_16] : memref<1x64xf32, #tpu.memory_space<vmem>>, vector<1x64xf32>
    %29 = arith.mulf %16, %27 : vector<1x64xf32>
    %30 = arith.subf %28, %29 : vector<1x64xf32>
    %31 = vector.broadcast %27 : vector<1x64xf32> to vector<256x64xf32>
    %32 = arith.mulf %9, %31 : vector<256x64xf32>
    %33 = vector.broadcast %30 : vector<1x64xf32> to vector<256x64xf32>
    %34 = arith.addf %32, %33 : vector<256x64xf32>
    %cst_17 = arith.constant 0.000000e+00 : f32
    %35 = vector.broadcast %cst_17 : f32 to vector<256x64xf32>
    %36 = arith.maximumf %34, %35 : vector<256x64xf32>
    %37 = vector.extract_strided_slice %8 {offsets = [256, 0], sizes = [128, 64], strides = [1, 1]} : vector<384x64xf32> to vector<128x64xf32>
    %cst_18 = arith.constant dense<0.000000e+00> : vector<64xf32>
    %38 = vector.multi_reduction <add>, %37, %cst_18 [0] : vector<128x64xf32> to vector<64xf32>
    %39 = vector.shape_cast %38 : vector<64xf32> to vector<1x64xf32>
    %40 = arith.mulf %37, %37 : vector<128x64xf32>
    %cst_19 = arith.constant dense<0.000000e+00> : vector<64xf32>
    %41 = vector.multi_reduction <add>, %40, %cst_19 [0] : vector<128x64xf32> to vector<64xf32>
    %42 = vector.shape_cast %41 : vector<64xf32> to vector<1x64xf32>
    %cst_20 = arith.constant 0.00819672085 : f32
    %43 = vector.broadcast %cst_20 : f32 to vector<1x64xf32>
    %44 = arith.mulf %39, %43 : vector<1x64xf32>
    %cst_21 = arith.constant 0.00819672085 : f32
    %45 = vector.broadcast %cst_21 : f32 to vector<1x64xf32>
    %46 = arith.mulf %42, %45 : vector<1x64xf32>
    %47 = arith.mulf %44, %44 : vector<1x64xf32>
    %48 = arith.subf %46, %47 : vector<1x64xf32>
    %cst_22 = arith.constant 0.000000e+00 : f32
    %49 = vector.broadcast %cst_22 : f32 to vector<1x64xf32>
    %50 = arith.maximumf %48, %49 : vector<1x64xf32>
    %c0_23 = arith.constant 0 : index
    %c0_24 = arith.constant 0 : index
    %51 = vector.load %arg3[%c0_23, %c0_24] : memref<1x64xf32, #tpu.memory_space<vmem>>, vector<1x64xf32>
    %cst_25 = arith.constant 9.99999974E-6 : f32
    %52 = vector.broadcast %cst_25 : f32 to vector<1x64xf32>
    %53 = arith.addf %50, %52 : vector<1x64xf32>
    %54 = math.rsqrt %53 : vector<1x64xf32>
    %55 = arith.mulf %51, %54 : vector<1x64xf32>
    %c0_26 = arith.constant 0 : index
    %c0_27 = arith.constant 0 : index
    %56 = vector.load %arg4[%c0_26, %c0_27] : memref<1x64xf32, #tpu.memory_space<vmem>>, vector<1x64xf32>
    %57 = arith.mulf %44, %55 : vector<1x64xf32>
    %58 = arith.subf %56, %57 : vector<1x64xf32>
    %59 = vector.broadcast %55 : vector<1x64xf32> to vector<128x64xf32>
    %60 = arith.mulf %37, %59 : vector<128x64xf32>
    %61 = vector.broadcast %58 : vector<1x64xf32> to vector<128x64xf32>
    %62 = arith.addf %60, %61 : vector<128x64xf32>
    %cst_28 = arith.constant 0.000000e+00 : f32
    %63 = vector.broadcast %cst_28 : f32 to vector<128x64xf32>
    %64 = arith.maximumf %62, %63 : vector<128x64xf32>
    %65 = tpu.concatenate %36, %64 in 0 : vector<256x64xf32>, vector<128x64xf32> -> vector<384x64xf32>
    %cst_29 = arith.constant 0.000000e+00 : f32
    %66 = vector.broadcast %cst_29 : f32 to vector<8x64xf32>
    %67 = tpu.concatenate %65, %66 in 0 : vector<384x64xf32>, vector<8x64xf32> -> vector<392x64xf32>
    %68 = vector.extract_strided_slice %67 {offsets = [1, 0], sizes = [384, 64], strides = [1, 1]} : vector<392x64xf32> to vector<384x64xf32>
    %69 = arith.maximumf %65, %68 : vector<384x64xf32>
    %70 = tpu.iota {dimensions = array<i32: 1>} : vector<192x384xi32>
    %c0_30 = arith.constant 0 : index
    %c0_31 = arith.constant 0 : index
    %71 = vector.load %arg6[%c0_30, %c0_31] : memref<192x1xi32, #tpu.memory_space<vmem>>, vector<192x1xi32>
    %72 = vector.broadcast %71 : vector<192x1xi32> to vector<192x384xi32>
    %73 = arith.cmpi eq, %70, %72 : vector<192x384xi32>
    %74 = arith.extui %73 : vector<192x384xi1> to vector<192x384xi32>
    %75 = arith.sitofp %74 : vector<192x384xi32> to vector<192x384xf32>
    %cst_32 = arith.constant dense<0.000000e+00> : vector<192x64xf32>
    %76 = tpu.matmul %75, %69, %cst_32 {dimension_numbers = #tpu.dot_dimension_numbers<[1], [0], [0], [1], [0, 0, 1, 1], [], []>} : vector<192x384xf32>, vector<384x64xf32>, vector<192x64xf32> -> vector<192x64xf32>
    %cst_33 = arith.constant 0.000000e+00 : f32
    %77 = vector.broadcast %cst_33 : f32 to vector<8x64xf32>
    %78 = tpu.concatenate %76, %77 in 0 : vector<192x64xf32>, vector<8x64xf32> -> vector<200x64xf32>
    %79 = vector.extract_strided_slice %78 {offsets = [0, 0], sizes = [192, 64], strides = [1, 1]} : vector<200x64xf32> to vector<192x64xf32>
    %80 = vector.extract_strided_slice %78 {offsets = [1, 0], sizes = [192, 64], strides = [1, 1]} : vector<200x64xf32> to vector<192x64xf32>
    %81 = vector.extract_strided_slice %78 {offsets = [2, 0], sizes = [192, 64], strides = [1, 1]} : vector<200x64xf32> to vector<192x64xf32>
    %82 = vector.extract_strided_slice %78 {offsets = [3, 0], sizes = [192, 64], strides = [1, 1]} : vector<200x64xf32> to vector<192x64xf32>
    %83 = tpu.concatenate %79, %80, %81, %82 in 1 : vector<192x64xf32>, vector<192x64xf32>, vector<192x64xf32>, vector<192x64xf32> -> vector<192x256xf32>
    %c0_34 = arith.constant 0 : index
    %c0_35 = arith.constant 0 : index
    %84 = vector.load %arg7[%c0_34, %c0_35] : memref<256x64xf32, #tpu.memory_space<vmem>>, vector<256x64xf32>
    %cst_36 = arith.constant dense<0.000000e+00> : vector<192x64xf32>
    %85 = tpu.matmul %83, %84, %cst_36 {dimension_numbers = #tpu.dot_dimension_numbers<[1], [0], [0], [1], [0, 0, 1, 1], [], []>} : vector<192x256xf32>, vector<256x64xf32>, vector<192x64xf32> -> vector<192x64xf32>
    %c0_37 = arith.constant 0 : index
    %c0_38 = arith.constant 0 : index
    %86 = vector.load %arg8[%c0_37, %c0_38] : memref<1x64xf32, #tpu.memory_space<vmem>>, vector<1x64xf32>
    %87 = vector.broadcast %86 : vector<1x64xf32> to vector<192x64xf32>
    %88 = arith.addf %85, %87 : vector<192x64xf32>
    %c0_39 = arith.constant 0 : index
    %c0_40 = arith.constant 0 : index
    %89 = vector.load %arg11[%c0_39, %c0_40] : memref<192x1xf32, #tpu.memory_space<vmem>>, vector<192x1xf32>
    %90 = vector.broadcast %89 : vector<192x1xf32> to vector<192x64xf32>
    %91 = arith.mulf %88, %90 : vector<192x64xf32>
    %92 = vector.extract_strided_slice %91 {offsets = [0, 0], sizes = [128, 64], strides = [1, 1]} : vector<192x64xf32> to vector<128x64xf32>
    %cst_41 = arith.constant dense<0.000000e+00> : vector<64xf32>
    %93 = vector.multi_reduction <add>, %92, %cst_41 [0] : vector<128x64xf32> to vector<64xf32>
    %94 = vector.shape_cast %93 : vector<64xf32> to vector<1x64xf32>
    %95 = arith.mulf %92, %92 : vector<128x64xf32>
    %cst_42 = arith.constant dense<0.000000e+00> : vector<64xf32>
    %96 = vector.multi_reduction <add>, %95, %cst_42 [0] : vector<128x64xf32> to vector<64xf32>
    %97 = vector.shape_cast %96 : vector<64xf32> to vector<1x64xf32>
    %cst_43 = arith.constant 0.00925925932 : f32
    %98 = vector.broadcast %cst_43 : f32 to vector<1x64xf32>
    %99 = arith.mulf %94, %98 : vector<1x64xf32>
    %cst_44 = arith.constant 0.00925925932 : f32
    %100 = vector.broadcast %cst_44 : f32 to vector<1x64xf32>
    %101 = arith.mulf %97, %100 : vector<1x64xf32>
    %102 = arith.mulf %99, %99 : vector<1x64xf32>
    %103 = arith.subf %101, %102 : vector<1x64xf32>
    %cst_45 = arith.constant 0.000000e+00 : f32
    %104 = vector.broadcast %cst_45 : f32 to vector<1x64xf32>
    %105 = arith.maximumf %103, %104 : vector<1x64xf32>
    %c0_46 = arith.constant 0 : index
    %c0_47 = arith.constant 0 : index
    %106 = vector.load %arg9[%c0_46, %c0_47] : memref<1x64xf32, #tpu.memory_space<vmem>>, vector<1x64xf32>
    %cst_48 = arith.constant 9.99999974E-6 : f32
    %107 = vector.broadcast %cst_48 : f32 to vector<1x64xf32>
    %108 = arith.addf %105, %107 : vector<1x64xf32>
    %109 = math.rsqrt %108 : vector<1x64xf32>
    %110 = arith.mulf %106, %109 : vector<1x64xf32>
    %c0_49 = arith.constant 0 : index
    %c0_50 = arith.constant 0 : index
    %111 = vector.load %arg10[%c0_49, %c0_50] : memref<1x64xf32, #tpu.memory_space<vmem>>, vector<1x64xf32>
    %112 = arith.mulf %99, %110 : vector<1x64xf32>
    %113 = arith.subf %111, %112 : vector<1x64xf32>
    %114 = vector.broadcast %110 : vector<1x64xf32> to vector<128x64xf32>
    %115 = arith.mulf %92, %114 : vector<128x64xf32>
    %116 = vector.broadcast %113 : vector<1x64xf32> to vector<128x64xf32>
    %117 = arith.addf %115, %116 : vector<128x64xf32>
    %cst_51 = arith.constant 0.000000e+00 : f32
    %118 = vector.broadcast %cst_51 : f32 to vector<128x64xf32>
    %119 = arith.maximumf %117, %118 : vector<128x64xf32>
    %120 = vector.extract_strided_slice %91 {offsets = [128, 0], sizes = [64, 64], strides = [1, 1]} : vector<192x64xf32> to vector<64x64xf32>
    %cst_52 = arith.constant dense<0.000000e+00> : vector<64xf32>
    %121 = vector.multi_reduction <add>, %120, %cst_52 [0] : vector<64x64xf32> to vector<64xf32>
    %122 = vector.shape_cast %121 : vector<64xf32> to vector<1x64xf32>
    %123 = arith.mulf %120, %120 : vector<64x64xf32>
    %cst_53 = arith.constant dense<0.000000e+00> : vector<64xf32>
    %124 = vector.multi_reduction <add>, %123, %cst_53 [0] : vector<64x64xf32> to vector<64xf32>
    %125 = vector.shape_cast %124 : vector<64xf32> to vector<1x64xf32>
    %cst_54 = arith.constant 0.0185185187 : f32
    %126 = vector.broadcast %cst_54 : f32 to vector<1x64xf32>
    %127 = arith.mulf %122, %126 : vector<1x64xf32>
    %cst_55 = arith.constant 0.0185185187 : f32
    %128 = vector.broadcast %cst_55 : f32 to vector<1x64xf32>
    %129 = arith.mulf %125, %128 : vector<1x64xf32>
    %130 = arith.mulf %127, %127 : vector<1x64xf32>
    %131 = arith.subf %129, %130 : vector<1x64xf32>
    %cst_56 = arith.constant 0.000000e+00 : f32
    %132 = vector.broadcast %cst_56 : f32 to vector<1x64xf32>
    %133 = arith.maximumf %131, %132 : vector<1x64xf32>
    %c0_57 = arith.constant 0 : index
    %c0_58 = arith.constant 0 : index
    %134 = vector.load %arg9[%c0_57, %c0_58] : memref<1x64xf32, #tpu.memory_space<vmem>>, vector<1x64xf32>
    %cst_59 = arith.constant 9.99999974E-6 : f32
    %135 = vector.broadcast %cst_59 : f32 to vector<1x64xf32>
    %136 = arith.addf %133, %135 : vector<1x64xf32>
    %137 = math.rsqrt %136 : vector<1x64xf32>
    %138 = arith.mulf %134, %137 : vector<1x64xf32>
    %c0_60 = arith.constant 0 : index
    %c0_61 = arith.constant 0 : index
    %139 = vector.load %arg10[%c0_60, %c0_61] : memref<1x64xf32, #tpu.memory_space<vmem>>, vector<1x64xf32>
    %140 = arith.mulf %127, %138 : vector<1x64xf32>
    %141 = arith.subf %139, %140 : vector<1x64xf32>
    %142 = vector.broadcast %138 : vector<1x64xf32> to vector<64x64xf32>
    %143 = arith.mulf %120, %142 : vector<64x64xf32>
    %144 = vector.broadcast %141 : vector<1x64xf32> to vector<64x64xf32>
    %145 = arith.addf %143, %144 : vector<64x64xf32>
    %cst_62 = arith.constant 0.000000e+00 : f32
    %146 = vector.broadcast %cst_62 : f32 to vector<64x64xf32>
    %147 = arith.maximumf %145, %146 : vector<64x64xf32>
    %148 = tpu.concatenate %119, %147 in 0 : vector<128x64xf32>, vector<64x64xf32> -> vector<192x64xf32>
    %cst_63 = arith.constant 0.000000e+00 : f32
    %149 = vector.broadcast %cst_63 : f32 to vector<8x64xf32>
    %150 = tpu.concatenate %148, %149 in 0 : vector<192x64xf32>, vector<8x64xf32> -> vector<200x64xf32>
    %151 = vector.extract_strided_slice %150 {offsets = [1, 0], sizes = [192, 64], strides = [1, 1]} : vector<200x64xf32> to vector<192x64xf32>
    %152 = arith.maximumf %148, %151 : vector<192x64xf32>
    %153 = tpu.iota {dimensions = array<i32: 1>} : vector<96x192xi32>
    %c0_64 = arith.constant 0 : index
    %c0_65 = arith.constant 0 : index
    %154 = vector.load %arg12[%c0_64, %c0_65] : memref<96x1xi32, #tpu.memory_space<vmem>>, vector<96x1xi32>
    %155 = vector.broadcast %154 : vector<96x1xi32> to vector<96x192xi32>
    %156 = arith.cmpi eq, %153, %155 : vector<96x192xi32>
    %157 = arith.extui %156 : vector<96x192xi1> to vector<96x192xi32>
    %158 = arith.sitofp %157 : vector<96x192xi32> to vector<96x192xf32>
    %cst_66 = arith.constant dense<0.000000e+00> : vector<96x64xf32>
    %159 = tpu.matmul %158, %152, %cst_66 {dimension_numbers = #tpu.dot_dimension_numbers<[1], [0], [0], [1], [0, 0, 1, 1], [], []>} : vector<96x192xf32>, vector<192x64xf32>, vector<96x64xf32> -> vector<96x64xf32>
    %cst_67 = arith.constant 0.000000e+00 : f32
    %160 = vector.broadcast %cst_67 : f32 to vector<8x64xf32>
    %161 = tpu.concatenate %159, %160 in 0 : vector<96x64xf32>, vector<8x64xf32> -> vector<104x64xf32>
    %162 = vector.extract_strided_slice %161 {offsets = [0, 0], sizes = [96, 64], strides = [1, 1]} : vector<104x64xf32> to vector<96x64xf32>
    %163 = vector.extract_strided_slice %161 {offsets = [1, 0], sizes = [96, 64], strides = [1, 1]} : vector<104x64xf32> to vector<96x64xf32>
    %164 = vector.extract_strided_slice %161 {offsets = [2, 0], sizes = [96, 64], strides = [1, 1]} : vector<104x64xf32> to vector<96x64xf32>
    %165 = vector.extract_strided_slice %161 {offsets = [3, 0], sizes = [96, 64], strides = [1, 1]} : vector<104x64xf32> to vector<96x64xf32>
    %166 = tpu.concatenate %162, %163, %164, %165 in 1 : vector<96x64xf32>, vector<96x64xf32>, vector<96x64xf32>, vector<96x64xf32> -> vector<96x256xf32>
    %c0_68 = arith.constant 0 : index
    %c0_69 = arith.constant 0 : index
    %167 = vector.load %arg13[%c0_68, %c0_69] : memref<256x64xf32, #tpu.memory_space<vmem>>, vector<256x64xf32>
    %cst_70 = arith.constant dense<0.000000e+00> : vector<96x64xf32>
    %168 = tpu.matmul %166, %167, %cst_70 {dimension_numbers = #tpu.dot_dimension_numbers<[1], [0], [0], [1], [0, 0, 1, 1], [], []>} : vector<96x256xf32>, vector<256x64xf32>, vector<96x64xf32> -> vector<96x64xf32>
    %c0_71 = arith.constant 0 : index
    %c0_72 = arith.constant 0 : index
    %169 = vector.load %arg14[%c0_71, %c0_72] : memref<1x64xf32, #tpu.memory_space<vmem>>, vector<1x64xf32>
    %170 = vector.broadcast %169 : vector<1x64xf32> to vector<96x64xf32>
    %171 = arith.addf %168, %170 : vector<96x64xf32>
    %c0_73 = arith.constant 0 : index
    %c0_74 = arith.constant 0 : index
    %172 = vector.load %arg17[%c0_73, %c0_74] : memref<96x1xf32, #tpu.memory_space<vmem>>, vector<96x1xf32>
    %173 = vector.broadcast %172 : vector<96x1xf32> to vector<96x64xf32>
    %174 = arith.mulf %171, %173 : vector<96x64xf32>
    %175 = vector.extract_strided_slice %174 {offsets = [0, 0], sizes = [64, 64], strides = [1, 1]} : vector<96x64xf32> to vector<64x64xf32>
    %cst_75 = arith.constant dense<0.000000e+00> : vector<64xf32>
    %176 = vector.multi_reduction <add>, %175, %cst_75 [0] : vector<64x64xf32> to vector<64xf32>
    %177 = vector.shape_cast %176 : vector<64xf32> to vector<1x64xf32>
    %178 = arith.mulf %175, %175 : vector<64x64xf32>
    %cst_76 = arith.constant dense<0.000000e+00> : vector<64xf32>
    %179 = vector.multi_reduction <add>, %178, %cst_76 [0] : vector<64x64xf32> to vector<64xf32>
    %180 = vector.shape_cast %179 : vector<64xf32> to vector<1x64xf32>
    %cst_77 = arith.constant 2.500000e-02 : f32
    %181 = vector.broadcast %cst_77 : f32 to vector<1x64xf32>
    %182 = arith.mulf %177, %181 : vector<1x64xf32>
    %cst_78 = arith.constant 2.500000e-02 : f32
    %183 = vector.broadcast %cst_78 : f32 to vector<1x64xf32>
    %184 = arith.mulf %180, %183 : vector<1x64xf32>
    %185 = arith.mulf %182, %182 : vector<1x64xf32>
    %186 = arith.subf %184, %185 : vector<1x64xf32>
    %cst_79 = arith.constant 0.000000e+00 : f32
    %187 = vector.broadcast %cst_79 : f32 to vector<1x64xf32>
    %188 = arith.maximumf %186, %187 : vector<1x64xf32>
    %c0_80 = arith.constant 0 : index
    %c0_81 = arith.constant 0 : index
    %189 = vector.load %arg15[%c0_80, %c0_81] : memref<1x64xf32, #tpu.memory_space<vmem>>, vector<1x64xf32>
    %cst_82 = arith.constant 9.99999974E-6 : f32
    %190 = vector.broadcast %cst_82 : f32 to vector<1x64xf32>
    %191 = arith.addf %188, %190 : vector<1x64xf32>
    %192 = math.rsqrt %191 : vector<1x64xf32>
    %193 = arith.mulf %189, %192 : vector<1x64xf32>
    %c0_83 = arith.constant 0 : index
    %c0_84 = arith.constant 0 : index
    %194 = vector.load %arg16[%c0_83, %c0_84] : memref<1x64xf32, #tpu.memory_space<vmem>>, vector<1x64xf32>
    %195 = arith.mulf %182, %193 : vector<1x64xf32>
    %196 = arith.subf %194, %195 : vector<1x64xf32>
    %197 = vector.broadcast %193 : vector<1x64xf32> to vector<64x64xf32>
    %198 = arith.mulf %175, %197 : vector<64x64xf32>
    %199 = vector.broadcast %196 : vector<1x64xf32> to vector<64x64xf32>
    %200 = arith.addf %198, %199 : vector<64x64xf32>
    %cst_85 = arith.constant 0.000000e+00 : f32
    %201 = vector.broadcast %cst_85 : f32 to vector<64x64xf32>
    %202 = arith.maximumf %200, %201 : vector<64x64xf32>
    %203 = vector.extract_strided_slice %174 {offsets = [64, 0], sizes = [32, 64], strides = [1, 1]} : vector<96x64xf32> to vector<32x64xf32>
    %cst_86 = arith.constant dense<0.000000e+00> : vector<64xf32>
    %204 = vector.multi_reduction <add>, %203, %cst_86 [0] : vector<32x64xf32> to vector<64xf32>
    %205 = vector.shape_cast %204 : vector<64xf32> to vector<1x64xf32>
    %206 = arith.mulf %203, %203 : vector<32x64xf32>
    %cst_87 = arith.constant dense<0.000000e+00> : vector<64xf32>
    %207 = vector.multi_reduction <add>, %206, %cst_87 [0] : vector<32x64xf32> to vector<64xf32>
    %208 = vector.shape_cast %207 : vector<64xf32> to vector<1x64xf32>
    %cst_88 = arith.constant 5.000000e-02 : f32
    %209 = vector.broadcast %cst_88 : f32 to vector<1x64xf32>
    %210 = arith.mulf %205, %209 : vector<1x64xf32>
    %cst_89 = arith.constant 5.000000e-02 : f32
    %211 = vector.broadcast %cst_89 : f32 to vector<1x64xf32>
    %212 = arith.mulf %208, %211 : vector<1x64xf32>
    %213 = arith.mulf %210, %210 : vector<1x64xf32>
    %214 = arith.subf %212, %213 : vector<1x64xf32>
    %cst_90 = arith.constant 0.000000e+00 : f32
    %215 = vector.broadcast %cst_90 : f32 to vector<1x64xf32>
    %216 = arith.maximumf %214, %215 : vector<1x64xf32>
    %c0_91 = arith.constant 0 : index
    %c0_92 = arith.constant 0 : index
    %217 = vector.load %arg15[%c0_91, %c0_92] : memref<1x64xf32, #tpu.memory_space<vmem>>, vector<1x64xf32>
    %cst_93 = arith.constant 9.99999974E-6 : f32
    %218 = vector.broadcast %cst_93 : f32 to vector<1x64xf32>
    %219 = arith.addf %216, %218 : vector<1x64xf32>
    %220 = math.rsqrt %219 : vector<1x64xf32>
    %221 = arith.mulf %217, %220 : vector<1x64xf32>
    %c0_94 = arith.constant 0 : index
    %c0_95 = arith.constant 0 : index
    %222 = vector.load %arg16[%c0_94, %c0_95] : memref<1x64xf32, #tpu.memory_space<vmem>>, vector<1x64xf32>
    %223 = arith.mulf %210, %221 : vector<1x64xf32>
    %224 = arith.subf %222, %223 : vector<1x64xf32>
    %225 = vector.broadcast %221 : vector<1x64xf32> to vector<32x64xf32>
    %226 = arith.mulf %203, %225 : vector<32x64xf32>
    %227 = vector.broadcast %224 : vector<1x64xf32> to vector<32x64xf32>
    %228 = arith.addf %226, %227 : vector<32x64xf32>
    %cst_96 = arith.constant 0.000000e+00 : f32
    %229 = vector.broadcast %cst_96 : f32 to vector<32x64xf32>
    %230 = arith.maximumf %228, %229 : vector<32x64xf32>
    %231 = tpu.concatenate %202, %230 in 0 : vector<64x64xf32>, vector<32x64xf32> -> vector<96x64xf32>
    %cst_97 = arith.constant 0.000000e+00 : f32
    %232 = vector.broadcast %cst_97 : f32 to vector<8x64xf32>
    %233 = tpu.concatenate %231, %232 in 0 : vector<96x64xf32>, vector<8x64xf32> -> vector<104x64xf32>
    %234 = vector.extract_strided_slice %233 {offsets = [1, 0], sizes = [96, 64], strides = [1, 1]} : vector<104x64xf32> to vector<96x64xf32>
    %235 = arith.maximumf %231, %234 : vector<96x64xf32>
    %236 = tpu.iota {dimensions = array<i32: 1>} : vector<48x96xi32>
    %c0_98 = arith.constant 0 : index
    %c0_99 = arith.constant 0 : index
    %237 = vector.load %arg18[%c0_98, %c0_99] : memref<48x1xi32, #tpu.memory_space<vmem>>, vector<48x1xi32>
    %238 = vector.broadcast %237 : vector<48x1xi32> to vector<48x96xi32>
    %239 = arith.cmpi eq, %236, %238 : vector<48x96xi32>
    %240 = arith.extui %239 : vector<48x96xi1> to vector<48x96xi32>
    %241 = arith.sitofp %240 : vector<48x96xi32> to vector<48x96xf32>
    %cst_100 = arith.constant dense<0.000000e+00> : vector<48x64xf32>
    %242 = tpu.matmul %241, %235, %cst_100 {dimension_numbers = #tpu.dot_dimension_numbers<[1], [0], [0], [1], [0, 0, 1, 1], [], []>} : vector<48x96xf32>, vector<96x64xf32>, vector<48x64xf32> -> vector<48x64xf32>
    %cst_101 = arith.constant 0.000000e+00 : f32
    %243 = vector.broadcast %cst_101 : f32 to vector<8x64xf32>
    %244 = tpu.concatenate %242, %243 in 0 : vector<48x64xf32>, vector<8x64xf32> -> vector<56x64xf32>
    %245 = vector.extract_strided_slice %244 {offsets = [0, 0], sizes = [48, 64], strides = [1, 1]} : vector<56x64xf32> to vector<48x64xf32>
    %246 = vector.extract_strided_slice %244 {offsets = [1, 0], sizes = [48, 64], strides = [1, 1]} : vector<56x64xf32> to vector<48x64xf32>
    %247 = vector.extract_strided_slice %244 {offsets = [2, 0], sizes = [48, 64], strides = [1, 1]} : vector<56x64xf32> to vector<48x64xf32>
    %248 = vector.extract_strided_slice %244 {offsets = [3, 0], sizes = [48, 64], strides = [1, 1]} : vector<56x64xf32> to vector<48x64xf32>
    %249 = tpu.concatenate %245, %246, %247, %248 in 1 : vector<48x64xf32>, vector<48x64xf32>, vector<48x64xf32>, vector<48x64xf32> -> vector<48x256xf32>
    %c0_102 = arith.constant 0 : index
    %c0_103 = arith.constant 0 : index
    %250 = vector.load %arg19[%c0_102, %c0_103] : memref<256x64xf32, #tpu.memory_space<vmem>>, vector<256x64xf32>
    %cst_104 = arith.constant dense<0.000000e+00> : vector<48x64xf32>
    %251 = tpu.matmul %249, %250, %cst_104 {dimension_numbers = #tpu.dot_dimension_numbers<[1], [0], [0], [1], [0, 0, 1, 1], [], []>} : vector<48x256xf32>, vector<256x64xf32>, vector<48x64xf32> -> vector<48x64xf32>
    %c0_105 = arith.constant 0 : index
    %c0_106 = arith.constant 0 : index
    %252 = vector.load %arg20[%c0_105, %c0_106] : memref<1x64xf32, #tpu.memory_space<vmem>>, vector<1x64xf32>
    %253 = vector.broadcast %252 : vector<1x64xf32> to vector<48x64xf32>
    %254 = arith.addf %251, %253 : vector<48x64xf32>
    %c0_107 = arith.constant 0 : index
    %c0_108 = arith.constant 0 : index
    %255 = vector.load %arg23[%c0_107, %c0_108] : memref<48x1xf32, #tpu.memory_space<vmem>>, vector<48x1xf32>
    %256 = vector.broadcast %255 : vector<48x1xf32> to vector<48x64xf32>
    %257 = arith.mulf %254, %256 : vector<48x64xf32>
    %258 = vector.extract_strided_slice %257 {offsets = [0, 0], sizes = [32, 64], strides = [1, 1]} : vector<48x64xf32> to vector<32x64xf32>
    %cst_109 = arith.constant dense<0.000000e+00> : vector<64xf32>
    %259 = vector.multi_reduction <add>, %258, %cst_109 [0] : vector<32x64xf32> to vector<64xf32>
    %260 = vector.shape_cast %259 : vector<64xf32> to vector<1x64xf32>
    %261 = arith.mulf %258, %258 : vector<32x64xf32>
    %cst_110 = arith.constant dense<0.000000e+00> : vector<64xf32>
    %262 = vector.multi_reduction <add>, %261, %cst_110 [0] : vector<32x64xf32> to vector<64xf32>
    %263 = vector.shape_cast %262 : vector<64xf32> to vector<1x64xf32>
    %cst_111 = arith.constant 1.250000e-01 : f32
    %264 = vector.broadcast %cst_111 : f32 to vector<1x64xf32>
    %265 = arith.mulf %260, %264 : vector<1x64xf32>
    %cst_112 = arith.constant 1.250000e-01 : f32
    %266 = vector.broadcast %cst_112 : f32 to vector<1x64xf32>
    %267 = arith.mulf %263, %266 : vector<1x64xf32>
    %268 = arith.mulf %265, %265 : vector<1x64xf32>
    %269 = arith.subf %267, %268 : vector<1x64xf32>
    %cst_113 = arith.constant 0.000000e+00 : f32
    %270 = vector.broadcast %cst_113 : f32 to vector<1x64xf32>
    %271 = arith.maximumf %269, %270 : vector<1x64xf32>
    %c0_114 = arith.constant 0 : index
    %c0_115 = arith.constant 0 : index
    %272 = vector.load %arg21[%c0_114, %c0_115] : memref<1x64xf32, #tpu.memory_space<vmem>>, vector<1x64xf32>
    %cst_116 = arith.constant 9.99999974E-6 : f32
    %273 = vector.broadcast %cst_116 : f32 to vector<1x64xf32>
    %274 = arith.addf %271, %273 : vector<1x64xf32>
    %275 = math.rsqrt %274 : vector<1x64xf32>
    %276 = arith.mulf %272, %275 : vector<1x64xf32>
    %c0_117 = arith.constant 0 : index
    %c0_118 = arith.constant 0 : index
    %277 = vector.load %arg22[%c0_117, %c0_118] : memref<1x64xf32, #tpu.memory_space<vmem>>, vector<1x64xf32>
    %278 = arith.mulf %265, %276 : vector<1x64xf32>
    %279 = arith.subf %277, %278 : vector<1x64xf32>
    %280 = vector.broadcast %276 : vector<1x64xf32> to vector<32x64xf32>
    %281 = arith.mulf %258, %280 : vector<32x64xf32>
    %282 = vector.broadcast %279 : vector<1x64xf32> to vector<32x64xf32>
    %283 = arith.addf %281, %282 : vector<32x64xf32>
    %cst_119 = arith.constant 0.000000e+00 : f32
    %284 = vector.broadcast %cst_119 : f32 to vector<32x64xf32>
    %285 = arith.maximumf %283, %284 : vector<32x64xf32>
    %286 = vector.extract_strided_slice %257 {offsets = [32, 0], sizes = [16, 64], strides = [1, 1]} : vector<48x64xf32> to vector<16x64xf32>
    %cst_120 = arith.constant dense<0.000000e+00> : vector<64xf32>
    %287 = vector.multi_reduction <add>, %286, %cst_120 [0] : vector<16x64xf32> to vector<64xf32>
    %288 = vector.shape_cast %287 : vector<64xf32> to vector<1x64xf32>
    %289 = arith.mulf %286, %286 : vector<16x64xf32>
    %cst_121 = arith.constant dense<0.000000e+00> : vector<64xf32>
    %290 = vector.multi_reduction <add>, %289, %cst_121 [0] : vector<16x64xf32> to vector<64xf32>
    %291 = vector.shape_cast %290 : vector<64xf32> to vector<1x64xf32>
    %cst_122 = arith.constant 2.500000e-01 : f32
    %292 = vector.broadcast %cst_122 : f32 to vector<1x64xf32>
    %293 = arith.mulf %288, %292 : vector<1x64xf32>
    %cst_123 = arith.constant 2.500000e-01 : f32
    %294 = vector.broadcast %cst_123 : f32 to vector<1x64xf32>
    %295 = arith.mulf %291, %294 : vector<1x64xf32>
    %296 = arith.mulf %293, %293 : vector<1x64xf32>
    %297 = arith.subf %295, %296 : vector<1x64xf32>
    %cst_124 = arith.constant 0.000000e+00 : f32
    %298 = vector.broadcast %cst_124 : f32 to vector<1x64xf32>
    %299 = arith.maximumf %297, %298 : vector<1x64xf32>
    %c0_125 = arith.constant 0 : index
    %c0_126 = arith.constant 0 : index
    %300 = vector.load %arg21[%c0_125, %c0_126] : memref<1x64xf32, #tpu.memory_space<vmem>>, vector<1x64xf32>
    %cst_127 = arith.constant 9.99999974E-6 : f32
    %301 = vector.broadcast %cst_127 : f32 to vector<1x64xf32>
    %302 = arith.addf %299, %301 : vector<1x64xf32>
    %303 = math.rsqrt %302 : vector<1x64xf32>
    %304 = arith.mulf %300, %303 : vector<1x64xf32>
    %c0_128 = arith.constant 0 : index
    %c0_129 = arith.constant 0 : index
    %305 = vector.load %arg22[%c0_128, %c0_129] : memref<1x64xf32, #tpu.memory_space<vmem>>, vector<1x64xf32>
    %306 = arith.mulf %293, %304 : vector<1x64xf32>
    %307 = arith.subf %305, %306 : vector<1x64xf32>
    %308 = vector.broadcast %304 : vector<1x64xf32> to vector<16x64xf32>
    %309 = arith.mulf %286, %308 : vector<16x64xf32>
    %310 = vector.broadcast %307 : vector<1x64xf32> to vector<16x64xf32>
    %311 = arith.addf %309, %310 : vector<16x64xf32>
    %cst_130 = arith.constant 0.000000e+00 : f32
    %312 = vector.broadcast %cst_130 : f32 to vector<16x64xf32>
    %313 = arith.maximumf %311, %312 : vector<16x64xf32>
    %314 = tpu.concatenate %285, %313 in 0 : vector<32x64xf32>, vector<16x64xf32> -> vector<48x64xf32>
    %cst_131 = arith.constant 0.000000e+00 : f32
    %315 = vector.broadcast %cst_131 : f32 to vector<8x64xf32>
    %316 = tpu.concatenate %314, %315 in 0 : vector<48x64xf32>, vector<8x64xf32> -> vector<56x64xf32>
    %317 = vector.extract_strided_slice %316 {offsets = [1, 0], sizes = [48, 64], strides = [1, 1]} : vector<56x64xf32> to vector<48x64xf32>
    %318 = arith.maximumf %314, %317 : vector<48x64xf32>
    %319 = tpu.iota {dimensions = array<i32: 1>} : vector<48x48xi32>
    %c0_132 = arith.constant 0 : index
    %c0_133 = arith.constant 0 : index
    %320 = vector.load %arg24[%c0_132, %c0_133] : memref<48x1xi32, #tpu.memory_space<vmem>>, vector<48x1xi32>
    %321 = vector.broadcast %320 : vector<48x1xi32> to vector<48x48xi32>
    %322 = arith.cmpi eq, %319, %321 : vector<48x48xi32>
    %323 = arith.extui %322 : vector<48x48xi1> to vector<48x48xi32>
    %324 = arith.sitofp %323 : vector<48x48xi32> to vector<48x48xf32>
    %cst_134 = arith.constant dense<0.000000e+00> : vector<48x64xf32>
    %325 = tpu.matmul %324, %318, %cst_134 {dimension_numbers = #tpu.dot_dimension_numbers<[1], [0], [0], [1], [0, 0, 1, 1], [], []>} : vector<48x48xf32>, vector<48x64xf32>, vector<48x64xf32> -> vector<48x64xf32>
    %326 = vector.extract_strided_slice %325 {offsets = [0, 0], sizes = [1, 64], strides = [1, 1]} : vector<48x64xf32> to vector<1x64xf32>
    %327 = vector.extract_strided_slice %325 {offsets = [8, 0], sizes = [1, 64], strides = [1, 1]} : vector<48x64xf32> to vector<1x64xf32>
    %328 = vector.extract_strided_slice %325 {offsets = [16, 0], sizes = [1, 64], strides = [1, 1]} : vector<48x64xf32> to vector<1x64xf32>
    %329 = vector.extract_strided_slice %325 {offsets = [24, 0], sizes = [1, 64], strides = [1, 1]} : vector<48x64xf32> to vector<1x64xf32>
    %330 = vector.extract_strided_slice %325 {offsets = [32, 0], sizes = [1, 64], strides = [1, 1]} : vector<48x64xf32> to vector<1x64xf32>
    %331 = vector.extract_strided_slice %325 {offsets = [40, 0], sizes = [1, 64], strides = [1, 1]} : vector<48x64xf32> to vector<1x64xf32>
    %332 = tpu.concatenate %326, %327, %328, %329, %330, %331 in 0 : vector<1x64xf32>, vector<1x64xf32>, vector<1x64xf32>, vector<1x64xf32>, vector<1x64xf32>, vector<1x64xf32> -> vector<6x64xf32>
    %c0_135 = arith.constant 0 : index
    %c0_136 = arith.constant 0 : index
    %333 = vector.load %arg25[%c0_135, %c0_136] : memref<6x64xf32, #tpu.memory_space<vmem>>, vector<6x64xf32>
    tpu.vector_store %arg25[%c0_135, %c0_136], %332 {strides = array<i32>} : memref<6x64xf32, #tpu.memory_space<vmem>>, vector<6x64xf32>,
    return
  }
}

</mosaic_0001>

<llo_original>
// kernel: _encode_group.1
$region0: #{_encode_group.1}
  #allocation0 [shape = 'u32[]', space=smem, size = 0x4, offset = 0x4, fixed_abs, tag = 'smem constant byte address 0x4 - core index']
  #allocation1 [shape = 'u32[72,128]{1,0:T(1,128)}', space=vmem, size = 0x9000, scoped, tag = 'internal scratch']
  %s0 = inlined_call_operand.vmem [shape: f32[384,4], index: 0, kind: input, shape index: {}]
  %s1 = inlined_call_operand.vmem [shape: f32[4,64], index: 1, kind: input, shape index: {}]
  %s2 = inlined_call_operand.vmem [shape: f32[1,64], index: 2, kind: input, shape index: {}]
  %s3 = inlined_call_operand.vmem [shape: f32[1,64], index: 3, kind: input, shape index: {}]
  %s4 = inlined_call_operand.vmem [shape: f32[1,64], index: 4, kind: input, shape index: {}]
  %s5 = inlined_call_operand.vmem [shape: f32[384,1], index: 5, kind: input, shape index: {}]
  %s6 = inlined_call_operand.vmem [shape: s32[192,1], index: 6, kind: input, shape index: {}]
  %s7 = inlined_call_operand.vmem [shape: f32[256,64], index: 7, kind: input, shape index: {}]
  %s8 = inlined_call_operand.vmem [shape: f32[1,64], index: 8, kind: input, shape index: {}]
  %s9 = inlined_call_operand.vmem [shape: f32[1,64], index: 9, kind: input, shape index: {}]
  %s10 = inlined_call_operand.vmem [shape: f32[1,64], index: 10, kind: input, shape index: {}]
  %s11 = inlined_call_operand.vmem [shape: f32[192,1], index: 11, kind: input, shape index: {}]
  %s12 = inlined_call_operand.vmem [shape: s32[96,1], index: 12, kind: input, shape index: {}]
  %s13 = inlined_call_operand.vmem [shape: f32[256,64], index: 13, kind: input, shape index: {}]
  %s14 = inlined_call_operand.vmem [shape: f32[1,64], index: 14, kind: input, shape index: {}]
  %s15 = inlined_call_operand.vmem [shape: f32[1,64], index: 15, kind: input, shape index: {}]
  %s16 = inlined_call_operand.vmem [shape: f32[1,64], index: 16, kind: input, shape index: {}]
  %s17 = inlined_call_operand.vmem [shape: f32[96,1], index: 17, kind: input, shape index: {}]
  %s18 = inlined_call_operand.vmem [shape: s32[48,1], index: 18, kind: input, shape index: {}]
  %s19 = inlined_call_operand.vmem [shape: f32[256,64], index: 19, kind: input, shape index: {}]
  %s20 = inlined_call_operand.vmem [shape: f32[1,64], index: 20, kind: input, shape index: {}]
  %s21 = inlined_call_operand.vmem [shape: f32[1,64], index: 21, kind: input, shape index: {}]
  %s22 = inlined_call_operand.vmem [shape: f32[1,64], index: 22, kind: input, shape index: {}]
  %s23 = inlined_call_operand.vmem [shape: f32[48,1], index: 23, kind: input, shape index: {}]
  %s24 = inlined_call_operand.vmem [shape: s32[48,1], index: 24, kind: input, shape index: {}]
  %s25 = inlined_call_operand.hbm [shape: f32[6,64], index: 25, kind: output, shape index: {}]
  %s26 = sld [smem:[#allocation0]]
  $region110: #{_encode_group.1} parent=0
    _
  %s28 = ssub.s32 1, %s26
  %s29 = scalar_select 0, %s28, %s26
  $region1: #{_encode_group.1} parent=0
    #allocation2 [shape = 'u8[4096]{0}', space=vmem, size = 0x1000, scoped, tag = 'output window, operand 0, single buffered']
    #allocation3 [shape = 's32[1]{0}', space=sflag, size = 0x4, scoped, tag = 'scoped memory for _encode_group.1']
    %30 = vsyncpa [#allocation3], 0
    // Predicated region
    $region2: #{_encode_group.1} parent=1 // pred_check
      _
    $region3: #{_encode_group.1} parent=1 // pred_check_branch
      %32 = sbr.rel (0) target = $region5
    $region4: #{_encode_group.1} parent=1 // pred_region
      _
    $region5: #{_encode_group.1} parent=1 // pred_fallthru
      _
    // Predicated region
    $region6: #{_encode_group.1} parent=1 // pred_check
      _
    $region7: #{_encode_group.1} parent=1 // pred_check_branch
      %34 = sbr.rel (0) target = $region9
    $region8: #{_encode_group.1} parent=1 // pred_region
      _
    $region9: #{_encode_group.1} parent=1 // pred_fallthru
      _
    // Predicated region
    $region10: #{_encode_group.1} parent=1 // pred_check
      _
    $region11: #{_encode_group.1} parent=1 // pred_check_branch
      %36 = sbr.rel (0) target = $region13
    $region12: #{_encode_group.1} parent=1 // pred_region
      _
    $region13: #{_encode_group.1} parent=1 // pred_fallthru
      _
    // Predicated region
    $region14: #{_encode_group.1} parent=1 // pred_check
      _
    $region15: #{_encode_group.1} parent=1 // pred_check_branch
      %38 = sbr.rel (0) target = $region17
    $region16: #{_encode_group.1} parent=1 // pred_region
      _
    $region17: #{_encode_group.1} parent=1 // pred_fallthru
      _
    // Predicated region
    $region18: #{_encode_group.1} parent=1 // pred_check
      _
    $region19: #{_encode_group.1} parent=1 // pred_check_branch
      %40 = sbr.rel (0) target = $region21
    $region20: #{_encode_group.1} parent=1 // pred_region
      _
    $region21: #{_encode_group.1} parent=1 // pred_fallthru
      _
    // Predicated region
    $region22: #{_encode_group.1} parent=1 // pred_check
      _
    $region23: #{_encode_group.1} parent=1 // pred_check_branch
      %42 = sbr.rel (0) target = $region25
    $region24: #{_encode_group.1} parent=1 // pred_region
      _
    $region25: #{_encode_group.1} parent=1 // pred_fallthru
      _
    // Predicated region
    $region26: #{_encode_group.1} parent=1 // pred_check
      _
    $region27: #{_encode_group.1} parent=1 // pred_check_branch
      %44 = sbr.rel (0) target = $region29
    $region28: #{_encode_group.1} parent=1 // pred_region
      _
    $region29: #{_encode_group.1} parent=1 // pred_fallthru
      _
    // Predicated region
    $region30: #{_encode_group.1} parent=1 // pred_check
      _
    $region31: #{_encode_group.1} parent=1 // pred_check_branch
      %46 = sbr.rel (0) target = $region33
    $region32: #{_encode_group.1} parent=1 // pred_region
      _
    $region33: #{_encode_group.1} parent=1 // pred_fallthru
      _
    // Predicated region
    $region34: #{_encode_group.1} parent=1 // pred_check
      _
    $region35: #{_encode_group.1} parent=1 // pred_check_branch
      %48 = sbr.rel (0) target = $region37
    $region36: #{_encode_group.1} parent=1 // pred_region
      _
    $region37: #{_encode_group.1} parent=1 // pred_fallthru
      _
    // Predicated region
    $region38: #{_encode_group.1} parent=1 // pred_check
      _
    $region39: #{_encode_group.1} parent=1 // pred_check_branch
      %50 = sbr.rel (0) target = $region41
    $region40: #{_encode_group.1} parent=1 // pred_region
      _
    $region41: #{_encode_group.1} parent=1 // pred_fallthru
      _
    // Predicated region
    $region42: #{_encode_group.1} parent=1 // pred_check
      _
    $region43: #{_encode_group.1} parent=1 // pred_check_branch
      %52 = sbr.rel (0) target = $region45
    $region44: #{_encode_group.1} parent=1 // pred_region
      _
    $region45: #{_encode_group.1} parent=1 // pred_fallthru
      _
    // Predicated region
    $region46: #{_encode_group.1} parent=1 // pred_check
      _
    $region47: #{_encode_group.1} parent=1 // pred_check_branch
      %54 = sbr.rel (0) target = $region49
    $region48: #{_encode_group.1} parent=1 // pred_region
      _
    $region49: #{_encode_group.1} parent=1 // pred_fallthru
      _
    // Predicated region
    $region50: #{_encode_group.1} parent=1 // pred_check
      _
    $region51: #{_encode_group.1} parent=1 // pred_check_branch
      %56 = sbr.rel (0) target = $region53
    $region52: #{_encode_group.1} parent=1 // pred_region
      _
    $region53: #{_encode_group.1} parent=1 // pred_fallthru
      _
    // Predicated region
    $region54: #{_encode_group.1} parent=1 // pred_check
      _
    $region55: #{_encode_group.1} parent=1 // pred_check_branch
      %58 = sbr.rel (0) target = $region57
    $region56: #{_encode_group.1} parent=1 // pred_region
      _
    $region57: #{_encode_group.1} parent=1 // pred_fallthru
      _
    // Predicated region
    $region58: #{_encode_group.1} parent=1 // pred_check
      _
    $region59: #{_encode_group.1} parent=1 // pred_check_branch
      %60 = sbr.rel (0) target = $region61
    $region60: #{_encode_group.1} parent=1 // pred_region
      _
    $region61: #{_encode_group.1} parent=1 // pred_fallthru
      _
    // Predicated region
    $region62: #{_encode_group.1} parent=1 // pred_check
      _
    $region63: #{_encode_group.1} parent=1 // pred_check_branch
      %62 = sbr.rel (0) target = $region65
    $region64: #{_encode_group.1} parent=1 // pred_region
      _
    $region65: #{_encode_group.1} parent=1 // pred_fallthru
      _
    // Predicated region
    $region66: #{_encode_group.1} parent=1 // pred_check
      _
    $region67: #{_encode_group.1} parent=1 // pred_check_branch
      %64 = sbr.rel (0) target = $region69
    $region68: #{_encode_group.1} parent=1 // pred_region
      _
    $region69: #{_encode_group.1} parent=1 // pred_fallthru
      _
    // Predicated region
    $region70: #{_encode_group.1} parent=1 // pred_check
      _
    $region71: #{_encode_group.1} parent=1 // pred_check_branch
      %66 = sbr.rel (0) target = $region73
    $region72: #{_encode_group.1} parent=1 // pred_region
      _
    $region73: #{_encode_group.1} parent=1 // pred_fallthru
      _
    // Predicated region
    $region74: #{_encode_group.1} parent=1 // pred_check
      _
    $region75: #{_encode_group.1} parent=1 // pred_check_branch
      %68 = sbr.rel (0) target = $region77
    $region76: #{_encode_group.1} parent=1 // pred_region
      _
    $region77: #{_encode_group.1} parent=1 // pred_fallthru
      _
    // Predicated region
    $region78: #{_encode_group.1} parent=1 // pred_check
      _
    $region79: #{_encode_group.1} parent=1 // pred_check_branch
      %70 = sbr.rel (0) target = $region81
    $region80: #{_encode_group.1} parent=1 // pred_region
      _
    $region81: #{_encode_group.1} parent=1 // pred_fallthru
      _
    // Predicated region
    $region82: #{_encode_group.1} parent=1 // pred_check
      _
    $region83: #{_encode_group.1} parent=1 // pred_check_branch
      %72 = sbr.rel (0) target = $region85
    $region84: #{_encode_group.1} parent=1 // pred_region
      _
    $region85: #{_encode_group.1} parent=1 // pred_fallthru
      _
    // Predicated region
    $region86: #{_encode_group.1} parent=1 // pred_check
      _
    $region87: #{_encode_group.1} parent=1 // pred_check_branch
      %74 = sbr.rel (0) target = $region89
    $region88: #{_encode_group.1} parent=1 // pred_region
      _
    $region89: #{_encode_group.1} parent=1 // pred_fallthru
      _
    // Predicated region
    $region90: #{_encode_group.1} parent=1 // pred_check
      _
    $region91: #{_encode_group.1} parent=1 // pred_check_branch
      %76 = sbr.rel (0) target = $region93
    $region92: #{_encode_group.1} parent=1 // pred_region
      _
    $region93: #{_encode_group.1} parent=1 // pred_fallthru
      _
    // Predicated region
    $region94: #{_encode_group.1} parent=1 // pred_check
      _
    $region95: #{_encode_group.1} parent=1 // pred_check_branch
      %78 = sbr.rel (0) target = $region97
    $region96: #{_encode_group.1} parent=1 // pred_region
      _
    $region97: #{_encode_group.1} parent=1 // pred_fallthru
      _
    // Predicated region
    $region98: #{_encode_group.1} parent=1 // pred_check
      _
    $region99: #{_encode_group.1} parent=1 // pred_check_branch
      %80 = sbr.rel (0) target = $region101
    $region100: #{_encode_group.1} parent=1 // pred_region
      _
    $region101: #{_encode_group.1} parent=1 // pred_fallthru
      _
    %v81 = vld [vmem:[%s0] sm:$0xff]
    %v82 = vld [vmem:[%s0 + $0x8] sm:$0xff]
    %v83 = vld [vmem:[%s0 + $0x10] sm:$0xff]
    %v84 = vld [vmem:[%s0 + $0x18] sm:$0xff]
    %v85 = vld [vmem:[%s0 + $0x20] sm:$0xff]
    %v86 = vld [vmem:[%s0 + $0x28] sm:$0xff]
    %v87 = vld [vmem:[%s0 + $0x30] sm:$0xff]
    %v88 = vld [vmem:[%s0 + $0x38] sm:$0xff]
    %v89 = vld [vmem:[%s0 + $0x40] sm:$0xff]
    %v90 = vld [vmem:[%s0 + $0x48] sm:$0xff]
    %v91 = vld [vmem:[%s0 + $0x50] sm:$0xff]
    %v92 = vld [vmem:[%s0 + $0x58] sm:$0xff]
    %v93 = vld [vmem:[%s0 + $0x60] sm:$0xff]
    %v94 = vld [vmem:[%s0 + $0x68] sm:$0xff]
    %v95 = vld [vmem:[%s0 + $0x70] sm:$0xff]
    %v96 = vld [vmem:[%s0 + $0x78] sm:$0xff]
    %v97 = vld [vmem:[%s0 + $0x80] sm:$0xff]
    %v98 = vld [vmem:[%s0 + $0x88] sm:$0xff]
    %v99 = vld [vmem:[%s0 + $0x90] sm:$0xff]
    %v100 = vld [vmem:[%s0 + $0x98] sm:$0xff]
    %v101 = vld [vmem:[%s0 + $0xa0] sm:$0xff]
    %v102 = vld [vmem:[%s0 + $0xa8] sm:$0xff]
    %v103 = vld [vmem:[%s0 + $0xb0] sm:$0xff]
    %v104 = vld [vmem:[%s0 + $0xb8] sm:$0xff]
    %v105 = vld [vmem:[%s0 + $0xc0] sm:$0xff]
    %v106 = vld [vmem:[%s0 + $0xc8] sm:$0xff]
    %v107 = vld [vmem:[%s0 + $0xd0] sm:$0xff]
    %v108 = vld [vmem:[%s0 + $0xd8] sm:$0xff]
    %v109 = vld [vmem:[%s0 + $0xe0] sm:$0xff]
    %v110 = vld [vmem:[%s0 + $0xe8] sm:$0xff]
    %v111 = vld [vmem:[%s0 + $0xf0] sm:$0xff]
    %v112 = vld [vmem:[%s0 + $0xf8] sm:$0xff]
    %v113 = vld [vmem:[%s0 + $0x100] sm:$0xff]
    %v114 = vld [vmem:[%s0 + $0x108] sm:$0xff]
    %v115 = vld [vmem:[%s0 + $0x110] sm:$0xff]
    %v116 = vld [vmem:[%s0 + $0x118] sm:$0xff]
    %v117 = vld [vmem:[%s0 + $0x120] sm:$0xff]
    %v118 = vld [vmem:[%s0 + $0x128] sm:$0xff]
    %v119 = vld [vmem:[%s0 + $0x130] sm:$0xff]
    %v120 = vld [vmem:[%s0 + $0x138] sm:$0xff]
    %v121 = vld [vmem:[%s0 + $0x140] sm:$0xff]
    %v122 = vld [vmem:[%s0 + $0x148] sm:$0xff]
    %v123 = vld [vmem:[%s0 + $0x150] sm:$0xff]
    %v124 = vld [vmem:[%s0 + $0x158] sm:$0xff]
    %v125 = vld [vmem:[%s0 + $0x160] sm:$0xff]
    %v126 = vld [vmem:[%s0 + $0x168] sm:$0xff]
    %v127 = vld [vmem:[%s0 + $0x170] sm:$0xff]
    %v128 = vld [vmem:[%s0 + $0x178] sm:$0xff]
    %v129 = vld [vmem:[%s1] sm:$0xf]
    %v130 = vld [vmem:[%s2] sm:$0x1]
    %v132 = vperm.slane %v130, 0
    %vm134 = vcmask 31744
    %v136 = vsel %vm134, %v81, 0
    %v139 = vsel %vm134, %v82, 0
    %v142 = vsel %vm134, %v83, 0
    %v145 = vsel %vm134, %v84, 0
    %v148 = vsel %vm134, %v85, 0
    %v151 = vsel %vm134, %v86, 0
    %v154 = vsel %vm134, %v87, 0
    %v157 = vsel %vm134, %v88, 0
    %v160 = vsel %vm134, %v89, 0
    %v163 = vsel %vm134, %v90, 0
    %v166 = vsel %vm134, %v91, 0
    %v169 = vsel %vm134, %v92, 0
    %v172 = vsel %vm134, %v93, 0
    %v175 = vsel %vm134, %v94, 0
    %v178 = vsel %vm134, %v95, 0
    %v181 = vsel %vm134, %v96, 0
    %v184 = vsel %vm134, %v97, 0
    %v187 = vsel %vm134, %v98, 0
    %v190 = vsel %vm134, %v99, 0
    %v193 = vsel %vm134, %v100, 0
    %v196 = vsel %vm134, %v101, 0
    %v199 = vsel %vm134, %v102, 0
    %v202 = vsel %vm134, %v103, 0
    %v205 = vsel %vm134, %v104, 0
    %v208 = vsel %vm134, %v105, 0
    %v211 = vsel %vm134, %v106, 0
    %v214 = vsel %vm134, %v107, 0
    %v217 = vsel %vm134, %v108, 0
    %v220 = vsel %vm134, %v109, 0
    %v223 = vsel %vm134, %v110, 0
    %v226 = vsel %vm134, %v111, 0
    %v229 = vsel %vm134, %v112, 0
    %v232 = vsel %vm134, %v113, 0
    %v235 = vsel %vm134, %v114, 0
    %v238 = vsel %vm134, %v115, 0
    %v241 = vsel %vm134, %v116, 0
    %v244 = vsel %vm134, %v117, 0
    %v247 = vsel %vm134, %v118, 0
    %v250 = vsel %vm134, %v119, 0
    %v253 = vsel %vm134, %v120, 0
    %v256 = vsel %vm134, %v121, 0
    %v259 = vsel %vm134, %v122, 0
    %v262 = vsel %vm134, %v123, 0
    %v265 = vsel %vm134, %v124, 0
    %v268 = vsel %vm134, %v125, 0
    %v271 = vsel %vm134, %v126, 0
    %v274 = vsel %vm134, %v127, 0
    %v277 = vsel %vm134, %v128, 0
    %vm279 = vcmask 1043456
    %v281 = vsel %vm279, %v129, 0
    %283 = vmatpush.msra.mxu0 0.0
    %284 = vmatpush.msra.mxu0 0.0
    %285 = vmatpush.msra.mxu0 0.0
    %286 = vmatpush.msra.mxu0 0.0
    %287 = vmatpush.msra.mxu0 0.0
    %288 = vmatpush.msra.mxu0 0.0
    %289 = vmatpush.msra.mxu0 0.0
    %290 = vmatpush.msra.mxu0 0.0
    %291 = vmatpush.msra.mxu0 0.0
    %292 = vmatpush.msra.mxu0 0.0
    %293 = vmatpush.msra.mxu0 0.0
    %294 = vmatpush.msra.mxu0 0.0
    %295 = vmatpush.msra.mxu0 0.0
    %296 = vmatpush.msra.mxu0 0.0
    %297 = vmatpush.msra.mxu0 0.0
    %298 = vmatpush.msra.mxu0 %v281
    %299 = vmatmul.f32.gmra.mxu0 %v136
    %v300 = vpop.f32.mrf.mxu0
    %v301 = vadd.f32 %v132, %v300
    %302 = vmatmul.f32.gmra.mxu0 %v139
    %v303 = vpop.f32.mrf.mxu0
    %v304 = vadd.f32 %v132, %v303
    %305 = vmatmul.f32.gmra.mxu0 %v142
    %v306 = vpop.f32.mrf.mxu0
    %v307 = vadd.f32 %v132, %v306
    %308 = vmatmul.f32.gmra.mxu0 %v145
    %v309 = vpop.f32.mrf.mxu0
    %v310 = vadd.f32 %v132, %v309
    %311 = vmatmul.f32.gmra.mxu0 %v148
    %v312 = vpop.f32.mrf.mxu0
    %v313 = vadd.f32 %v132, %v312
    %314 = vmatmul.f32.gmra.mxu0 %v151
    %v315 = vpop.f32.mrf.mxu0
    %v316 = vadd.f32 %v132, %v315
    %317 = vmatmul.f32.gmra.mxu0 %v154
    %v318 = vpop.f32.mrf.mxu0
    %v319 = vadd.f32 %v132, %v318
    %320 = vmatmul.f32.gmra.mxu0 %v157
    %v321 = vpop.f32.mrf.mxu0
    %v322 = vadd.f32 %v132, %v321
    %323 = vmatmul.f32.gmra.mxu0 %v160
    %v324 = vpop.f32.mrf.mxu0
    %v325 = vadd.f32 %v132, %v324
    %326 = vmatmul.f32.gmra.mxu0 %v163
    %v327 = vpop.f32.mrf.mxu0
    %v328 = vadd.f32 %v132, %v327
    %329 = vmatmul.f32.gmra.mxu0 %v166
    %v330 = vpop.f32.mrf.mxu0
    %v331 = vadd.f32 %v132, %v330
    %332 = vmatmul.f32.gmra.mxu0 %v169
    %v333 = vpop.f32.mrf.mxu0
    %v334 = vadd.f32 %v132, %v333
    %335 = vmatmul.f32.gmra.mxu0 %v172
    %v336 = vpop.f32.mrf.mxu0
    %v337 = vadd.f32 %v132, %v336
    %338 = vmatmul.f32.gmra.mxu0 %v175
    %v339 = vpop.f32.mrf.mxu0
    %v340 = vadd.f32 %v132, %v339
    %341 = vmatmul.f32.gmra.mxu0 %v178
    %v342 = vpop.f32.mrf.mxu0
    %v343 = vadd.f32 %v132, %v342
    %344 = vmatmul.f32.gmra.mxu0 %v181
    %v345 = vpop.f32.mrf.mxu0
    %v346 = vadd.f32 %v132, %v345
    %347 = vmatmul.f32.gmra.mxu0 %v184
    %v348 = vpop.f32.mrf.mxu0
    %v349 = vadd.f32 %v132, %v348
    %350 = vmatmul.f32.gmra.mxu0 %v187
    %v351 = vpop.f32.mrf.mxu0
    %v352 = vadd.f32 %v132, %v351
    %353 = vmatmul.f32.gmra.mxu0 %v190
    %v354 = vpop.f32.mrf.mxu0
    %v355 = vadd.f32 %v132, %v354
    %356 = vmatmul.f32.gmra.mxu0 %v193
    %v357 = vpop.f32.mrf.mxu0
    %v358 = vadd.f32 %v132, %v357
    %359 = vmatmul.f32.gmra.mxu0 %v196
    %v360 = vpop.f32.mrf.mxu0
    %v361 = vadd.f32 %v132, %v360
    %362 = vmatmul.f32.gmra.mxu0 %v199
    %v363 = vpop.f32.mrf.mxu0
    %v364 = vadd.f32 %v132, %v363
    %365 = vmatmul.f32.gmra.mxu0 %v202
    %v366 = vpop.f32.mrf.mxu0
    %v367 = vadd.f32 %v132, %v366
    %368 = vmatmul.f32.gmra.mxu0 %v205
    %v369 = vpop.f32.mrf.mxu0
    %v370 = vadd.f32 %v132, %v369
    %371 = vmatmul.f32.gmra.mxu0 %v208
    %v372 = vpop.f32.mrf.mxu0
    %v373 = vadd.f32 %v132, %v372
    %374 = vmatmul.f32.gmra.mxu0 %v211
    %v375 = vpop.f32.mrf.mxu0
    %v376 = vadd.f32 %v132, %v375
    %377 = vmatmul.f32.gmra.mxu0 %v214
    %v378 = vpop.f32.mrf.mxu0
    %v379 = vadd.f32 %v132, %v378
    %380 = vmatmul.f32.gmra.mxu0 %v217
    %v381 = vpop.f32.mrf.mxu0
    %v382 = vadd.f32 %v132, %v381
    %383 = vmatmul.f32.gmra.mxu0 %v220
    %v384 = vpop.f32.mrf.mxu0
    %v385 = vadd.f32 %v132, %v384
    %386 = vmatmul.f32.gmra.mxu0 %v223
    %v387 = vpop.f32.mrf.mxu0
    %v388 = vadd.f32 %v132, %v387
    %389 = vmatmul.f32.gmra.mxu0 %v226
    %v390 = vpop.f32.mrf.mxu0
    %v391 = vadd.f32 %v132, %v390
    %392 = vmatmul.f32.gmra.mxu0 %v229
    %v393 = vpop.f32.mrf.mxu0
    %v394 = vadd.f32 %v132, %v393
    %395 = vmatmul.f32.gmra.mxu0 %v232
    %v396 = vpop.f32.mrf.mxu0
    %v397 = vadd.f32 %v132, %v396
    %398 = vmatmul.f32.gmra.mxu0 %v235
    %v399 = vpop.f32.mrf.mxu0
    %v400 = vadd.f32 %v132, %v399
    %401 = vmatmul.f32.gmra.mxu0 %v238
    %v402 = vpop.f32.mrf.mxu0
    %v403 = vadd.f32 %v132, %v402
    %404 = vmatmul.f32.gmra.mxu0 %v241
    %v405 = vpop.f32.mrf.mxu0
    %v406 = vadd.f32 %v132, %v405
    %407 = vmatmul.f32.gmra.mxu0 %v244
    %v408 = vpop.f32.mrf.mxu0
    %v409 = vadd.f32 %v132, %v408
    %410 = vmatmul.f32.gmra.mxu0 %v247
    %v411 = vpop.f32.mrf.mxu0
    %v412 = vadd.f32 %v132, %v411
    %413 = vmatmul.f32.gmra.mxu0 %v250
    %v414 = vpop.f32.mrf.mxu0
    %v415 = vadd.f32 %v132, %v414
    %416 = vmatmul.f32.gmra.mxu0 %v253
    %v417 = vpop.f32.mrf.mxu0
    %v418 = vadd.f32 %v132, %v417
    %419 = vmatmul.f32.gmra.mxu0 %v256
    %v420 = vpop.f32.mrf.mxu0
    %v421 = vadd.f32 %v132, %v420
    %422 = vmatmul.f32.gmra.mxu0 %v259
    %v423 = vpop.f32.mrf.mxu0
    %v424 = vadd.f32 %v132, %v423
    %425 = vmatmul.f32.gmra.mxu0 %v262
    %v426 = vpop.f32.mrf.mxu0
    %v427 = vadd.f32 %v132, %v426
    %428 = vmatmul.f32.gmra.mxu0 %v265
    %v429 = vpop.f32.mrf.mxu0
    %v430 = vadd.f32 %v132, %v429
    %431 = vmatmul.f32.gmra.mxu0 %v268
    %v432 = vpop.f32.mrf.mxu0
    %v433 = vadd.f32 %v132, %v432
    %434 = vmatmul.f32.gmra.mxu0 %v271
    %v435 = vpop.f32.mrf.mxu0
    %v436 = vadd.f32 %v132, %v435
    %437 = vmatmul.f32.gmra.mxu0 %v274
    %v438 = vpop.f32.mrf.mxu0
    %v439 = vadd.f32 %v132, %v438
    %440 = vmatmul.f32.gmra.mxu0 %v277
    %v441 = vpop.f32.mrf.mxu0
    %v442 = vadd.f32 %v132, %v441
    %443 = vdwg.mxu0
    %v444 = vld [vmem:[%s5] sm:$0xff]
    %v445 = vld [vmem:[%s5 + $0x8] sm:$0xff]
    %v446 = vld [vmem:[%s5 + $0x10] sm:$0xff]
    %v447 = vld [vmem:[%s5 + $0x18] sm:$0xff]
    %v448 = vld [vmem:[%s5 + $0x20] sm:$0xff]
    %v449 = vld [vmem:[%s5 + $0x28] sm:$0xff]
    %v450 = vld [vmem:[%s5 + $0x30] sm:$0xff]
    %v451 = vld [vmem:[%s5 + $0x38] sm:$0xff]
    %v452 = vld [vmem:[%s5 + $0x40] sm:$0xff]
    %v453 = vld [vmem:[%s5 + $0x48] sm:$0xff]
    %v454 = vld [vmem:[%s5 + $0x50] sm:$0xff]
    %v455 = vld [vmem:[%s5 + $0x58] sm:$0xff]
    %v456 = vld [vmem:[%s5 + $0x60] sm:$0xff]
    %v457 = vld [vmem:[%s5 + $0x68] sm:$0xff]
    %v458 = vld [vmem:[%s5 + $0x70] sm:$0xff]
    %v459 = vld [vmem:[%s5 + $0x78] sm:$0xff]
    %v460 = vld [vmem:[%s5 + $0x80] sm:$0xff]
    %v461 = vld [vmem:[%s5 + $0x88] sm:$0xff]
    %v462 = vld [vmem:[%s5 + $0x90] sm:$0xff]
    %v463 = vld [vmem:[%s5 + $0x98] sm:$0xff]
    %v464 = vld [vmem:[%s5 + $0xa0] sm:$0xff]
    %v465 = vld [vmem:[%s5 + $0xa8] sm:$0xff]
    %v466 = vld [vmem:[%s5 + $0xb0] sm:$0xff]
    %v467 = vld [vmem:[%s5 + $0xb8] sm:$0xff]
    %v468 = vld [vmem:[%s5 + $0xc0] sm:$0xff]
    %v469 = vld [vmem:[%s5 + $0xc8] sm:$0xff]
    %v470 = vld [vmem:[%s5 + $0xd0] sm:$0xff]
    %v471 = vld [vmem:[%s5 + $0xd8] sm:$0xff]
    %v472 = vld [vmem:[%s5 + $0xe0] sm:$0xff]
    %v473 = vld [vmem:[%s5 + $0xe8] sm:$0xff]
    %v474 = vld [vmem:[%s5 + $0xf0] sm:$0xff]
    %v475 = vld [vmem:[%s5 + $0xf8] sm:$0xff]
    %v476 = vld [vmem:[%s5 + $0x100] sm:$0xff]
    %v477 = vld [vmem:[%s5 + $0x108] sm:$0xff]
    %v478 = vld [vmem:[%s5 + $0x110] sm:$0xff]
    %v479 = vld [vmem:[%s5 + $0x118] sm:$0xff]
    %v480 = vld [vmem:[%s5 + $0x120] sm:$0xff]
    %v481 = vld [vmem:[%s5 + $0x128] sm:$0xff]
    %v482 = vld [vmem:[%s5 + $0x130] sm:$0xff]
    %v483 = vld [vmem:[%s5 + $0x138] sm:$0xff]
    %v484 = vld [vmem:[%s5 + $0x140] sm:$0xff]
    %v485 = vld [vmem:[%s5 + $0x148] sm:$0xff]
    %v486 = vld [vmem:[%s5 + $0x150] sm:$0xff]
    %v487 = vld [vmem:[%s5 + $0x158] sm:$0xff]
    %v488 = vld [vmem:[%s5 + $0x160] sm:$0xff]
    %v489 = vld [vmem:[%s5 + $0x168] sm:$0xff]
    %v490 = vld [vmem:[%s5 + $0x170] sm:$0xff]
    %v491 = vld [vmem:[%s5 + $0x178] sm:$0xff]
    %493 = vset.pattern.permute.xlu0 0
    %494 = vperm.xlu0 %493, %v444
    %v495 = vpop.permute.xlu0 %494
    %498 = vset.pattern.permute.xlu0 0
    %499 = vperm.xlu0 %498, %v445
    %v500 = vpop.permute.xlu0 %499
    %503 = vset.pattern.permute.xlu0 0
    %504 = vperm.xlu0 %503, %v446
    %v505 = vpop.permute.xlu0 %504
    %508 = vset.pattern.permute.xlu0 0
    %509 = vperm.xlu0 %508, %v447
    %v510 = vpop.permute.xlu0 %509
    %513 = vset.pattern.permute.xlu0 0
    %514 = vperm.xlu0 %513, %v448
    %v515 = vpop.permute.xlu0 %514
    %518 = vset.pattern.permute.xlu0 0
    %519 = vperm.xlu0 %518, %v449
    %v520 = vpop.permute.xlu0 %519
    %523 = vset.pattern.permute.xlu0 0
    %524 = vperm.xlu0 %523, %v450
    %v525 = vpop.permute.xlu0 %524
    %528 = vset.pattern.permute.xlu0 0
    %529 = vperm.xlu0 %528, %v451
    %v530 = vpop.permute.xlu0 %529
    %533 = vset.pattern.permute.xlu0 0
    %534 = vperm.xlu0 %533, %v452
    %v535 = vpop.permute.xlu0 %534
    %538 = vset.pattern.permute.xlu0 0
    %539 = vperm.xlu0 %538, %v453
    %v540 = vpop.permute.xlu0 %539
    %543 = vset.pattern.permute.xlu0 0
    %544 = vperm.xlu0 %543, %v454
    %v545 = vpop.permute.xlu0 %544
    %548 = vset.pattern.permute.xlu0 0
    %549 = vperm.xlu0 %548, %v455
    %v550 = vpop.permute.xlu0 %549
    %553 = vset.pattern.permute.xlu0 0
    %554 = vperm.xlu0 %553, %v456
    %v555 = vpop.permute.xlu0 %554
    %558 = vset.pattern.permute.xlu0 0
    %559 = vperm.xlu0 %558, %v457
    %v560 = vpop.permute.xlu0 %559
    %563 = vset.pattern.permute.xlu0 0
    %564 = vperm.xlu0 %563, %v458
    %v565 = vpop.permute.xlu0 %564
    %568 = vset.pattern.permute.xlu0 0
    %569 = vperm.xlu0 %568, %v459
    %v570 = vpop.permute.xlu0 %569
    %573 = vset.pattern.permute.xlu0 0
    %574 = vperm.xlu0 %573, %v460
    %v575 = vpop.permute.xlu0 %574
    %578 = vset.pattern.permute.xlu0 0
    %579 = vperm.xlu0 %578, %v461
    %v580 = vpop.permute.xlu0 %579
    %583 = vset.pattern.permute.xlu0 0
    %584 = vperm.xlu0 %583, %v462
    %v585 = vpop.permute.xlu0 %584
    %588 = vset.pattern.permute.xlu0 0
    %589 = vperm.xlu0 %588, %v463
    %v590 = vpop.permute.xlu0 %589
    %593 = vset.pattern.permute.xlu0 0
    %594 = vperm.xlu0 %593, %v464
    %v595 = vpop.permute.xlu0 %594
    %598 = vset.pattern.permute.xlu0 0
    %599 = vperm.xlu0 %598, %v465
    %v600 = vpop.permute.xlu0 %599
    %603 = vset.pattern.permute.xlu0 0
    %604 = vperm.xlu0 %603, %v466
    %v605 = vpop.permute.xlu0 %604
    %608 = vset.pattern.permute.xlu0 0
    %609 = vperm.xlu0 %608, %v467
    %v610 = vpop.permute.xlu0 %609
    %613 = vset.pattern.permute.xlu0 0
    %614 = vperm.xlu0 %613, %v468
    %v615 = vpop.permute.xlu0 %614
    %618 = vset.pattern.permute.xlu0 0
    %619 = vperm.xlu0 %618, %v469
    %v620 = vpop.permute.xlu0 %619
    %623 = vset.pattern.permute.xlu0 0
    %624 = vperm.xlu0 %623, %v470
    %v625 = vpop.permute.xlu0 %624
    %628 = vset.pattern.permute.xlu0 0
    %629 = vperm.xlu0 %628, %v471
    %v630 = vpop.permute.xlu0 %629
    %633 = vset.pattern.permute.xlu0 0
    %634 = vperm.xlu0 %633, %v472
    %v635 = vpop.permute.xlu0 %634
    %638 = vset.pattern.permute.xlu0 0
    %639 = vperm.xlu0 %638, %v473
    %v640 = vpop.permute.xlu0 %639
    %643 = vset.pattern.permute.xlu0 0
    %644 = vperm.xlu0 %643, %v474
    %v645 = vpop.permute.xlu0 %644
    %648 = vset.pattern.permute.xlu0 0
    %649 = vperm.xlu0 %648, %v475
    %v650 = vpop.permute.xlu0 %649
    %653 = vset.pattern.permute.xlu0 0
    %654 = vperm.xlu0 %653, %v476
    %v655 = vpop.permute.xlu0 %654
    %658 = vset.pattern.permute.xlu0 0
    %659 = vperm.xlu0 %658, %v477
    %v660 = vpop.permute.xlu0 %659
    %663 = vset.pattern.permute.xlu0 0
    %664 = vperm.xlu0 %663, %v478
    %v665 = vpop.permute.xlu0 %664
    %668 = vset.pattern.permute.xlu0 0
    %669 = vperm.xlu0 %668, %v479
    %v670 = vpop.permute.xlu0 %669
    %673 = vset.pattern.permute.xlu0 0
    %674 = vperm.xlu0 %673, %v480
    %v675 = vpop.permute.xlu0 %674
    %678 = vset.pattern.permute.xlu0 0
    %679 = vperm.xlu0 %678, %v481
    %v680 = vpop.permute.xlu0 %679
    %683 = vset.pattern.permute.xlu0 0
    %684 = vperm.xlu0 %683, %v482
    %v685 = vpop.permute.xlu0 %684
    %688 = vset.pattern.permute.xlu0 0
    %689 = vperm.xlu0 %688, %v483
    %v690 = vpop.permute.xlu0 %689
    %693 = vset.pattern.permute.xlu0 0
    %694 = vperm.xlu0 %693, %v484
    %v695 = vpop.permute.xlu0 %694
    %698 = vset.pattern.permute.xlu0 0
    %699 = vperm.xlu0 %698, %v485
    %v700 = vpop.permute.xlu0 %699
    %703 = vset.pattern.permute.xlu0 0
    %704 = vperm.xlu0 %703, %v486
    %v705 = vpop.permute.xlu0 %704
    %708 = vset.pattern.permute.xlu0 0
    %709 = vperm.xlu0 %708, %v487
    %v710 = vpop.permute.xlu0 %709
    %713 = vset.pattern.permute.xlu0 0
    %714 = vperm.xlu0 %713, %v488
    %v715 = vpop.permute.xlu0 %714
    %718 = vset.pattern.permute.xlu0 0
    %719 = vperm.xlu0 %718, %v489
    %v720 = vpop.permute.xlu0 %719
    %723 = vset.pattern.permute.xlu0 0
    %724 = vperm.xlu0 %723, %v490
    %v725 = vpop.permute.xlu0 %724
    %728 = vset.pattern.permute.xlu0 0
    %729 = vperm.xlu0 %728, %v491
    %v730 = vpop.permute.xlu0 %729
    %v732 = vmul.f32 %v301, %v495
    %v733 = vmul.f32 %v304, %v500
    %v734 = vmul.f32 %v307, %v505
    %v735 = vmul.f32 %v310, %v510
    %v736 = vmul.f32 %v313, %v515
    %v737 = vmul.f32 %v316, %v520
    %v738 = vmul.f32 %v319, %v525
    %v739 = vmul.f32 %v322, %v530
    %v740 = vmul.f32 %v325, %v535
    %v741 = vmul.f32 %v328, %v540
    %v742 = vmul.f32 %v331, %v545
    %v743 = vmul.f32 %v334, %v550
    %v744 = vmul.f32 %v337, %v555
    %v745 = vmul.f32 %v340, %v560
    %v746 = vmul.f32 %v343, %v565
    %v747 = vmul.f32 %v346, %v570
    %v748 = vmul.f32 %v349, %v575
    %v749 = vmul.f32 %v352, %v580
    %v750 = vmul.f32 %v355, %v585
    %v751 = vmul.f32 %v358, %v590
    %v752 = vmul.f32 %v361, %v595
    %v753 = vmul.f32 %v364, %v600
    %v754 = vmul.f32 %v367, %v605
    %v755 = vmul.f32 %v370, %v610
    %v756 = vmul.f32 %v373, %v615
    %v757 = vmul.f32 %v376, %v620
    %v758 = vmul.f32 %v379, %v625
    %v759 = vmul.f32 %v382, %v630
    %v760 = vmul.f32 %v385, %v635
    %v761 = vmul.f32 %v388, %v640
    %v762 = vmul.f32 %v391, %v645
    %v763 = vmul.f32 %v394, %v650
    %v764 = vmul.f32 %v397, %v655
    %v765 = vmul.f32 %v400, %v660
    %v766 = vmul.f32 %v403, %v665
    %v767 = vmul.f32 %v406, %v670
    %v768 = vmul.f32 %v409, %v675
    %v769 = vmul.f32 %v412, %v680
    %v770 = vmul.f32 %v415, %v685
    %v771 = vmul.f32 %v418, %v690
    %v772 = vmul.f32 %v421, %v695
    %v773 = vmul.f32 %v424, %v700
    %v774 = vmul.f32 %v427, %v705
    %v775 = vmul.f32 %v430, %v710
    %v776 = vmul.f32 %v433, %v715
    %v777 = vmul.f32 %v436, %v720
    %v778 = vmul.f32 %v439, %v725
    %v779 = vmul.f32 %v442, %v730
    %vm780 = vcmask 523264
    %v781 = vsel %vm780, %v732, 0.0
    %v782 = vsel %vm780, %v733, 0.0
    %v783 = vadd.f32 %v781, %v782
    %v784 = vsel %vm780, %v734, 0.0
    %v785 = vadd.f32 %v783, %v784
    %v786 = vsel %vm780, %v735, 0.0
    %v787 = vadd.f32 %v785, %v786
    %v788 = vsel %vm780, %v736, 0.0
    %v789 = vadd.f32 %v787, %v788
    %v790 = vsel %vm780, %v737, 0.0
    %v791 = vadd.f32 %v789, %v790
    %v792 = vsel %vm780, %v738, 0.0
    %v793 = vadd.f32 %v791, %v792
    %v794 = vsel %vm780, %v739, 0.0
    %v795 = vadd.f32 %v793, %v794
    %v796 = vsel %vm780, %v740, 0.0
    %v797 = vadd.f32 %v795, %v796
    %v798 = vsel %vm780, %v741, 0.0
    %v799 = vadd.f32 %v797, %v798
    %v800 = vsel %vm780, %v742, 0.0
    %v801 = vadd.f32 %v799, %v800
    %v802 = vsel %vm780, %v743, 0.0
    %v803 = vadd.f32 %v801, %v802
    %v804 = vsel %vm780, %v744, 0.0
    %v805 = vadd.f32 %v803, %v804
    %v806 = vsel %vm780, %v745, 0.0
    %v807 = vadd.f32 %v805, %v806
    %v808 = vsel %vm780, %v746, 0.0
    %v809 = vadd.f32 %v807, %v808
    %v810 = vsel %vm780, %v747, 0.0
    %v811 = vadd.f32 %v809, %v810
    %v812 = vsel %vm780, %v748, 0.0
    %v813 = vadd.f32 %v811, %v812
    %v814 = vsel %vm780, %v749, 0.0
    %v815 = vadd.f32 %v813, %v814
    %v816 = vsel %vm780, %v750, 0.0
    %v817 = vadd.f32 %v815, %v816
    %v818 = vsel %vm780, %v751, 0.0
    %v819 = vadd.f32 %v817, %v818
    %v820 = vsel %vm780, %v752, 0.0
    %v821 = vadd.f32 %v819, %v820
    %v822 = vsel %vm780, %v753, 0.0
    %v823 = vadd.f32 %v821, %v822
    %v824 = vsel %vm780, %v754, 0.0
    %v825 = vadd.f32 %v823, %v824
    %v826 = vsel %vm780, %v755, 0.0
    %v827 = vadd.f32 %v825, %v826
    %v828 = vsel %vm780, %v756, 0.0
    %v829 = vadd.f32 %v827, %v828
    %v830 = vsel %vm780, %v757, 0.0
    %v831 = vadd.f32 %v829, %v830
    %v832 = vsel %vm780, %v758, 0.0
    %v833 = vadd.f32 %v831, %v832
    %v834 = vsel %vm780, %v759, 0.0
    %v835 = vadd.f32 %v833, %v834
    %v836 = vsel %vm780, %v760, 0.0
    %v837 = vadd.f32 %v835, %v836
    %v838 = vsel %vm780, %v761, 0.0
    %v839 = vadd.f32 %v837, %v838
    %v840 = vsel %vm780, %v762, 0.0
    %v841 = vadd.f32 %v839, %v840
    %v842 = vsel %vm780, %v763, 0.0
    %v843 = vadd.f32 %v841, %v842
    %v844 = vrot.slane %v843, 4
    %v845 = vadd.f32 %v843, %v844
    %v846 = vrot.slane %v845, 2
    %v847 = vadd.f32 %v845, %v846
    %v848 = vrot.slane %v847, 1
    %v849 = vadd.f32 %v847, %v848
    %v850 = vmul.f32 %v732, %v732
    %v851 = vmul.f32 %v733, %v733
    %v852 = vmul.f32 %v734, %v734
    %v853 = vmul.f32 %v735, %v735
    %v854 = vmul.f32 %v736, %v736
    %v855 = vmul.f32 %v737, %v737
    %v856 = vmul.f32 %v738, %v738
    %v857 = vmul.f32 %v739, %v739
    %v858 = vmul.f32 %v740, %v740
    %v859 = vmul.f32 %v741, %v741
    %v860 = vmul.f32 %v742, %v742
    %v861 = vmul.f32 %v743, %v743
    %v862 = vmul.f32 %v744, %v744
    %v863 = vmul.f32 %v745, %v745
    %v864 = vmul.f32 %v746, %v746
    %v865 = vmul.f32 %v747, %v747
    %v866 = vmul.f32 %v748, %v748
    %v867 = vmul.f32 %v749, %v749
    %v868 = vmul.f32 %v750, %v750
    %v869 = vmul.f32 %v751, %v751
    %v870 = vmul.f32 %v752, %v752
    %v871 = vmul.f32 %v753, %v753
    %v872 = vmul.f32 %v754, %v754
    %v873 = vmul.f32 %v755, %v755
    %v874 = vmul.f32 %v756, %v756
    %v875 = vmul.f32 %v757, %v757
    %v876 = vmul.f32 %v758, %v758
    %v877 = vmul.f32 %v759, %v759
    %v878 = vmul.f32 %v760, %v760
    %v879 = vmul.f32 %v761, %v761
    %v880 = vmul.f32 %v762, %v762
    %v881 = vmul.f32 %v763, %v763
    %v882 = vsel %vm780, %v850, 0.0
    %v883 = vsel %vm780, %v851, 0.0
    %v884 = vadd.f32 %v882, %v883
    %v885 = vsel %vm780, %v852, 0.0
    %v886 = vadd.f32 %v884, %v885
    %v887 = vsel %vm780, %v853, 0.0
    %v888 = vadd.f32 %v886, %v887
    %v889 = vsel %vm780, %v854, 0.0
    %v890 = vadd.f32 %v888, %v889
    %v891 = vsel %vm780, %v855, 0.0
    %v892 = vadd.f32 %v890, %v891
    %v893 = vsel %vm780, %v856, 0.0
    %v894 = vadd.f32 %v892, %v893
    %v895 = vsel %vm780, %v857, 0.0
    %v896 = vadd.f32 %v894, %v895
    %v897 = vsel %vm780, %v858, 0.0
    %v898 = vadd.f32 %v896, %v897
    %v899 = vsel %vm780, %v859, 0.0
    %v900 = vadd.f32 %v898, %v899
    %v901 = vsel %vm780, %v860, 0.0
    %v902 = vadd.f32 %v900, %v901
    %v903 = vsel %vm780, %v861, 0.0
    %v904 = vadd.f32 %v902, %v903
    %v905 = vsel %vm780, %v862, 0.0
    %v906 = vadd.f32 %v904, %v905
    %v907 = vsel %vm780, %v863, 0.0
    %v908 = vadd.f32 %v906, %v907
    %v909 = vsel %vm780, %v864, 0.0
    %v910 = vadd.f32 %v908, %v909
    %v911 = vsel %vm780, %v865, 0.0
    %v912 = vadd.f32 %v910, %v911
    %v913 = vsel %vm780, %v866, 0.0
    %v914 = vadd.f32 %v912, %v913
    %v915 = vsel %vm780, %v867, 0.0
    %v916 = vadd.f32 %v914, %v915
    %v917 = vsel %vm780, %v868, 0.0
    %v918 = vadd.f32 %v916, %v917
    %v919 = vsel %vm780, %v869, 0.0
    %v920 = vadd.f32 %v918, %v919
    %v921 = vsel %vm780, %v870, 0.0
    %v922 = vadd.f32 %v920, %v921
    %v923 = vsel %vm780, %v871, 0.0
    %v924 = vadd.f32 %v922, %v923
    %v925 = vsel %vm780, %v872, 0.0
    %v926 = vadd.f32 %v924, %v925
    %v927 = vsel %vm780, %v873, 0.0
    %v928 = vadd.f32 %v926, %v927
    %v929 = vsel %vm780, %v874, 0.0
    %v930 = vadd.f32 %v928, %v929
    %v931 = vsel %vm780, %v875, 0.0
    %v932 = vadd.f32 %v930, %v931
    %v933 = vsel %vm780, %v876, 0.0
    %v934 = vadd.f32 %v932, %v933
    %v935 = vsel %vm780, %v877, 0.0
    %v936 = vadd.f32 %v934, %v935
    %v937 = vsel %vm780, %v878, 0.0
    %v938 = vadd.f32 %v936, %v937
    %v939 = vsel %vm780, %v879, 0.0
    %v940 = vadd.f32 %v938, %v939
    %v941 = vsel %vm780, %v880, 0.0
    %v942 = vadd.f32 %v940, %v941
    %v943 = vsel %vm780, %v881, 0.0
    %v944 = vadd.f32 %v942, %v943
    %v945 = vrot.slane %v944, 4
    %v946 = vadd.f32 %v944, %v945
    %v947 = vrot.slane %v946, 2
    %v948 = vadd.f32 %v946, %v947
    %v949 = vrot.slane %v948, 1
    %v950 = vadd.f32 %v948, %v949
    %v951 = vmul.f32 %v849, 0.0040983604
    %v952 = vmul.f32 %v950, 0.0040983604
    %v953 = vmul.f32 %v951, %v951
    %v954 = vsub.f32 %v952, %v953
    %v955 = vmax.f32 %v954, 0.0
    %v956 = vld [vmem:[%s3] sm:$0x1]
    %v957 = vadd.f32 %v955, 1e-05
    %v958 = vrsqrt.pop %v957
    %v959 = vmul.f32 %v958, %v957
    %v960 = vmul.f32 %v959, %v958
    %v961 = vmul.f32 0.5, %v960
    %v962 = vsub.f32 1.5, %v961
    %v963 = vmul.f32 %v958, %v962
    %vm964 = vweird.f32 %v957
    %vm965 = vweird.f32 %v958
    %vm966 = vmor %vm964, %vm965
    %v967 = vsel %vm966, %v958, %v963
    %v968 = vmul.f32 %v956, %v967
    %v969 = vld [vmem:[%s4] sm:$0x1]
    %v970 = vmul.f32 %v951, %v968
    %v971 = vsub.f32 %v969, %v970
    %v973 = vperm.slane %v968, 0
    %v975 = vmul.f32 %v732, %v973
    %v976 = vmul.f32 %v733, %v973
    %v977 = vmul.f32 %v734, %v973
    %v978 = vmul.f32 %v735, %v973
    %v979 = vmul.f32 %v736, %v973
    %v980 = vmul.f32 %v737, %v973
    %v981 = vmul.f32 %v738, %v973
    %v982 = vmul.f32 %v739, %v973
    %v983 = vmul.f32 %v740, %v973
    %v984 = vmul.f32 %v741, %v973
    %v985 = vmul.f32 %v742, %v973
    %v986 = vmul.f32 %v743, %v973
    %v987 = vmul.f32 %v744, %v973
    %v988 = vmul.f32 %v745, %v973
    %v989 = vmul.f32 %v746, %v973
    %v990 = vmul.f32 %v747, %v973
    %v991 = vmul.f32 %v748, %v973
    %v992 = vmul.f32 %v749, %v973
    %v993 = vmul.f32 %v750, %v973
    %v994 = vmul.f32 %v751, %v973
    %v995 = vmul.f32 %v752, %v973
    %v996 = vmul.f32 %v753, %v973
    %v997 = vmul.f32 %v754, %v973
    %v998 = vmul.f32 %v755, %v973
    %v999 = vmul.f32 %v756, %v973
    %v1000 = vmul.f32 %v757, %v973
    %v1001 = vmul.f32 %v758, %v973
    %v1002 = vmul.f32 %v759, %v973
    %v1003 = vmul.f32 %v760, %v973
    %v1004 = vmul.f32 %v761, %v973
    %v1005 = vmul.f32 %v762, %v973
    %v1006 = vmul.f32 %v763, %v973
    %v1008 = vperm.slane %v971, 0
    %v1010 = vadd.f32 %v975, %v1008
    %v1011 = vadd.f32 %v976, %v1008
    %v1012 = vadd.f32 %v977, %v1008
    %v1013 = vadd.f32 %v978, %v1008
    %v1014 = vadd.f32 %v979, %v1008
    %v1015 = vadd.f32 %v980, %v1008
    %v1016 = vadd.f32 %v981, %v1008
    %v1017 = vadd.f32 %v982, %v1008
    %v1018 = vadd.f32 %v983, %v1008
    %v1019 = vadd.f32 %v984, %v1008
    %v1020 = vadd.f32 %v985, %v1008
    %v1021 = vadd.f32 %v986, %v1008
    %v1022 = vadd.f32 %v987, %v1008
    %v1023 = vadd.f32 %v988, %v1008
    %v1024 = vadd.f32 %v989, %v1008
    %v1025 = vadd.f32 %v990, %v1008
    %v1026 = vadd.f32 %v991, %v1008
    %v1027 = vadd.f32 %v992, %v1008
    %v1028 = vadd.f32 %v993, %v1008
    %v1029 = vadd.f32 %v994, %v1008
    %v1030 = vadd.f32 %v995, %v1008
    %v1031 = vadd.f32 %v996, %v1008
    %v1032 = vadd.f32 %v997, %v1008
    %v1033 = vadd.f32 %v998, %v1008
    %v1034 = vadd.f32 %v999, %v1008
    %v1035 = vadd.f32 %v1000, %v1008
    %v1036 = vadd.f32 %v1001, %v1008
    %v1037 = vadd.f32 %v1002, %v1008
    %v1038 = vadd.f32 %v1003, %v1008
    %v1039 = vadd.f32 %v1004, %v1008
    %v1040 = vadd.f32 %v1005, %v1008
    %v1041 = vadd.f32 %v1006, %v1008
    %v1042 = vmax.f32 %v1010, 0.0
    %v1043 = vmax.f32 %v1011, 0.0
    %v1044 = vmax.f32 %v1012, 0.0
    %v1045 = vmax.f32 %v1013, 0.0
    %v1046 = vmax.f32 %v1014, 0.0
    %v1047 = vmax.f32 %v1015, 0.0
    %v1048 = vmax.f32 %v1016, 0.0
    %v1049 = vmax.f32 %v1017, 0.0
    %v1050 = vmax.f32 %v1018, 0.0
    %v1051 = vmax.f32 %v1019, 0.0
    %v1052 = vmax.f32 %v1020, 0.0
    %v1053 = vmax.f32 %v1021, 0.0
    %v1054 = vmax.f32 %v1022, 0.0
    %v1055 = vmax.f32 %v1023, 0.0
    %v1056 = vmax.f32 %v1024, 0.0
    %v1057 = vmax.f32 %v1025, 0.0
    %v1058 = vmax.f32 %v1026, 0.0
    %v1059 = vmax.f32 %v1027, 0.0
    %v1060 = vmax.f32 %v1028, 0.0
    %v1061 = vmax.f32 %v1029, 0.0
    %v1062 = vmax.f32 %v1030, 0.0
    %v1063 = vmax.f32 %v1031, 0.0
    %v1064 = vmax.f32 %v1032, 0.0
    %v1065 = vmax.f32 %v1033, 0.0
    %v1066 = vmax.f32 %v1034, 0.0
    %v1067 = vmax.f32 %v1035, 0.0
    %v1068 = vmax.f32 %v1036, 0.0
    %v1069 = vmax.f32 %v1037, 0.0
    %v1070 = vmax.f32 %v1038, 0.0
    %v1071 = vmax.f32 %v1039, 0.0
    %v1072 = vmax.f32 %v1040, 0.0
    %v1073 = vmax.f32 %v1041, 0.0
    %v1074 = vsel %vm780, %v764, 0.0
    %v1075 = vsel %vm780, %v765, 0.0
    %v1076 = vadd.f32 %v1074, %v1075
    %v1077 = vsel %vm780, %v766, 0.0
    %v1078 = vadd.f32 %v1076, %v1077
    %v1079 = vsel %vm780, %v767, 0.0
    %v1080 = vadd.f32 %v1078, %v1079
    %v1081 = vsel %vm780, %v768, 0.0
    %v1082 = vadd.f32 %v1080, %v1081
    %v1083 = vsel %vm780, %v769, 0.0
    %v1084 = vadd.f32 %v1082, %v1083
    %v1085 = vsel %vm780, %v770, 0.0
    %v1086 = vadd.f32 %v1084, %v1085
    %v1087 = vsel %vm780, %v771, 0.0
    %v1088 = vadd.f32 %v1086, %v1087
    %v1089 = vsel %vm780, %v772, 0.0
    %v1090 = vadd.f32 %v1088, %v1089
    %v1091 = vsel %vm780, %v773, 0.0
    %v1092 = vadd.f32 %v1090, %v1091
    %v1093 = vsel %vm780, %v774, 0.0
    %v1094 = vadd.f32 %v1092, %v1093
    %v1095 = vsel %vm780, %v775, 0.0
    %v1096 = vadd.f32 %v1094, %v1095
    %v1097 = vsel %vm780, %v776, 0.0
    %v1098 = vadd.f32 %v1096, %v1097
    %v1099 = vsel %vm780, %v777, 0.0
    %v1100 = vadd.f32 %v1098, %v1099
    %v1101 = vsel %vm780, %v778, 0.0
    %v1102 = vadd.f32 %v1100, %v1101
    %v1103 = vsel %vm780, %v779, 0.0
    %v1104 = vadd.f32 %v1102, %v1103
    %v1105 = vrot.slane %v1104, 4
    %v1106 = vadd.f32 %v1104, %v1105
    %v1107 = vrot.slane %v1106, 2
    %v1108 = vadd.f32 %v1106, %v1107
    %v1109 = vrot.slane %v1108, 1
    %v1110 = vadd.f32 %v1108, %v1109
    %v1111 = vmul.f32 %v764, %v764
    %v1112 = vmul.f32 %v765, %v765
    %v1113 = vmul.f32 %v766, %v766
    %v1114 = vmul.f32 %v767, %v767
    %v1115 = vmul.f32 %v768, %v768
    %v1116 = vmul.f32 %v769, %v769
    %v1117 = vmul.f32 %v770, %v770
    %v1118 = vmul.f32 %v771, %v771
    %v1119 = vmul.f32 %v772, %v772
    %v1120 = vmul.f32 %v773, %v773
    %v1121 = vmul.f32 %v774, %v774
    %v1122 = vmul.f32 %v775, %v775
    %v1123 = vmul.f32 %v776, %v776
    %v1124 = vmul.f32 %v777, %v777
    %v1125 = vmul.f32 %v778, %v778
    %v1126 = vmul.f32 %v779, %v779
    %v1127 = vsel %vm780, %v1111, 0.0
    %v1128 = vsel %vm780, %v1112, 0.0
    %v1129 = vadd.f32 %v1127, %v1128
    %v1130 = vsel %vm780, %v1113, 0.0
    %v1131 = vadd.f32 %v1129, %v1130
    %v1132 = vsel %vm780, %v1114, 0.0
    %v1133 = vadd.f32 %v1131, %v1132
    %v1134 = vsel %vm780, %v1115, 0.0
    %v1135 = vadd.f32 %v1133, %v1134
    %v1136 = vsel %vm780, %v1116, 0.0
    %v1137 = vadd.f32 %v1135, %v1136
    %v1138 = vsel %vm780, %v1117, 0.0
    %v1139 = vadd.f32 %v1137, %v1138
    %v1140 = vsel %vm780, %v1118, 0.0
    %v1141 = vadd.f32 %v1139, %v1140
    %v1142 = vsel %vm780, %v1119, 0.0
    %v1143 = vadd.f32 %v1141, %v1142
    %v1144 = vsel %vm780, %v1120, 0.0
    %v1145 = vadd.f32 %v1143, %v1144
    %v1146 = vsel %vm780, %v1121, 0.0
    %v1147 = vadd.f32 %v1145, %v1146
    %v1148 = vsel %vm780, %v1122, 0.0
    %v1149 = vadd.f32 %v1147, %v1148
    %v1150 = vsel %vm780, %v1123, 0.0
    %v1151 = vadd.f32 %v1149, %v1150
    %v1152 = vsel %vm780, %v1124, 0.0
    %v1153 = vadd.f32 %v1151, %v1152
    %v1154 = vsel %vm780, %v1125, 0.0
    %v1155 = vadd.f32 %v1153, %v1154
    %v1156 = vsel %vm780, %v1126, 0.0
    %v1157 = vadd.f32 %v1155, %v1156
    %v1158 = vrot.slane %v1157, 4
    %v1159 = vadd.f32 %v1157, %v1158
    %v1160 = vrot.slane %v1159, 2
    %v1161 = vadd.f32 %v1159, %v1160
    %v1162 = vrot.slane %v1161, 1
    %v1163 = vadd.f32 %v1161, %v1162
    %v1164 = vmul.f32 %v1110, 0.008196721
    %v1165 = vmul.f32 %v1163, 0.008196721
    %v1166 = vmul.f32 %v1164, %v1164
    %v1167 = vsub.f32 %v1165, %v1166
    %v1168 = vmax.f32 %v1167, 0.0
    %v1169 = vadd.f32 %v1168, 1e-05
    %v1170 = vrsqrt.pop %v1169
    %v1171 = vmul.f32 %v1170, %v1169
    %v1172 = vmul.f32 %v1171, %v1170
    %v1173 = vmul.f32 0.5, %v1172
    %v1174 = vsub.f32 1.5, %v1173
    %v1175 = vmul.f32 %v1170, %v1174
    %vm1176 = vweird.f32 %v1169
    %vm1177 = vweird.f32 %v1170
    %vm1178 = vmor %vm1176, %vm1177
    %v1179 = vsel %vm1178, %v1170, %v1175
    %v1180 = vmul.f32 %v956, %v1179
    %v1181 = vmul.f32 %v1164, %v1180
    %v1182 = vsub.f32 %v969, %v1181
    %v1184 = vperm.slane %v1180, 0
    %v1186 = vmul.f32 %v764, %v1184
    %v1187 = vmul.f32 %v765, %v1184
    %v1188 = vmul.f32 %v766, %v1184
    %v1189 = vmul.f32 %v767, %v1184
    %v1190 = vmul.f32 %v768, %v1184
    %v1191 = vmul.f32 %v769, %v1184
    %v1192 = vmul.f32 %v770, %v1184
    %v1193 = vmul.f32 %v771, %v1184
    %v1194 = vmul.f32 %v772, %v1184
    %v1195 = vmul.f32 %v773, %v1184
    %v1196 = vmul.f32 %v774, %v1184
    %v1197 = vmul.f32 %v775, %v1184
    %v1198 = vmul.f32 %v776, %v1184
    %v1199 = vmul.f32 %v777, %v1184
    %v1200 = vmul.f32 %v778, %v1184
    %v1201 = vmul.f32 %v779, %v1184
    %v1203 = vperm.slane %v1182, 0
    %v1205 = vadd.f32 %v1186, %v1203
    %v1206 = vadd.f32 %v1187, %v1203
    %v1207 = vadd.f32 %v1188, %v1203
    %v1208 = vadd.f32 %v1189, %v1203
    %v1209 = vadd.f32 %v1190, %v1203
    %v1210 = vadd.f32 %v1191, %v1203
    %v1211 = vadd.f32 %v1192, %v1203
    %v1212 = vadd.f32 %v1193, %v1203
    %v1213 = vadd.f32 %v1194, %v1203
    %v1214 = vadd.f32 %v1195, %v1203
    %v1215 = vadd.f32 %v1196, %v1203
    %v1216 = vadd.f32 %v1197, %v1203
    %v1217 = vadd.f32 %v1198, %v1203
    %v1218 = vadd.f32 %v1199, %v1203
    %v1219 = vadd.f32 %v1200, %v1203
    %v1220 = vadd.f32 %v1201, %v1203
    %v1221 = vmax.f32 %v1205, 0.0
    %v1222 = vmax.f32 %v1206, 0.0
    %v1223 = vmax.f32 %v1207, 0.0
    %v1224 = vmax.f32 %v1208, 0.0
    %v1225 = vmax.f32 %v1209, 0.0
    %v1226 = vmax.f32 %v1210, 0.0
    %v1227 = vmax.f32 %v1211, 0.0
    %v1228 = vmax.f32 %v1212, 0.0
    %v1229 = vmax.f32 %v1213, 0.0
    %v1230 = vmax.f32 %v1214, 0.0
    %v1231 = vmax.f32 %v1215, 0.0
    %v1232 = vmax.f32 %v1216, 0.0
    %v1233 = vmax.f32 %v1217, 0.0
    %v1234 = vmax.f32 %v1218, 0.0
    %v1235 = vmax.f32 %v1219, 0.0
    %v1236 = vmax.f32 %v1220, 0.0
    %vm1286 = vcmask 1046528
    %v1287 = vrot.slane %v1042, 1
    %v1288 = vrot.slane %v1043, 1
    %v1289 = vsel %vm1286, %v1287, %v1288
    %v1290 = vrot.slane %v1044, 1
    %v1291 = vsel %vm1286, %v1288, %v1290
    %v1292 = vrot.slane %v1045, 1
    %v1293 = vsel %vm1286, %v1290, %v1292
    %v1294 = vrot.slane %v1046, 1
    %v1295 = vsel %vm1286, %v1292, %v1294
    %v1296 = vrot.slane %v1047, 1
    %v1297 = vsel %vm1286, %v1294, %v1296
    %v1298 = vrot.slane %v1048, 1
    %v1299 = vsel %vm1286, %v1296, %v1298
    %v1300 = vrot.slane %v1049, 1
    %v1301 = vsel %vm1286, %v1298, %v1300
    %v1302 = vrot.slane %v1050, 1
    %v1303 = vsel %vm1286, %v1300, %v1302
    %v1304 = vrot.slane %v1051, 1
    %v1305 = vsel %vm1286, %v1302, %v1304
    %v1306 = vrot.slane %v1052, 1
    %v1307 = vsel %vm1286, %v1304, %v1306
    %v1308 = vrot.slane %v1053, 1
    %v1309 = vsel %vm1286, %v1306, %v1308
    %v1310 = vrot.slane %v1054, 1
    %v1311 = vsel %vm1286, %v1308, %v1310
    %v1312 = vrot.slane %v1055, 1
    %v1313 = vsel %vm1286, %v1310, %v1312
    %v1314 = vrot.slane %v1056, 1
    %v1315 = vsel %vm1286, %v1312, %v1314
    %v1316 = vrot.slane %v1057, 1
    %v1317 = vsel %vm1286, %v1314, %v1316
    %v1318 = vrot.slane %v1058, 1
    %v1319 = vsel %vm1286, %v1316, %v1318
    %v1320 = vrot.slane %v1059, 1
    %v1321 = vsel %vm1286, %v1318, %v1320
    %v1322 = vrot.slane %v1060, 1
    %v1323 = vsel %vm1286, %v1320, %v1322
    %v1324 = vrot.slane %v1061, 1
    %v1325 = vsel %vm1286, %v1322, %v1324
    %v1326 = vrot.slane %v1062, 1
    %v1327 = vsel %vm1286, %v1324, %v1326
    %v1328 = vrot.slane %v1063, 1
    %v1329 = vsel %vm1286, %v1326, %v1328
    %v1330 = vrot.slane %v1064, 1
    %v1331 = vsel %vm1286, %v1328, %v1330
    %v1332 = vrot.slane %v1065, 1
    %v1333 = vsel %vm1286, %v1330, %v1332
    %v1334 = vrot.slane %v1066, 1
    %v1335 = vsel %vm1286, %v1332, %v1334
    %v1336 = vrot.slane %v1067, 1
    %v1337 = vsel %vm1286, %v1334, %v1336
    %v1338 = vrot.slane %v1068, 1
    %v1339 = vsel %vm1286, %v1336, %v1338
    %v1340 = vrot.slane %v1069, 1
    %v1341 = vsel %vm1286, %v1338, %v1340
    %v1342 = vrot.slane %v1070, 1
    %v1343 = vsel %vm1286, %v1340, %v1342
    %v1344 = vrot.slane %v1071, 1
    %v1345 = vsel %vm1286, %v1342, %v1344
    %v1346 = vrot.slane %v1072, 1
    %v1347 = vsel %vm1286, %v1344, %v1346
    %v1348 = vrot.slane %v1073, 1
    %v1349 = vsel %vm1286, %v1346, %v1348
    %v1350 = vrot.slane %v1221, 1
    %v1351 = vsel %vm1286, %v1348, %v1350
    %v1352 = vrot.slane %v1222, 1
    %v1353 = vsel %vm1286, %v1350, %v1352
    %v1354 = vrot.slane %v1223, 1
    %v1355 = vsel %vm1286, %v1352, %v1354
    %v1356 = vrot.slane %v1224, 1
    %v1357 = vsel %vm1286, %v1354, %v1356
    %v1358 = vrot.slane %v1225, 1
    %v1359 = vsel %vm1286, %v1356, %v1358
    %v1360 = vrot.slane %v1226, 1
    %v1361 = vsel %vm1286, %v1358, %v1360
    %v1362 = vrot.slane %v1227, 1
    %v1363 = vsel %vm1286, %v1360, %v1362
    %v1364 = vrot.slane %v1228, 1
    %v1365 = vsel %vm1286, %v1362, %v1364
    %v1366 = vrot.slane %v1229, 1
    %v1367 = vsel %vm1286, %v1364, %v1366
    %v1368 = vrot.slane %v1230, 1
    %v1369 = vsel %vm1286, %v1366, %v1368
    %v1370 = vrot.slane %v1231, 1
    %v1371 = vsel %vm1286, %v1368, %v1370
    %v1372 = vrot.slane %v1232, 1
    %v1373 = vsel %vm1286, %v1370, %v1372
    %v1374 = vrot.slane %v1233, 1
    %v1375 = vsel %vm1286, %v1372, %v1374
    %v1376 = vrot.slane %v1234, 1
    %v1377 = vsel %vm1286, %v1374, %v1376
    %v1378 = vrot.slane %v1235, 1
    %v1379 = vsel %vm1286, %v1376, %v1378
    %v1380 = vrot.slane %v1236, 1
    %v1381 = vsel %vm1286, %v1378, %v1380
    %v1382 = vrot.slane 0.0, 1
    %v1383 = vsel %vm1286, %v1380, %v1382
    %v1432 = vmax.f32 %v1042, %v1289
    %v1433 = vmax.f32 %v1043, %v1291
    %v1434 = vmax.f32 %v1044, %v1293
    %v1435 = vmax.f32 %v1045, %v1295
    %v1436 = vmax.f32 %v1046, %v1297
    %v1437 = vmax.f32 %v1047, %v1299
    %v1438 = vmax.f32 %v1048, %v1301
    %v1439 = vmax.f32 %v1049, %v1303
    %v1440 = vmax.f32 %v1050, %v1305
    %v1441 = vmax.f32 %v1051, %v1307
    %v1442 = vmax.f32 %v1052, %v1309
    %v1443 = vmax.f32 %v1053, %v1311
    %v1444 = vmax.f32 %v1054, %v1313
    %v1445 = vmax.f32 %v1055, %v1315
    %v1446 = vmax.f32 %v1056, %v1317
    %v1447 = vmax.f32 %v1057, %v1319
    %v1448 = vmax.f32 %v1058, %v1321
    %v1449 = vmax.f32 %v1059, %v1323
    %v1450 = vmax.f32 %v1060, %v1325
    %v1451 = vmax.f32 %v1061, %v1327
    %v1452 = vmax.f32 %v1062, %v1329
    %v1453 = vmax.f32 %v1063, %v1331
    %v1454 = vmax.f32 %v1064, %v1333
    %v1455 = vmax.f32 %v1065, %v1335
    %v1456 = vmax.f32 %v1066, %v1337
    %v1457 = vmax.f32 %v1067, %v1339
    %v1458 = vmax.f32 %v1068, %v1341
    %v1459 = vmax.f32 %v1069, %v1343
    %v1460 = vmax.f32 %v1070, %v1345
    %v1461 = vmax.f32 %v1071, %v1347
    %v1462 = vmax.f32 %v1072, %v1349
    %v1463 = vmax.f32 %v1073, %v1351
    %v1464 = vmax.f32 %v1221, %v1353
    %v1465 = vmax.f32 %v1222, %v1355
    %v1466 = vmax.f32 %v1223, %v1357
    %v1467 = vmax.f32 %v1224, %v1359
    %v1468 = vmax.f32 %v1225, %v1361
    %v1469 = vmax.f32 %v1226, %v1363
    %v1470 = vmax.f32 %v1227, %v1365
    %v1471 = vmax.f32 %v1228, %v1367
    %v1472 = vmax.f32 %v1229, %v1369
    %v1473 = vmax.f32 %v1230, %v1371
    %v1474 = vmax.f32 %v1231, %v1373
    %v1475 = vmax.f32 %v1232, %v1375
    %v1476 = vmax.f32 %v1233, %v1377
    %v1477 = vmax.f32 %v1234, %v1379
    %v1478 = vmax.f32 %v1235, %v1381
    %v1479 = vmax.f32 %v1236, %v1383
    %v1480 = vlaneseq
    %v1481 = vand.u32 %v1480, 127
    %v1482 = vadd.s32 %v1481, 128
    %v1483 = vadd.s32 %v1481, 256
    %v1484 = vld [vmem:[%s6] sm:$0xff]
    %v1485 = vld [vmem:[%s6 + $0x8] sm:$0xff]
    %v1486 = vld [vmem:[%s6 + $0x10] sm:$0xff]
    %v1487 = vld [vmem:[%s6 + $0x18] sm:$0xff]
    %v1488 = vld [vmem:[%s6 + $0x20] sm:$0xff]
    %v1489 = vld [vmem:[%s6 + $0x28] sm:$0xff]
    %v1490 = vld [vmem:[%s6 + $0x30] sm:$0xff]
    %v1491 = vld [vmem:[%s6 + $0x38] sm:$0xff]
    %v1492 = vld [vmem:[%s6 + $0x40] sm:$0xff]
    %v1493 = vld [vmem:[%s6 + $0x48] sm:$0xff]
    %v1494 = vld [vmem:[%s6 + $0x50] sm:$0xff]
    %v1495 = vld [vmem:[%s6 + $0x58] sm:$0xff]
    %v1496 = vld [vmem:[%s6 + $0x60] sm:$0xff]
    %v1497 = vld [vmem:[%s6 + $0x68] sm:$0xff]
    %v1498 = vld [vmem:[%s6 + $0x70] sm:$0xff]
    %v1499 = vld [vmem:[%s6 + $0x78] sm:$0xff]
    %v1500 = vld [vmem:[%s6 + $0x80] sm:$0xff]
    %v1501 = vld [vmem:[%s6 + $0x88] sm:$0xff]
    %v1502 = vld [vmem:[%s6 + $0x90] sm:$0xff]
    %v1503 = vld [vmem:[%s6 + $0x98] sm:$0xff]
    %v1504 = vld [vmem:[%s6 + $0xa0] sm:$0xff]
    %v1505 = vld [vmem:[%s6 + $0xa8] sm:$0xff]
    %v1506 = vld [vmem:[%s6 + $0xb0] sm:$0xff]
    %v1507 = vld [vmem:[%s6 + $0xb8] sm:$0xff]
    %1508 = vset.pattern.permute.xlu0 0
    %1509 = vperm.xlu0 %1508, %v1484
    %v1510 = vpop.permute.xlu0 %1509
    %1511 = vset.pattern.permute.xlu0 0
    %1512 = vperm.xlu0 %1511, %v1485
    %v1513 = vpop.permute.xlu0 %1512
    %1514 = vset.pattern.permute.xlu0 0
    %1515 = vperm.xlu0 %1514, %v1486
    %v1516 = vpop.permute.xlu0 %1515
    %1517 = vset.pattern.permute.xlu0 0
    %1518 = vperm.xlu0 %1517, %v1487
    %v1519 = vpop.permute.xlu0 %1518
    %1520 = vset.pattern.permute.xlu0 0
    %1521 = vperm.xlu0 %1520, %v1488
    %v1522 = vpop.permute.xlu0 %1521
    %1523 = vset.pattern.permute.xlu0 0
    %1524 = vperm.xlu0 %1523, %v1489
    %v1525 = vpop.permute.xlu0 %1524
    %1526 = vset.pattern.permute.xlu0 0
    %1527 = vperm.xlu0 %1526, %v1490
    %v1528 = vpop.permute.xlu0 %1527
    %1529 = vset.pattern.permute.xlu0 0
    %1530 = vperm.xlu0 %1529, %v1491
    %v1531 = vpop.permute.xlu0 %1530
    %1532 = vset.pattern.permute.xlu0 0
    %1533 = vperm.xlu0 %1532, %v1492
    %v1534 = vpop.permute.xlu0 %1533
    %1535 = vset.pattern.permute.xlu0 0
    %1536 = vperm.xlu0 %1535, %v1493
    %v1537 = vpop.permute.xlu0 %1536
    %1538 = vset.pattern.permute.xlu0 0
    %1539 = vperm.xlu0 %1538, %v1494
    %v1540 = vpop.permute.xlu0 %1539
    %1541 = vset.pattern.permute.xlu0 0
    %1542 = vperm.xlu0 %1541, %v1495
    %v1543 = vpop.permute.xlu0 %1542
    %1544 = vset.pattern.permute.xlu0 0
    %1545 = vperm.xlu0 %1544, %v1496
    %v1546 = vpop.permute.xlu0 %1545
    %1547 = vset.pattern.permute.xlu0 0
    %1548 = vperm.xlu0 %1547, %v1497
    %v1549 = vpop.permute.xlu0 %1548
    %1550 = vset.pattern.permute.xlu0 0
    %1551 = vperm.xlu0 %1550, %v1498
    %v1552 = vpop.permute.xlu0 %1551
    %1553 = vset.pattern.permute.xlu0 0
    %1554 = vperm.xlu0 %1553, %v1499
    %v1555 = vpop.permute.xlu0 %1554
    %1556 = vset.pattern.permute.xlu0 0
    %1557 = vperm.xlu0 %1556, %v1500
    %v1558 = vpop.permute.xlu0 %1557
    %1559 = vset.pattern.permute.xlu0 0
    %1560 = vperm.xlu0 %1559, %v1501
    %v1561 = vpop.permute.xlu0 %1560
    %1562 = vset.pattern.permute.xlu0 0
    %1563 = vperm.xlu0 %1562, %v1502
    %v1564 = vpop.permute.xlu0 %1563
    %1565 = vset.pattern.permute.xlu0 0
    %1566 = vperm.xlu0 %1565, %v1503
    %v1567 = vpop.permute.xlu0 %1566
    %1568 = vset.pattern.permute.xlu0 0
    %1569 = vperm.xlu0 %1568, %v1504
    %v1570 = vpop.permute.xlu0 %1569
    %1571 = vset.pattern.permute.xlu0 0
    %1572 = vperm.xlu0 %1571, %v1505
    %v1573 = vpop.permute.xlu0 %1572
    %1574 = vset.pattern.permute.xlu0 0
    %1575 = vperm.xlu0 %1574, %v1506
    %v1576 = vpop.permute.xlu0 %1575
    %1577 = vset.pattern.permute.xlu0 0
    %1578 = vperm.xlu0 %1577, %v1507
    %v1579 = vpop.permute.xlu0 %1578
    %vm1580 = vcmp.eq.s32.totalorder %v1481, %v1510
    %vm1581 = vcmp.eq.s32.totalorder %v1482, %v1510
    %vm1582 = vcmp.eq.s32.totalorder %v1483, %v1510
    %vm1583 = vcmp.eq.s32.totalorder %v1481, %v1513
    %vm1584 = vcmp.eq.s32.totalorder %v1482, %v1513
    %vm1585 = vcmp.eq.s32.totalorder %v1483, %v1513
    %vm1586 = vcmp.eq.s32.totalorder %v1481, %v1516
    %vm1587 = vcmp.eq.s32.totalorder %v1482, %v1516
    %vm1588 = vcmp.eq.s32.totalorder %v1483, %v1516
    %vm1589 = vcmp.eq.s32.totalorder %v1481, %v1519
    %vm1590 = vcmp.eq.s32.totalorder %v1482, %v1519
    %vm1591 = vcmp.eq.s32.totalorder %v1483, %v1519
    %vm1592 = vcmp.eq.s32.totalorder %v1481, %v1522
    %vm1593 = vcmp.eq.s32.totalorder %v1482, %v1522
    %vm1594 = vcmp.eq.s32.totalorder %v1483, %v1522
    %vm1595 = vcmp.eq.s32.totalorder %v1481, %v1525
    %vm1596 = vcmp.eq.s32.totalorder %v1482, %v1525
    %vm1597 = vcmp.eq.s32.totalorder %v1483, %v1525
    %vm1598 = vcmp.eq.s32.totalorder %v1481, %v1528
    %vm1599 = vcmp.eq.s32.totalorder %v1482, %v1528
    %vm1600 = vcmp.eq.s32.totalorder %v1483, %v1528
    %vm1601 = vcmp.eq.s32.totalorder %v1481, %v1531
    %vm1602 = vcmp.eq.s32.totalorder %v1482, %v1531
    %vm1603 = vcmp.eq.s32.totalorder %v1483, %v1531
    %vm1604 = vcmp.eq.s32.totalorder %v1481, %v1534
    %vm1605 = vcmp.eq.s32.totalorder %v1482, %v1534
    %vm1606 = vcmp.eq.s32.totalorder %v1483, %v1534
    %vm1607 = vcmp.eq.s32.totalorder %v1481, %v1537
    %vm1608 = vcmp.eq.s32.totalorder %v1482, %v1537
    %vm1609 = vcmp.eq.s32.totalorder %v1483, %v1537
    %vm1610 = vcmp.eq.s32.totalorder %v1481, %v1540
    %vm1611 = vcmp.eq.s32.totalorder %v1482, %v1540
    %vm1612 = vcmp.eq.s32.totalorder %v1483, %v1540
    %vm1613 = vcmp.eq.s32.totalorder %v1481, %v1543
    %vm1614 = vcmp.eq.s32.totalorder %v1482, %v1543
    %vm1615 = vcmp.eq.s32.totalorder %v1483, %v1543
    %vm1616 = vcmp.eq.s32.totalorder %v1481, %v1546
    %vm1617 = vcmp.eq.s32.totalorder %v1482, %v1546
    %vm1618 = vcmp.eq.s32.totalorder %v1483, %v1546
    %vm1619 = vcmp.eq.s32.totalorder %v1481, %v1549
    %vm1620 = vcmp.eq.s32.totalorder %v1482, %v1549
    %vm1621 = vcmp.eq.s32.totalorder %v1483, %v1549
    %vm1622 = vcmp.eq.s32.totalorder %v1481, %v1552
    %vm1623 = vcmp.eq.s32.totalorder %v1482, %v1552
    %vm1624 = vcmp.eq.s32.totalorder %v1483, %v1552
    %vm1625 = vcmp.eq.s32.totalorder %v1481, %v1555
    %vm1626 = vcmp.eq.s32.totalorder %v1482, %v1555
    %vm1627 = vcmp.eq.s32.totalorder %v1483, %v1555
    %vm1628 = vcmp.eq.s32.totalorder %v1481, %v1558
    %vm1629 = vcmp.eq.s32.totalorder %v1482, %v1558
    %vm1630 = vcmp.eq.s32.totalorder %v1483, %v1558
    %vm1631 = vcmp.eq.s32.totalorder %v1481, %v1561
    %vm1632 = vcmp.eq.s32.totalorder %v1482, %v1561
    %vm1633 = vcmp.eq.s32.totalorder %v1483, %v1561
    %vm1634 = vcmp.eq.s32.totalorder %v1481, %v1564
    %vm1635 = vcmp.eq.s32.totalorder %v1482, %v1564
    %vm1636 = vcmp.eq.s32.totalorder %v1483, %v1564
    %vm1637 = vcmp.eq.s32.totalorder %v1481, %v1567
    %vm1638 = vcmp.eq.s32.totalorder %v1482, %v1567
    %vm1639 = vcmp.eq.s32.totalorder %v1483, %v1567
    %vm1640 = vcmp.eq.s32.totalorder %v1481, %v1570
    %vm1641 = vcmp.eq.s32.totalorder %v1482, %v1570
    %vm1642 = vcmp.eq.s32.totalorder %v1483, %v1570
    %vm1643 = vcmp.eq.s32.totalorder %v1481, %v1573
    %vm1644 = vcmp.eq.s32.totalorder %v1482, %v1573
    %vm1645 = vcmp.eq.s32.totalorder %v1483, %v1573
    %vm1646 = vcmp.eq.s32.totalorder %v1481, %v1576
    %vm1647 = vcmp.eq.s32.totalorder %v1482, %v1576
    %vm1648 = vcmp.eq.s32.totalorder %v1483, %v1576
    %vm1649 = vcmp.eq.s32.totalorder %v1481, %v1579
    %vm1650 = vcmp.eq.s32.totalorder %v1482, %v1579
    %vm1651 = vcmp.eq.s32.totalorder %v1483, %v1579
    %v1652 = vsel %vm1580, 1, 0
    %v1653 = vsel %vm1581, 1, 0
    %v1654 = vsel %vm1582, 1, 0
    %v1655 = vsel %vm1583, 1, 0
    %v1656 = vsel %vm1584, 1, 0
    %v1657 = vsel %vm1585, 1, 0
    %v1658 = vsel %vm1586, 1, 0
    %v1659 = vsel %vm1587, 1, 0
    %v1660 = vsel %vm1588, 1, 0
    %v1661 = vsel %vm1589, 1, 0
    %v1662 = vsel %vm1590, 1, 0
    %v1663 = vsel %vm1591, 1, 0
    %v1664 = vsel %vm1592, 1, 0
    %v1665 = vsel %vm1593, 1, 0
    %v1666 = vsel %vm1594, 1, 0
    %v1667 = vsel %vm1595, 1, 0
    %v1668 = vsel %vm1596, 1, 0
    %v1669 = vsel %vm1597, 1, 0
    %v1670 = vsel %vm1598, 1, 0
    %v1671 = vsel %vm1599, 1, 0
    %v1672 = vsel %vm1600, 1, 0
    %v1673 = vsel %vm1601, 1, 0
    %v1674 = vsel %vm1602, 1, 0
    %v1675 = vsel %vm1603, 1, 0
    %v1676 = vsel %vm1604, 1, 0
    %v1677 = vsel %vm1605, 1, 0
    %v1678 = vsel %vm1606, 1, 0
    %v1679 = vsel %vm1607, 1, 0
    %v1680 = vsel %vm1608, 1, 0
    %v1681 = vsel %vm1609, 1, 0
    %v1682 = vsel %vm1610, 1, 0
    %v1683 = vsel %vm1611, 1, 0
    %v1684 = vsel %vm1612, 1, 0
    %v1685 = vsel %vm1613, 1, 0
    %v1686 = vsel %vm1614, 1, 0
    %v1687 = vsel %vm1615, 1, 0
    %v1688 = vsel %vm1616, 1, 0
    %v1689 = vsel %vm1617, 1, 0
    %v1690 = vsel %vm1618, 1, 0
    %v1691 = vsel %vm1619, 1, 0
    %v1692 = vsel %vm1620, 1, 0
    %v1693 = vsel %vm1621, 1, 0
    %v1694 = vsel %vm1622, 1, 0
    %v1695 = vsel %vm1623, 1, 0
    %v1696 = vsel %vm1624, 1, 0
    %v1697 = vsel %vm1625, 1, 0
    %v1698 = vsel %vm1626, 1, 0
    %v1699 = vsel %vm1627, 1, 0
    %v1700 = vsel %vm1628, 1, 0
    %v1701 = vsel %vm1629, 1, 0
    %v1702 = vsel %vm1630, 1, 0
    %v1703 = vsel %vm1631, 1, 0
    %v1704 = vsel %vm1632, 1, 0
    %v1705 = vsel %vm1633, 1, 0
    %v1706 = vsel %vm1634, 1, 0
    %v1707 = vsel %vm1635, 1, 0
    %v1708 = vsel %vm1636, 1, 0
    %v1709 = vsel %vm1637, 1, 0
    %v1710 = vsel %vm1638, 1, 0
    %v1711 = vsel %vm1639, 1, 0
    %v1712 = vsel %vm1640, 1, 0
    %v1713 = vsel %vm1641, 1, 0
    %v1714 = vsel %vm1642, 1, 0
    %v1715 = vsel %vm1643, 1, 0
    %v1716 = vsel %vm1644, 1, 0
    %v1717 = vsel %vm1645, 1, 0
    %v1718 = vsel %vm1646, 1, 0
    %v1719 = vsel %vm1647, 1, 0
    %v1720 = vsel %vm1648, 1, 0
    %v1721 = vsel %vm1649, 1, 0
    %v1722 = vsel %vm1650, 1, 0
    %v1723 = vsel %vm1651, 1, 0
    %v1724 = vcvt.s32.f32 %v1652
    %v1725 = vcvt.s32.f32 %v1653
    %v1726 = vcvt.s32.f32 %v1654
    %v1727 = vcvt.s32.f32 %v1655
    %v1728 = vcvt.s32.f32 %v1656
    %v1729 = vcvt.s32.f32 %v1657
    %v1730 = vcvt.s32.f32 %v1658
    %v1731 = vcvt.s32.f32 %v1659
    %v1732 = vcvt.s32.f32 %v1660
    %v1733 = vcvt.s32.f32 %v1661
    %v1734 = vcvt.s32.f32 %v1662
    %v1735 = vcvt.s32.f32 %v1663
    %v1736 = vcvt.s32.f32 %v1664
    %v1737 = vcvt.s32.f32 %v1665
    %v1738 = vcvt.s32.f32 %v1666
    %v1739 = vcvt.s32.f32 %v1667
    %v1740 = vcvt.s32.f32 %v1668
    %v1741 = vcvt.s32.f32 %v1669
    %v1742 = vcvt.s32.f32 %v1670
    %v1743 = vcvt.s32.f32 %v1671
    %v1744 = vcvt.s32.f32 %v1672
    %v1745 = vcvt.s32.f32 %v1673
    %v1746 = vcvt.s32.f32 %v1674
    %v1747 = vcvt.s32.f32 %v1675
    %v1748 = vcvt.s32.f32 %v1676
    %v1749 = vcvt.s32.f32 %v1677
    %v1750 = vcvt.s32.f32 %v1678
    %v1751 = vcvt.s32.f32 %v1679
    %v1752 = vcvt.s32.f32 %v1680
    %v1753 = vcvt.s32.f32 %v1681
    %v1754 = vcvt.s32.f32 %v1682
    %v1755 = vcvt.s32.f32 %v1683
    %v1756 = vcvt.s32.f32 %v1684
    %v1757 = vcvt.s32.f32 %v1685
    %v1758 = vcvt.s32.f32 %v1686
    %v1759 = vcvt.s32.f32 %v1687
    %v1760 = vcvt.s32.f32 %v1688
    %v1761 = vcvt.s32.f32 %v1689
    %v1762 = vcvt.s32.f32 %v1690
    %v1763 = vcvt.s32.f32 %v1691
    %v1764 = vcvt.s32.f32 %v1692
    %v1765 = vcvt.s32.f32 %v1693
    %v1766 = vcvt.s32.f32 %v1694
    %v1767 = vcvt.s32.f32 %v1695
    %v1768 = vcvt.s32.f32 %v1696
    %v1769 = vcvt.s32.f32 %v1697
    %v1770 = vcvt.s32.f32 %v1698
    %v1771 = vcvt.s32.f32 %v1699
    %v1772 = vcvt.s32.f32 %v1700
    %v1773 = vcvt.s32.f32 %v1701
    %v1774 = vcvt.s32.f32 %v1702
    %v1775 = vcvt.s32.f32 %v1703
    %v1776 = vcvt.s32.f32 %v1704
    %v1777 = vcvt.s32.f32 %v1705
    %v1778 = vcvt.s32.f32 %v1706
    %v1779 = vcvt.s32.f32 %v1707
    %v1780 = vcvt.s32.f32 %v1708
    %v1781 = vcvt.s32.f32 %v1709
    %v1782 = vcvt.s32.f32 %v1710
    %v1783 = vcvt.s32.f32 %v1711
    %v1784 = vcvt.s32.f32 %v1712
    %v1785 = vcvt.s32.f32 %v1713
    %v1786 = vcvt.s32.f32 %v1714
    %v1787 = vcvt.s32.f32 %v1715
    %v1788 = vcvt.s32.f32 %v1716
    %v1789 = vcvt.s32.f32 %v1717
    %v1790 = vcvt.s32.f32 %v1718
    %v1791 = vcvt.s32.f32 %v1719
    %v1792 = vcvt.s32.f32 %v1720
    %v1793 = vcvt.s32.f32 %v1721
    %v1794 = vcvt.s32.f32 %v1722
    %v1795 = vcvt.s32.f32 %v1723
    %1796 = vmatpush.msra.mxu0 %v1447
    %1797 = vmatpush.msra.mxu0 %v1446
    %1798 = vmatpush.msra.mxu0 %v1445
    %1799 = vmatpush.msra.mxu0 %v1444
    %1800 = vmatpush.msra.mxu0 %v1443
    %1801 = vmatpush.msra.mxu0 %v1442
    %1802 = vmatpush.msra.mxu0 %v1441
    %1803 = vmatpush.msra.mxu0 %v1440
    %1804 = vmatpush.msra.mxu0 %v1439
    %1805 = vmatpush.msra.mxu0 %v1438
    %1806 = vmatpush.msra.mxu0 %v1437
    %1807 = vmatpush.msra.mxu0 %v1436
    %1808 = vmatpush.msra.mxu0 %v1435
    %1809 = vmatpush.msra.mxu0 %v1434
    %1810 = vmatpush.msra.mxu0 %v1433
    %1811 = vmatpush.msra.mxu0 %v1432
    %1812 = vmatmul.f32.gmra.mxu0 %v1724
    %v1813 = vpop.f32.mrf.mxu0
    %v1814 = vadd.f32 0.0, %v1813
    %1815 = vmatmul.f32.gmra.mxu0 %v1727
    %v1816 = vpop.f32.mrf.mxu0
    %v1817 = vadd.f32 0.0, %v1816
    %1818 = vmatmul.f32.gmra.mxu0 %v1730
    %v1819 = vpop.f32.mrf.mxu0
    %v1820 = vadd.f32 0.0, %v1819
    %1821 = vmatmul.f32.gmra.mxu0 %v1733
    %v1822 = vpop.f32.mrf.mxu0
    %v1823 = vadd.f32 0.0, %v1822
    %1824 = vmatmul.f32.gmra.mxu0 %v1736
    %v1825 = vpop.f32.mrf.mxu0
    %v1826 = vadd.f32 0.0, %v1825
    %1827 = vmatmul.f32.gmra.mxu0 %v1739
    %v1828 = vpop.f32.mrf.mxu0
    %v1829 = vadd.f32 0.0, %v1828
    %1830 = vmatmul.f32.gmra.mxu0 %v1742
    %v1831 = vpop.f32.mrf.mxu0
    %v1832 = vadd.f32 0.0, %v1831
    %1833 = vmatmul.f32.gmra.mxu0 %v1745
    %v1834 = vpop.f32.mrf.mxu0
    %v1835 = vadd.f32 0.0, %v1834
    %1836 = vmatmul.f32.gmra.mxu0 %v1748
    %v1837 = vpop.f32.mrf.mxu0
    %v1838 = vadd.f32 0.0, %v1837
    %1839 = vmatmul.f32.gmra.mxu0 %v1751
    %v1840 = vpop.f32.mrf.mxu0
    %v1841 = vadd.f32 0.0, %v1840
    %1842 = vmatmul.f32.gmra.mxu0 %v1754
    %v1843 = vpop.f32.mrf.mxu0
    %v1844 = vadd.f32 0.0, %v1843
    %1845 = vmatmul.f32.gmra.mxu0 %v1757
    %v1846 = vpop.f32.mrf.mxu0
    %v1847 = vadd.f32 0.0, %v1846
    %1848 = vmatmul.f32.gmra.mxu0 %v1760
    %v1849 = vpop.f32.mrf.mxu0
    %v1850 = vadd.f32 0.0, %v1849
    %1851 = vmatmul.f32.gmra.mxu0 %v1763
    %v1852 = vpop.f32.mrf.mxu0
    %v1853 = vadd.f32 0.0, %v1852
    %1854 = vmatmul.f32.gmra.mxu0 %v1766
    %v1855 = vpop.f32.mrf.mxu0
    %v1856 = vadd.f32 0.0, %v1855
    %1857 = vmatmul.f32.gmra.mxu0 %v1769
    %v1858 = vpop.f32.mrf.mxu0
    %v1859 = vadd.f32 0.0, %v1858
    %1860 = vmatmul.f32.gmra.mxu0 %v1772
    %v1861 = vpop.f32.mrf.mxu0
    %v1862 = vadd.f32 0.0, %v1861
    %1863 = vmatmul.f32.gmra.mxu0 %v1775
    %v1864 = vpop.f32.mrf.mxu0
    %v1865 = vadd.f32 0.0, %v1864
    %1866 = vmatmul.f32.gmra.mxu0 %v1778
    %v1867 = vpop.f32.mrf.mxu0
    %v1868 = vadd.f32 0.0, %v1867
    %1869 = vmatmul.f32.gmra.mxu0 %v1781
    %v1870 = vpop.f32.mrf.mxu0
    %v1871 = vadd.f32 0.0, %v1870
    %1872 = vmatmul.f32.gmra.mxu0 %v1784
    %v1873 = vpop.f32.mrf.mxu0
    %v1874 = vadd.f32 0.0, %v1873
    %1875 = vmatmul.f32.gmra.mxu0 %v1787
    %v1876 = vpop.f32.mrf.mxu0
    %v1877 = vadd.f32 0.0, %v1876
    %1878 = vmatmul.f32.gmra.mxu0 %v1790
    %v1879 = vpop.f32.mrf.mxu0
    %v1880 = vadd.f32 0.0, %v1879
    %1881 = vmatmul.f32.gmra.mxu0 %v1793
    %v1882 = vpop.f32.mrf.mxu0
    %v1883 = vadd.f32 0.0, %v1882
    %1884 = vdwg.mxu0
    %1885 = vmatpush.msra.mxu0 %v1463
    %1886 = vmatpush.msra.mxu0 %v1462
    %1887 = vmatpush.msra.mxu0 %v1461
    %1888 = vmatpush.msra.mxu0 %v1460
    %1889 = vmatpush.msra.mxu0 %v1459
    %1890 = vmatpush.msra.mxu0 %v1458
    %1891 = vmatpush.msra.mxu0 %v1457
    %1892 = vmatpush.msra.mxu0 %v1456
    %1893 = vmatpush.msra.mxu0 %v1455
    %1894 = vmatpush.msra.mxu0 %v1454
    %1895 = vmatpush.msra.mxu0 %v1453
    %1896 = vmatpush.msra.mxu0 %v1452
    %1897 = vmatpush.msra.mxu0 %v1451
    %1898 = vmatpush.msra.mxu0 %v1450
    %1899 = vmatpush.msra.mxu0 %v1449
    %1900 = vmatpush.msra.mxu0 %v1448
    %1901 = vmatmul.f32.gmra.mxu0 %v1725
    %v1902 = vpop.f32.mrf.mxu0
    %v1903 = vadd.f32 %v1814, %v1902
    %1904 = vmatmul.f32.gmra.mxu0 %v1728
    %v1905 = vpop.f32.mrf.mxu0
    %v1906 = vadd.f32 %v1817, %v1905
    %1907 = vmatmul.f32.gmra.mxu0 %v1731
    %v1908 = vpop.f32.mrf.mxu0
    %v1909 = vadd.f32 %v1820, %v1908
    %1910 = vmatmul.f32.gmra.mxu0 %v1734
    %v1911 = vpop.f32.mrf.mxu0
    %v1912 = vadd.f32 %v1823, %v1911
    %1913 = vmatmul.f32.gmra.mxu0 %v1737
    %v1914 = vpop.f32.mrf.mxu0
    %v1915 = vadd.f32 %v1826, %v1914
    %1916 = vmatmul.f32.gmra.mxu0 %v1740
    %v1917 = vpop.f32.mrf.mxu0
    %v1918 = vadd.f32 %v1829, %v1917
    %1919 = vmatmul.f32.gmra.mxu0 %v1743
    %v1920 = vpop.f32.mrf.mxu0
    %v1921 = vadd.f32 %v1832, %v1920
    %1922 = vmatmul.f32.gmra.mxu0 %v1746
    %v1923 = vpop.f32.mrf.mxu0
    %v1924 = vadd.f32 %v1835, %v1923
    %1925 = vmatmul.f32.gmra.mxu0 %v1749
    %v1926 = vpop.f32.mrf.mxu0
    %v1927 = vadd.f32 %v1838, %v1926
    %1928 = vmatmul.f32.gmra.mxu0 %v1752
    %v1929 = vpop.f32.mrf.mxu0
    %v1930 = vadd.f32 %v1841, %v1929
    %1931 = vmatmul.f32.gmra.mxu0 %v1755
    %v1932 = vpop.f32.mrf.mxu0
    %v1933 = vadd.f32 %v1844, %v1932
    %1934 = vmatmul.f32.gmra.mxu0 %v1758
    %v1935 = vpop.f32.mrf.mxu0
    %v1936 = vadd.f32 %v1847, %v1935
    %1937 = vmatmul.f32.gmra.mxu0 %v1761
    %v1938 = vpop.f32.mrf.mxu0
    %v1939 = vadd.f32 %v1850, %v1938
    %1940 = vmatmul.f32.gmra.mxu0 %v1764
    %v1941 = vpop.f32.mrf.mxu0
    %v1942 = vadd.f32 %v1853, %v1941
    %1943 = vmatmul.f32.gmra.mxu0 %v1767
    %v1944 = vpop.f32.mrf.mxu0
    %v1945 = vadd.f32 %v1856, %v1944
    %1946 = vmatmul.f32.gmra.mxu0 %v1770
    %v1947 = vpop.f32.mrf.mxu0
    %v1948 = vadd.f32 %v1859, %v1947
    %1949 = vmatmul.f32.gmra.mxu0 %v1773
    %v1950 = vpop.f32.mrf.mxu0
    %v1951 = vadd.f32 %v1862, %v1950
    %1952 = vmatmul.f32.gmra.mxu0 %v1776
    %v1953 = vpop.f32.mrf.mxu0
    %v1954 = vadd.f32 %v1865, %v1953
    %1955 = vmatmul.f32.gmra.mxu0 %v1779
    %v1956 = vpop.f32.mrf.mxu0
    %v1957 = vadd.f32 %v1868, %v1956
    %1958 = vmatmul.f32.gmra.mxu0 %v1782
    %v1959 = vpop.f32.mrf.mxu0
    %v1960 = vadd.f32 %v1871, %v1959
    %1961 = vmatmul.f32.gmra.mxu0 %v1785
    %v1962 = vpop.f32.mrf.mxu0
    %v1963 = vadd.f32 %v1874, %v1962
    %1964 = vmatmul.f32.gmra.mxu0 %v1788
    %v1965 = vpop.f32.mrf.mxu0
    %v1966 = vadd.f32 %v1877, %v1965
    %1967 = vmatmul.f32.gmra.mxu0 %v1791
    %v1968 = vpop.f32.mrf.mxu0
    %v1969 = vadd.f32 %v1880, %v1968
    %1970 = vmatmul.f32.gmra.mxu0 %v1794
    %v1971 = vpop.f32.mrf.mxu0
    %v1972 = vadd.f32 %v1883, %v1971
    %1973 = vdwg.mxu0
    %1974 = vmatpush.msra.mxu0 %v1479
    %1975 = vmatpush.msra.mxu0 %v1478
    %1976 = vmatpush.msra.mxu0 %v1477
    %1977 = vmatpush.msra.mxu0 %v1476
    %1978 = vmatpush.msra.mxu0 %v1475
    %1979 = vmatpush.msra.mxu0 %v1474
    %1980 = vmatpush.msra.mxu0 %v1473
    %1981 = vmatpush.msra.mxu0 %v1472
    %1982 = vmatpush.msra.mxu0 %v1471
    %1983 = vmatpush.msra.mxu0 %v1470
    %1984 = vmatpush.msra.mxu0 %v1469
    %1985 = vmatpush.msra.mxu0 %v1468
    %1986 = vmatpush.msra.mxu0 %v1467
    %1987 = vmatpush.msra.mxu0 %v1466
    %1988 = vmatpush.msra.mxu0 %v1465
    %1989 = vmatpush.msra.mxu0 %v1464
    %1990 = vmatmul.f32.gmra.mxu0 %v1726
    %v1991 = vpop.f32.mrf.mxu0
    %v1992 = vadd.f32 %v1903, %v1991
    %1993 = vmatmul.f32.gmra.mxu0 %v1729
    %v1994 = vpop.f32.mrf.mxu0
    %v1995 = vadd.f32 %v1906, %v1994
    %1996 = vmatmul.f32.gmra.mxu0 %v1732
    %v1997 = vpop.f32.mrf.mxu0
    %v1998 = vadd.f32 %v1909, %v1997
    %1999 = vmatmul.f32.gmra.mxu0 %v1735
    %v2000 = vpop.f32.mrf.mxu0
    %v2001 = vadd.f32 %v1912, %v2000
    %2002 = vmatmul.f32.gmra.mxu0 %v1738
    %v2003 = vpop.f32.mrf.mxu0
    %v2004 = vadd.f32 %v1915, %v2003
    %2005 = vmatmul.f32.gmra.mxu0 %v1741
    %v2006 = vpop.f32.mrf.mxu0
    %v2007 = vadd.f32 %v1918, %v2006
    %2008 = vmatmul.f32.gmra.mxu0 %v1744
    %v2009 = vpop.f32.mrf.mxu0
    %v2010 = vadd.f32 %v1921, %v2009
    %2011 = vmatmul.f32.gmra.mxu0 %v1747
    %v2012 = vpop.f32.mrf.mxu0
    %v2013 = vadd.f32 %v1924, %v2012
    %2014 = vmatmul.f32.gmra.mxu0 %v1750
    %v2015 = vpop.f32.mrf.mxu0
    %v2016 = vadd.f32 %v1927, %v2015
    %2017 = vmatmul.f32.gmra.mxu0 %v1753
    %v2018 = vpop.f32.mrf.mxu0
    %v2019 = vadd.f32 %v1930, %v2018
    %2020 = vmatmul.f32.gmra.mxu0 %v1756
    %v2021 = vpop.f32.mrf.mxu0
    %v2022 = vadd.f32 %v1933, %v2021
    %2023 = vmatmul.f32.gmra.mxu0 %v1759
    %v2024 = vpop.f32.mrf.mxu0
    %v2025 = vadd.f32 %v1936, %v2024
    %2026 = vmatmul.f32.gmra.mxu0 %v1762
    %v2027 = vpop.f32.mrf.mxu0
    %v2028 = vadd.f32 %v1939, %v2027
    %2029 = vmatmul.f32.gmra.mxu0 %v1765
    %v2030 = vpop.f32.mrf.mxu0
    %v2031 = vadd.f32 %v1942, %v2030
    %2032 = vmatmul.f32.gmra.mxu0 %v1768
    %v2033 = vpop.f32.mrf.mxu0
    %v2034 = vadd.f32 %v1945, %v2033
    %2035 = vmatmul.f32.gmra.mxu0 %v1771
    %v2036 = vpop.f32.mrf.mxu0
    %v2037 = vadd.f32 %v1948, %v2036
    %2038 = vmatmul.f32.gmra.mxu0 %v1774
    %v2039 = vpop.f32.mrf.mxu0
    %v2040 = vadd.f32 %v1951, %v2039
    %2041 = vmatmul.f32.gmra.mxu0 %v1777
    %v2042 = vpop.f32.mrf.mxu0
    %v2043 = vadd.f32 %v1954, %v2042
    %2044 = vmatmul.f32.gmra.mxu0 %v1780
    %v2045 = vpop.f32.mrf.mxu0
    %v2046 = vadd.f32 %v1957, %v2045
    %2047 = vmatmul.f32.gmra.mxu0 %v1783
    %v2048 = vpop.f32.mrf.mxu0
    %v2049 = vadd.f32 %v1960, %v2048
    %2050 = vmatmul.f32.gmra.mxu0 %v1786
    %v2051 = vpop.f32.mrf.mxu0
    %v2052 = vadd.f32 %v1963, %v2051
    %2053 = vmatmul.f32.gmra.mxu0 %v1789
    %v2054 = vpop.f32.mrf.mxu0
    %v2055 = vadd.f32 %v1966, %v2054
    %2056 = vmatmul.f32.gmra.mxu0 %v1792
    %v2057 = vpop.f32.mrf.mxu0
    %v2058 = vadd.f32 %v1969, %v2057
    %2059 = vmatmul.f32.gmra.mxu0 %v1795
    %v2060 = vpop.f32.mrf.mxu0
    %v2061 = vadd.f32 %v1972, %v2060
    %2062 = vdwg.mxu0
    %v2087 = vrot.slane %v1992, 1
    %v2088 = vrot.slane %v1995, 1
    %v2089 = vsel %vm1286, %v2087, %v2088
    %v2090 = vrot.slane %v1998, 1
    %v2091 = vsel %vm1286, %v2088, %v2090
    %v2092 = vrot.slane %v2001, 1
    %v2093 = vsel %vm1286, %v2090, %v2092
    %v2094 = vrot.slane %v2004, 1
    %v2095 = vsel %vm1286, %v2092, %v2094
    %v2096 = vrot.slane %v2007, 1
    %v2097 = vsel %vm1286, %v2094, %v2096
    %v2098 = vrot.slane %v2010, 1
    %v2099 = vsel %vm1286, %v2096, %v2098
    %v2100 = vrot.slane %v2013, 1
    %v2101 = vsel %vm1286, %v2098, %v2100
    %v2102 = vrot.slane %v2016, 1
    %v2103 = vsel %vm1286, %v2100, %v2102
    %v2104 = vrot.slane %v2019, 1
    %v2105 = vsel %vm1286, %v2102, %v2104
    %v2106 = vrot.slane %v2022, 1
    %v2107 = vsel %vm1286, %v2104, %v2106
    %v2108 = vrot.slane %v2025, 1
    %v2109 = vsel %vm1286, %v2106, %v2108
    %v2110 = vrot.slane %v2028, 1
    %v2111 = vsel %vm1286, %v2108, %v2110
    %v2112 = vrot.slane %v2031, 1
    %v2113 = vsel %vm1286, %v2110, %v2112
    %v2114 = vrot.slane %v2034, 1
    %v2115 = vsel %vm1286, %v2112, %v2114
    %v2116 = vrot.slane %v2037, 1
    %v2117 = vsel %vm1286, %v2114, %v2116
    %v2118 = vrot.slane %v2040, 1
    %v2119 = vsel %vm1286, %v2116, %v2118
    %v2120 = vrot.slane %v2043, 1
    %v2121 = vsel %vm1286, %v2118, %v2120
    %v2122 = vrot.slane %v2046, 1
    %v2123 = vsel %vm1286, %v2120, %v2122
    %v2124 = vrot.slane %v2049, 1
    %v2125 = vsel %vm1286, %v2122, %v2124
    %v2126 = vrot.slane %v2052, 1
    %v2127 = vsel %vm1286, %v2124, %v2126
    %v2128 = vrot.slane %v2055, 1
    %v2129 = vsel %vm1286, %v2126, %v2128
    %v2130 = vrot.slane %v2058, 1
    %v2131 = vsel %vm1286, %v2128, %v2130
    %v2132 = vrot.slane %v2061, 1
    %v2133 = vsel %vm1286, %v2130, %v2132
    %v2134 = vsel %vm1286, %v2132, %v1382
    %2135 = vrot.lane.b32.xlu0 %v2089, 64
    %v2136 = vpop.permute.xlu0 %2135
    %2137 = vrot.lane.b32.xlu0 %v2091, 64
    %v2138 = vpop.permute.xlu0 %2137
    %2139 = vrot.lane.b32.xlu0 %v2093, 64
    %v2140 = vpop.permute.xlu0 %2139
    %2141 = vrot.lane.b32.xlu0 %v2095, 64
    %v2142 = vpop.permute.xlu0 %2141
    %2143 = vrot.lane.b32.xlu0 %v2097, 64
    %v2144 = vpop.permute.xlu0 %2143
    %2145 = vrot.lane.b32.xlu0 %v2099, 64
    %v2146 = vpop.permute.xlu0 %2145
    %2147 = vrot.lane.b32.xlu0 %v2101, 64
    %v2148 = vpop.permute.xlu0 %2147
    %2149 = vrot.lane.b32.xlu0 %v2103, 64
    %v2150 = vpop.permute.xlu0 %2149
    %2151 = vrot.lane.b32.xlu0 %v2105, 64
    %v2152 = vpop.permute.xlu0 %2151
    %2153 = vrot.lane.b32.xlu0 %v2107, 64
    %v2154 = vpop.permute.xlu0 %2153
    %2155 = vrot.lane.b32.xlu0 %v2109, 64
    %v2156 = vpop.permute.xlu0 %2155
    %2157 = vrot.lane.b32.xlu0 %v2111, 64
    %v2158 = vpop.permute.xlu0 %2157
    %2159 = vrot.lane.b32.xlu0 %v2113, 64
    %v2160 = vpop.permute.xlu0 %2159
    %2161 = vrot.lane.b32.xlu0 %v2115, 64
    %v2162 = vpop.permute.xlu0 %2161
    %2163 = vrot.lane.b32.xlu0 %v2117, 64
    %v2164 = vpop.permute.xlu0 %2163
    %2165 = vrot.lane.b32.xlu0 %v2119, 64
    %v2166 = vpop.permute.xlu0 %2165
    %2167 = vrot.lane.b32.xlu0 %v2121, 64
    %v2168 = vpop.permute.xlu0 %2167
    %2169 = vrot.lane.b32.xlu0 %v2123, 64
    %v2170 = vpop.permute.xlu0 %2169
    %2171 = vrot.lane.b32.xlu0 %v2125, 64
    %v2172 = vpop.permute.xlu0 %2171
    %2173 = vrot.lane.b32.xlu0 %v2127, 64
    %v2174 = vpop.permute.xlu0 %2173
    %2175 = vrot.lane.b32.xlu0 %v2129, 64
    %v2176 = vpop.permute.xlu0 %2175
    %2177 = vrot.lane.b32.xlu0 %v2131, 64
    %v2178 = vpop.permute.xlu0 %2177
    %2179 = vrot.lane.b32.xlu0 %v2133, 64
    %v2180 = vpop.permute.xlu0 %2179
    %2181 = vrot.lane.b32.xlu0 %v2134, 64
    %v2182 = vpop.permute.xlu0 %2181
    %vm2207 = vcmask 1045504
    %v2208 = vrot.slane %v1992, 2
    %v2209 = vrot.slane %v1995, 2
    %v2210 = vsel %vm2207, %v2208, %v2209
    %v2211 = vrot.slane %v1998, 2
    %v2212 = vsel %vm2207, %v2209, %v2211
    %v2213 = vrot.slane %v2001, 2
    %v2214 = vsel %vm2207, %v2211, %v2213
    %v2215 = vrot.slane %v2004, 2
    %v2216 = vsel %vm2207, %v2213, %v2215
    %v2217 = vrot.slane %v2007, 2
    %v2218 = vsel %vm2207, %v2215, %v2217
    %v2219 = vrot.slane %v2010, 2
    %v2220 = vsel %vm2207, %v2217, %v2219
    %v2221 = vrot.slane %v2013, 2
    %v2222 = vsel %vm2207, %v2219, %v2221
    %v2223 = vrot.slane %v2016, 2
    %v2224 = vsel %vm2207, %v2221, %v2223
    %v2225 = vrot.slane %v2019, 2
    %v2226 = vsel %vm2207, %v2223, %v2225
    %v2227 = vrot.slane %v2022, 2
    %v2228 = vsel %vm2207, %v2225, %v2227
    %v2229 = vrot.slane %v2025, 2
    %v2230 = vsel %vm2207, %v2227, %v2229
    %v2231 = vrot.slane %v2028, 2
    %v2232 = vsel %vm2207, %v2229, %v2231
    %v2233 = vrot.slane %v2031, 2
    %v2234 = vsel %vm2207, %v2231, %v2233
    %v2235 = vrot.slane %v2034, 2
    %v2236 = vsel %vm2207, %v2233, %v2235
    %v2237 = vrot.slane %v2037, 2
    %v2238 = vsel %vm2207, %v2235, %v2237
    %v2239 = vrot.slane %v2040, 2
    %v2240 = vsel %vm2207, %v2237, %v2239
    %v2241 = vrot.slane %v2043, 2
    %v2242 = vsel %vm2207, %v2239, %v2241
    %v2243 = vrot.slane %v2046, 2
    %v2244 = vsel %vm2207, %v2241, %v2243
    %v2245 = vrot.slane %v2049, 2
    %v2246 = vsel %vm2207, %v2243, %v2245
    %v2247 = vrot.slane %v2052, 2
    %v2248 = vsel %vm2207, %v2245, %v2247
    %v2249 = vrot.slane %v2055, 2
    %v2250 = vsel %vm2207, %v2247, %v2249
    %v2251 = vrot.slane %v2058, 2
    %v2252 = vsel %vm2207, %v2249, %v2251
    %v2253 = vrot.slane %v2061, 2
    %v2254 = vsel %vm2207, %v2251, %v2253
    %v2255 = vrot.slane 0.0, 2
    %v2256 = vsel %vm2207, %v2253, %v2255
    %vm2281 = vcmask 1044480
    %v2282 = vrot.slane %v1992, 3
    %v2283 = vrot.slane %v1995, 3
    %v2284 = vsel %vm2281, %v2282, %v2283
    %v2285 = vrot.slane %v1998, 3
    %v2286 = vsel %vm2281, %v2283, %v2285
    %v2287 = vrot.slane %v2001, 3
    %v2288 = vsel %vm2281, %v2285, %v2287
    %v2289 = vrot.slane %v2004, 3
    %v2290 = vsel %vm2281, %v2287, %v2289
    %v2291 = vrot.slane %v2007, 3
    %v2292 = vsel %vm2281, %v2289, %v2291
    %v2293 = vrot.slane %v2010, 3
    %v2294 = vsel %vm2281, %v2291, %v2293
    %v2295 = vrot.slane %v2013, 3
    %v2296 = vsel %vm2281, %v2293, %v2295
    %v2297 = vrot.slane %v2016, 3
    %v2298 = vsel %vm2281, %v2295, %v2297
    %v2299 = vrot.slane %v2019, 3
    %v2300 = vsel %vm2281, %v2297, %v2299
    %v2301 = vrot.slane %v2022, 3
    %v2302 = vsel %vm2281, %v2299, %v2301
    %v2303 = vrot.slane %v2025, 3
    %v2304 = vsel %vm2281, %v2301, %v2303
    %v2305 = vrot.slane %v2028, 3
    %v2306 = vsel %vm2281, %v2303, %v2305
    %v2307 = vrot.slane %v2031, 3
    %v2308 = vsel %vm2281, %v2305, %v2307
    %v2309 = vrot.slane %v2034, 3
    %v2310 = vsel %vm2281, %v2307, %v2309
    %v2311 = vrot.slane %v2037, 3
    %v2312 = vsel %vm2281, %v2309, %v2311
    %v2313 = vrot.slane %v2040, 3
    %v2314 = vsel %vm2281, %v2311, %v2313
    %v2315 = vrot.slane %v2043, 3
    %v2316 = vsel %vm2281, %v2313, %v2315
    %v2317 = vrot.slane %v2046, 3
    %v2318 = vsel %vm2281, %v2315, %v2317
    %v2319 = vrot.slane %v2049, 3
    %v2320 = vsel %vm2281, %v2317, %v2319
    %v2321 = vrot.slane %v2052, 3
    %v2322 = vsel %vm2281, %v2319, %v2321
    %v2323 = vrot.slane %v2055, 3
    %v2324 = vsel %vm2281, %v2321, %v2323
    %v2325 = vrot.slane %v2058, 3
    %v2326 = vsel %vm2281, %v2323, %v2325
    %v2327 = vrot.slane %v2061, 3
    %v2328 = vsel %vm2281, %v2325, %v2327
    %v2329 = vrot.slane 0.0, 3
    %v2330 = vsel %vm2281, %v2327, %v2329
    %2331 = vrot.lane.b32.xlu0 %v2284, 64
    %v2332 = vpop.permute.xlu0 %2331
    %2333 = vrot.lane.b32.xlu0 %v2286, 64
    %v2334 = vpop.permute.xlu0 %2333
    %2335 = vrot.lane.b32.xlu0 %v2288, 64
    %v2336 = vpop.permute.xlu0 %2335
    %2337 = vrot.lane.b32.xlu0 %v2290, 64
    %v2338 = vpop.permute.xlu0 %2337
    %2339 = vrot.lane.b32.xlu0 %v2292, 64
    %v2340 = vpop.permute.xlu0 %2339
    %2341 = vrot.lane.b32.xlu0 %v2294, 64
    %v2342 = vpop.permute.xlu0 %2341
    %2343 = vrot.lane.b32.xlu0 %v2296, 64
    %v2344 = vpop.permute.xlu0 %2343
    %2345 = vrot.lane.b32.xlu0 %v2298, 64
    %v2346 = vpop.permute.xlu0 %2345
    %2347 = vrot.lane.b32.xlu0 %v2300, 64
    %v2348 = vpop.permute.xlu0 %2347
    %2349 = vrot.lane.b32.xlu0 %v2302, 64
    %v2350 = vpop.permute.xlu0 %2349
    %2351 = vrot.lane.b32.xlu0 %v2304, 64
    %v2352 = vpop.permute.xlu0 %2351
    %2353 = vrot.lane.b32.xlu0 %v2306, 64
    %v2354 = vpop.permute.xlu0 %2353
    %2355 = vrot.lane.b32.xlu0 %v2308, 64
    %v2356 = vpop.permute.xlu0 %2355
    %2357 = vrot.lane.b32.xlu0 %v2310, 64
    %v2358 = vpop.permute.xlu0 %2357
    %2359 = vrot.lane.b32.xlu0 %v2312, 64
    %v2360 = vpop.permute.xlu0 %2359
    %2361 = vrot.lane.b32.xlu0 %v2314, 64
    %v2362 = vpop.permute.xlu0 %2361
    %2363 = vrot.lane.b32.xlu0 %v2316, 64
    %v2364 = vpop.permute.xlu0 %2363
    %2365 = vrot.lane.b32.xlu0 %v2318, 64
    %v2366 = vpop.permute.xlu0 %2365
    %2367 = vrot.lane.b32.xlu0 %v2320, 64
    %v2368 = vpop.permute.xlu0 %2367
    %2369 = vrot.lane.b32.xlu0 %v2322, 64
    %v2370 = vpop.permute.xlu0 %2369
    %2371 = vrot.lane.b32.xlu0 %v2324, 64
    %v2372 = vpop.permute.xlu0 %2371
    %2373 = vrot.lane.b32.xlu0 %v2326, 64
    %v2374 = vpop.permute.xlu0 %2373
    %2375 = vrot.lane.b32.xlu0 %v2328, 64
    %v2376 = vpop.permute.xlu0 %2375
    %2377 = vrot.lane.b32.xlu0 %v2330, 64
    %v2378 = vpop.permute.xlu0 %2377
    %v2403 = vsel %vm780, %v1992, %v2136
    %v2404 = vsel %vm780, %v1995, %v2138
    %v2405 = vsel %vm780, %v1998, %v2140
    %v2406 = vsel %vm780, %v2001, %v2142
    %v2407 = vsel %vm780, %v2004, %v2144
    %v2408 = vsel %vm780, %v2007, %v2146
    %v2409 = vsel %vm780, %v2010, %v2148
    %v2410 = vsel %vm780, %v2013, %v2150
    %v2411 = vsel %vm780, %v2016, %v2152
    %v2412 = vsel %vm780, %v2019, %v2154
    %v2413 = vsel %vm780, %v2022, %v2156
    %v2414 = vsel %vm780, %v2025, %v2158
    %v2415 = vsel %vm780, %v2028, %v2160
    %v2416 = vsel %vm780, %v2031, %v2162
    %v2417 = vsel %vm780, %v2034, %v2164
    %v2418 = vsel %vm780, %v2037, %v2166
    %v2419 = vsel %vm780, %v2040, %v2168
    %v2420 = vsel %vm780, %v2043, %v2170
    %v2421 = vsel %vm780, %v2046, %v2172
    %v2422 = vsel %vm780, %v2049, %v2174
    %v2423 = vsel %vm780, %v2052, %v2176
    %v2424 = vsel %vm780, %v2055, %v2178
    %v2425 = vsel %vm780, %v2058, %v2180
    %v2426 = vsel %vm780, %v2061, %v2182
    %v2427 = vsel %vm780, %v2210, %v2332
    %v2428 = vsel %vm780, %v2212, %v2334
    %v2429 = vsel %vm780, %v2214, %v2336
    %v2430 = vsel %vm780, %v2216, %v2338
    %v2431 = vsel %vm780, %v2218, %v2340
    %v2432 = vsel %vm780, %v2220, %v2342
    %v2433 = vsel %vm780, %v2222, %v2344
    %v2434 = vsel %vm780, %v2224, %v2346
    %v2435 = vsel %vm780, %v2226, %v2348
    %v2436 = vsel %vm780, %v2228, %v2350
    %v2437 = vsel %vm780, %v2230, %v2352
    %v2438 = vsel %vm780, %v2232, %v2354
    %v2439 = vsel %vm780, %v2234, %v2356
    %v2440 = vsel %vm780, %v2236, %v2358
    %v2441 = vsel %vm780, %v2238, %v2360
    %v2442 = vsel %vm780, %v2240, %v2362
    %v2443 = vsel %vm780, %v2242, %v2364
    %v2444 = vsel %vm780, %v2244, %v2366
    %v2445 = vsel %vm780, %v2246, %v2368
    %v2446 = vsel %vm780, %v2248, %v2370
    %v2447 = vsel %vm780, %v2250, %v2372
    %v2448 = vsel %vm780, %v2252, %v2374
    %v2449 = vsel %vm780, %v2254, %v2376
    %v2450 = vsel %vm780, %v2256, %v2378
    %v2451 = vld [vmem:[%s7] sm:$0xff]
    %v2452 = vld [vmem:[%s7 + $0x8] sm:$0xff]
    %v2453 = vld [vmem:[%s7 + $0x10] sm:$0xff]
    %v2454 = vld [vmem:[%s7 + $0x18] sm:$0xff]
    %v2455 = vld [vmem:[%s7 + $0x20] sm:$0xff]
    %v2456 = vld [vmem:[%s7 + $0x28] sm:$0xff]
    %v2457 = vld [vmem:[%s7 + $0x30] sm:$0xff]
    %v2458 = vld [vmem:[%s7 + $0x38] sm:$0xff]
    %v2459 = vld [vmem:[%s7 + $0x40] sm:$0xff]
    %v2460 = vld [vmem:[%s7 + $0x48] sm:$0xff]
    %v2461 = vld [vmem:[%s7 + $0x50] sm:$0xff]
    %v2462 = vld [vmem:[%s7 + $0x58] sm:$0xff]
    %v2463 = vld [vmem:[%s7 + $0x60] sm:$0xff]
    %v2464 = vld [vmem:[%s7 + $0x68] sm:$0xff]
    %v2465 = vld [vmem:[%s7 + $0x70] sm:$0xff]
    %v2466 = vld [vmem:[%s7 + $0x78] sm:$0xff]
    %v2467 = vld [vmem:[%s7 + $0x80] sm:$0xff]
    %v2468 = vld [vmem:[%s7 + $0x88] sm:$0xff]
    %v2469 = vld [vmem:[%s7 + $0x90] sm:$0xff]
    %v2470 = vld [vmem:[%s7 + $0x98] sm:$0xff]
    %v2471 = vld [vmem:[%s7 + $0xa0] sm:$0xff]
    %v2472 = vld [vmem:[%s7 + $0xa8] sm:$0xff]
    %v2473 = vld [vmem:[%s7 + $0xb0] sm:$0xff]
    %v2474 = vld [vmem:[%s7 + $0xb8] sm:$0xff]
    %v2475 = vld [vmem:[%s7 + $0xc0] sm:$0xff]
    %v2476 = vld [vmem:[%s7 + $0xc8] sm:$0xff]
    %v2477 = vld [vmem:[%s7 + $0xd0] sm:$0xff]
    %v2478 = vld [vmem:[%s7 + $0xd8] sm:$0xff]
    %v2479 = vld [vmem:[%s7 + $0xe0] sm:$0xff]
    %v2480 = vld [vmem:[%s7 + $0xe8] sm:$0xff]
    %v2481 = vld [vmem:[%s7 + $0xf0] sm:$0xff]
    %v2482 = vld [vmem:[%s7 + $0xf8] sm:$0xff]
    %v2483 = vld [vmem:[%s8] sm:$0x1]
    %v2485 = vperm.slane %v2483, 0
    %2487 = vmatpush.msra.mxu0 %v2466
    %2488 = vmatpush.msra.mxu0 %v2465
    %2489 = vmatpush.msra.mxu0 %v2464
    %2490 = vmatpush.msra.mxu0 %v2463
    %2491 = vmatpush.msra.mxu0 %v2462
    %2492 = vmatpush.msra.mxu0 %v2461
    %2493 = vmatpush.msra.mxu0 %v2460
    %2494 = vmatpush.msra.mxu0 %v2459
    %2495 = vmatpush.msra.mxu0 %v2458
    %2496 = vmatpush.msra.mxu0 %v2457
    %2497 = vmatpush.msra.mxu0 %v2456
    %2498 = vmatpush.msra.mxu0 %v2455
    %2499 = vmatpush.msra.mxu0 %v2454
    %2500 = vmatpush.msra.mxu0 %v2453
    %2501 = vmatpush.msra.mxu0 %v2452
    %2502 = vmatpush.msra.mxu0 %v2451
    %2503 = vmatmul.f32.gmra.mxu0 %v2403
    %v2504 = vpop.f32.mrf.mxu0
    %v2505 = vadd.f32 %v2485, %v2504
    %2506 = vmatmul.f32.gmra.mxu0 %v2404
    %v2507 = vpop.f32.mrf.mxu0
    %v2508 = vadd.f32 %v2485, %v2507
    %2509 = vmatmul.f32.gmra.mxu0 %v2405
    %v2510 = vpop.f32.mrf.mxu0
    %v2511 = vadd.f32 %v2485, %v2510
    %2512 = vmatmul.f32.gmra.mxu0 %v2406
    %v2513 = vpop.f32.mrf.mxu0
    %v2514 = vadd.f32 %v2485, %v2513
    %2515 = vmatmul.f32.gmra.mxu0 %v2407
    %v2516 = vpop.f32.mrf.mxu0
    %v2517 = vadd.f32 %v2485, %v2516
    %2518 = vmatmul.f32.gmra.mxu0 %v2408
    %v2519 = vpop.f32.mrf.mxu0
    %v2520 = vadd.f32 %v2485, %v2519
    %2521 = vmatmul.f32.gmra.mxu0 %v2409
    %v2522 = vpop.f32.mrf.mxu0
    %v2523 = vadd.f32 %v2485, %v2522
    %2524 = vmatmul.f32.gmra.mxu0 %v2410
    %v2525 = vpop.f32.mrf.mxu0
    %v2526 = vadd.f32 %v2485, %v2525
    %2527 = vmatmul.f32.gmra.mxu0 %v2411
    %v2528 = vpop.f32.mrf.mxu0
    %v2529 = vadd.f32 %v2485, %v2528
    %2530 = vmatmul.f32.gmra.mxu0 %v2412
    %v2531 = vpop.f32.mrf.mxu0
    %v2532 = vadd.f32 %v2485, %v2531
    %2533 = vmatmul.f32.gmra.mxu0 %v2413
    %v2534 = vpop.f32.mrf.mxu0
    %v2535 = vadd.f32 %v2485, %v2534
    %2536 = vmatmul.f32.gmra.mxu0 %v2414
    %v2537 = vpop.f32.mrf.mxu0
    %v2538 = vadd.f32 %v2485, %v2537
    %2539 = vmatmul.f32.gmra.mxu0 %v2415
    %v2540 = vpop.f32.mrf.mxu0
    %v2541 = vadd.f32 %v2485, %v2540
    %2542 = vmatmul.f32.gmra.mxu0 %v2416
    %v2543 = vpop.f32.mrf.mxu0
    %v2544 = vadd.f32 %v2485, %v2543
    %2545 = vmatmul.f32.gmra.mxu0 %v2417
    %v2546 = vpop.f32.mrf.mxu0
    %v2547 = vadd.f32 %v2485, %v2546
    %2548 = vmatmul.f32.gmra.mxu0 %v2418
    %v2549 = vpop.f32.mrf.mxu0
    %v2550 = vadd.f32 %v2485, %v2549
    %2551 = vmatmul.f32.gmra.mxu0 %v2419
    %v2552 = vpop.f32.mrf.mxu0
    %v2553 = vadd.f32 %v2485, %v2552
    %2554 = vmatmul.f32.gmra.mxu0 %v2420
    %v2555 = vpop.f32.mrf.mxu0
    %v2556 = vadd.f32 %v2485, %v2555
    %2557 = vmatmul.f32.gmra.mxu0 %v2421
    %v2558 = vpop.f32.mrf.mxu0
    %v2559 = vadd.f32 %v2485, %v2558
    %2560 = vmatmul.f32.gmra.mxu0 %v2422
    %v2561 = vpop.f32.mrf.mxu0
    %v2562 = vadd.f32 %v2485, %v2561
    %2563 = vmatmul.f32.gmra.mxu0 %v2423
    %v2564 = vpop.f32.mrf.mxu0
    %v2565 = vadd.f32 %v2485, %v2564
    %2566 = vmatmul.f32.gmra.mxu0 %v2424
    %v2567 = vpop.f32.mrf.mxu0
    %v2568 = vadd.f32 %v2485, %v2567
    %2569 = vmatmul.f32.gmra.mxu0 %v2425
    %v2570 = vpop.f32.mrf.mxu0
    %v2571 = vadd.f32 %v2485, %v2570
    %2572 = vmatmul.f32.gmra.mxu0 %v2426
    %v2573 = vpop.f32.mrf.mxu0
    %v2574 = vadd.f32 %v2485, %v2573
    %2575 = vdwg.mxu0
    %2576 = vmatpush.msra.mxu0 %v2482
    %2577 = vmatpush.msra.mxu0 %v2481
    %2578 = vmatpush.msra.mxu0 %v2480
    %2579 = vmatpush.msra.mxu0 %v2479
    %2580 = vmatpush.msra.mxu0 %v2478
    %2581 = vmatpush.msra.mxu0 %v2477
    %2582 = vmatpush.msra.mxu0 %v2476
    %2583 = vmatpush.msra.mxu0 %v2475
    %2584 = vmatpush.msra.mxu0 %v2474
    %2585 = vmatpush.msra.mxu0 %v2473
    %2586 = vmatpush.msra.mxu0 %v2472
    %2587 = vmatpush.msra.mxu0 %v2471
    %2588 = vmatpush.msra.mxu0 %v2470
    %2589 = vmatpush.msra.mxu0 %v2469
    %2590 = vmatpush.msra.mxu0 %v2468
    %2591 = vmatpush.msra.mxu0 %v2467
    %2592 = vmatmul.f32.gmra.mxu0 %v2427
    %v2593 = vpop.f32.mrf.mxu0
    %v2594 = vadd.f32 %v2505, %v2593
    %2595 = vmatmul.f32.gmra.mxu0 %v2428
    %v2596 = vpop.f32.mrf.mxu0
    %v2597 = vadd.f32 %v2508, %v2596
    %2598 = vmatmul.f32.gmra.mxu0 %v2429
    %v2599 = vpop.f32.mrf.mxu0
    %v2600 = vadd.f32 %v2511, %v2599
    %2601 = vmatmul.f32.gmra.mxu0 %v2430
    %v2602 = vpop.f32.mrf.mxu0
    %v2603 = vadd.f32 %v2514, %v2602
    %2604 = vmatmul.f32.gmra.mxu0 %v2431
    %v2605 = vpop.f32.mrf.mxu0
    %v2606 = vadd.f32 %v2517, %v2605
    %2607 = vmatmul.f32.gmra.mxu0 %v2432
    %v2608 = vpop.f32.mrf.mxu0
    %v2609 = vadd.f32 %v2520, %v2608
    %2610 = vmatmul.f32.gmra.mxu0 %v2433
    %v2611 = vpop.f32.mrf.mxu0
    %v2612 = vadd.f32 %v2523, %v2611
    %2613 = vmatmul.f32.gmra.mxu0 %v2434
    %v2614 = vpop.f32.mrf.mxu0
    %v2615 = vadd.f32 %v2526, %v2614
    %2616 = vmatmul.f32.gmra.mxu0 %v2435
    %v2617 = vpop.f32.mrf.mxu0
    %v2618 = vadd.f32 %v2529, %v2617
    %2619 = vmatmul.f32.gmra.mxu0 %v2436
    %v2620 = vpop.f32.mrf.mxu0
    %v2621 = vadd.f32 %v2532, %v2620
    %2622 = vmatmul.f32.gmra.mxu0 %v2437
    %v2623 = vpop.f32.mrf.mxu0
    %v2624 = vadd.f32 %v2535, %v2623
    %2625 = vmatmul.f32.gmra.mxu0 %v2438
    %v2626 = vpop.f32.mrf.mxu0
    %v2627 = vadd.f32 %v2538, %v2626
    %2628 = vmatmul.f32.gmra.mxu0 %v2439
    %v2629 = vpop.f32.mrf.mxu0
    %v2630 = vadd.f32 %v2541, %v2629
    %2631 = vmatmul.f32.gmra.mxu0 %v2440
    %v2632 = vpop.f32.mrf.mxu0
    %v2633 = vadd.f32 %v2544, %v2632
    %2634 = vmatmul.f32.gmra.mxu0 %v2441
    %v2635 = vpop.f32.mrf.mxu0
    %v2636 = vadd.f32 %v2547, %v2635
    %2637 = vmatmul.f32.gmra.mxu0 %v2442
    %v2638 = vpop.f32.mrf.mxu0
    %v2639 = vadd.f32 %v2550, %v2638
    %2640 = vmatmul.f32.gmra.mxu0 %v2443
    %v2641 = vpop.f32.mrf.mxu0
    %v2642 = vadd.f32 %v2553, %v2641
    %2643 = vmatmul.f32.gmra.mxu0 %v2444
    %v2644 = vpop.f32.mrf.mxu0
    %v2645 = vadd.f32 %v2556, %v2644
    %2646 = vmatmul.f32.gmra.mxu0 %v2445
    %v2647 = vpop.f32.mrf.mxu0
    %v2648 = vadd.f32 %v2559, %v2647
    %2649 = vmatmul.f32.gmra.mxu0 %v2446
    %v2650 = vpop.f32.mrf.mxu0
    %v2651 = vadd.f32 %v2562, %v2650
    %2652 = vmatmul.f32.gmra.mxu0 %v2447
    %v2653 = vpop.f32.mrf.mxu0
    %v2654 = vadd.f32 %v2565, %v2653
    %2655 = vmatmul.f32.gmra.mxu0 %v2448
    %v2656 = vpop.f32.mrf.mxu0
    %v2657 = vadd.f32 %v2568, %v2656
    %2658 = vmatmul.f32.gmra.mxu0 %v2449
    %v2659 = vpop.f32.mrf.mxu0
    %v2660 = vadd.f32 %v2571, %v2659
    %2661 = vmatmul.f32.gmra.mxu0 %v2450
    %v2662 = vpop.f32.mrf.mxu0
    %v2663 = vadd.f32 %v2574, %v2662
    %2664 = vdwg.mxu0
    %v2665 = vld [vmem:[%s11] sm:$0xff]
    %v2666 = vld [vmem:[%s11 + $0x8] sm:$0xff]
    %v2667 = vld [vmem:[%s11 + $0x10] sm:$0xff]
    %v2668 = vld [vmem:[%s11 + $0x18] sm:$0xff]
    %v2669 = vld [vmem:[%s11 + $0x20] sm:$0xff]
    %v2670 = vld [vmem:[%s11 + $0x28] sm:$0xff]
    %v2671 = vld [vmem:[%s11 + $0x30] sm:$0xff]
    %v2672 = vld [vmem:[%s11 + $0x38] sm:$0xff]
    %v2673 = vld [vmem:[%s11 + $0x40] sm:$0xff]
    %v2674 = vld [vmem:[%s11 + $0x48] sm:$0xff]
    %v2675 = vld [vmem:[%s11 + $0x50] sm:$0xff]
    %v2676 = vld [vmem:[%s11 + $0x58] sm:$0xff]
    %v2677 = vld [vmem:[%s11 + $0x60] sm:$0xff]
    %v2678 = vld [vmem:[%s11 + $0x68] sm:$0xff]
    %v2679 = vld [vmem:[%s11 + $0x70] sm:$0xff]
    %v2680 = vld [vmem:[%s11 + $0x78] sm:$0xff]
    %v2681 = vld [vmem:[%s11 + $0x80] sm:$0xff]
    %v2682 = vld [vmem:[%s11 + $0x88] sm:$0xff]
    %v2683 = vld [vmem:[%s11 + $0x90] sm:$0xff]
    %v2684 = vld [vmem:[%s11 + $0x98] sm:$0xff]
    %v2685 = vld [vmem:[%s11 + $0xa0] sm:$0xff]
    %v2686 = vld [vmem:[%s11 + $0xa8] sm:$0xff]
    %v2687 = vld [vmem:[%s11 + $0xb0] sm:$0xff]
    %v2688 = vld [vmem:[%s11 + $0xb8] sm:$0xff]
    %2690 = vset.pattern.permute.xlu0 0
    %2691 = vperm.xlu0 %2690, %v2665
    %v2692 = vpop.permute.xlu0 %2691
    %2695 = vset.pattern.permute.xlu0 0
    %2696 = vperm.xlu0 %2695, %v2666
    %v2697 = vpop.permute.xlu0 %2696
    %2700 = vset.pattern.permute.xlu0 0
    %2701 = vperm.xlu0 %2700, %v2667
    %v2702 = vpop.permute.xlu0 %2701
    %2705 = vset.pattern.permute.xlu0 0
    %2706 = vperm.xlu0 %2705, %v2668
    %v2707 = vpop.permute.xlu0 %2706
    %2710 = vset.pattern.permute.xlu0 0
    %2711 = vperm.xlu0 %2710, %v2669
    %v2712 = vpop.permute.xlu0 %2711
    %2715 = vset.pattern.permute.xlu0 0
    %2716 = vperm.xlu0 %2715, %v2670
    %v2717 = vpop.permute.xlu0 %2716
    %2720 = vset.pattern.permute.xlu0 0
    %2721 = vperm.xlu0 %2720, %v2671
    %v2722 = vpop.permute.xlu0 %2721
    %2725 = vset.pattern.permute.xlu0 0
    %2726 = vperm.xlu0 %2725, %v2672
    %v2727 = vpop.permute.xlu0 %2726
    %2730 = vset.pattern.permute.xlu0 0
    %2731 = vperm.xlu0 %2730, %v2673
    %v2732 = vpop.permute.xlu0 %2731
    %2735 = vset.pattern.permute.xlu0 0
    %2736 = vperm.xlu0 %2735, %v2674
    %v2737 = vpop.permute.xlu0 %2736
    %2740 = vset.pattern.permute.xlu0 0
    %2741 = vperm.xlu0 %2740, %v2675
    %v2742 = vpop.permute.xlu0 %2741
    %2745 = vset.pattern.permute.xlu0 0
    %2746 = vperm.xlu0 %2745, %v2676
    %v2747 = vpop.permute.xlu0 %2746
    %2750 = vset.pattern.permute.xlu0 0
    %2751 = vperm.xlu0 %2750, %v2677
    %v2752 = vpop.permute.xlu0 %2751
    %2755 = vset.pattern.permute.xlu0 0
    %2756 = vperm.xlu0 %2755, %v2678
    %v2757 = vpop.permute.xlu0 %2756
    %2760 = vset.pattern.permute.xlu0 0
    %2761 = vperm.xlu0 %2760, %v2679
    %v2762 = vpop.permute.xlu0 %2761
    %2765 = vset.pattern.permute.xlu0 0
    %2766 = vperm.xlu0 %2765, %v2680
    %v2767 = vpop.permute.xlu0 %2766
    %2770 = vset.pattern.permute.xlu0 0
    %2771 = vperm.xlu0 %2770, %v2681
    %v2772 = vpop.permute.xlu0 %2771
    %2775 = vset.pattern.permute.xlu0 0
    %2776 = vperm.xlu0 %2775, %v2682
    %v2777 = vpop.permute.xlu0 %2776
    %2780 = vset.pattern.permute.xlu0 0
    %2781 = vperm.xlu0 %2780, %v2683
    %v2782 = vpop.permute.xlu0 %2781
    %2785 = vset.pattern.permute.xlu0 0
    %2786 = vperm.xlu0 %2785, %v2684
    %v2787 = vpop.permute.xlu0 %2786
    %2790 = vset.pattern.permute.xlu0 0
    %2791 = vperm.xlu0 %2790, %v2685
    %v2792 = vpop.permute.xlu0 %2791
    %2795 = vset.pattern.permute.xlu0 0
    %2796 = vperm.xlu0 %2795, %v2686
    %v2797 = vpop.permute.xlu0 %2796
    %2800 = vset.pattern.permute.xlu0 0
    %2801 = vperm.xlu0 %2800, %v2687
    %v2802 = vpop.permute.xlu0 %2801
    %2805 = vset.pattern.permute.xlu0 0
    %2806 = vperm.xlu0 %2805, %v2688
    %v2807 = vpop.permute.xlu0 %2806
    %v2809 = vmul.f32 %v2594, %v2692
    %v2810 = vmul.f32 %v2597, %v2697
    %v2811 = vmul.f32 %v2600, %v2702
    %v2812 = vmul.f32 %v2603, %v2707
    %v2813 = vmul.f32 %v2606, %v2712
    %v2814 = vmul.f32 %v2609, %v2717
    %v2815 = vmul.f32 %v2612, %v2722
    %v2816 = vmul.f32 %v2615, %v2727
    %v2817 = vmul.f32 %v2618, %v2732
    %v2818 = vmul.f32 %v2621, %v2737
    %v2819 = vmul.f32 %v2624, %v2742
    %v2820 = vmul.f32 %v2627, %v2747
    %v2821 = vmul.f32 %v2630, %v2752
    %v2822 = vmul.f32 %v2633, %v2757
    %v2823 = vmul.f32 %v2636, %v2762
    %v2824 = vmul.f32 %v2639, %v2767
    %v2825 = vmul.f32 %v2642, %v2772
    %v2826 = vmul.f32 %v2645, %v2777
    %v2827 = vmul.f32 %v2648, %v2782
    %v2828 = vmul.f32 %v2651, %v2787
    %v2829 = vmul.f32 %v2654, %v2792
    %v2830 = vmul.f32 %v2657, %v2797
    %v2831 = vmul.f32 %v2660, %v2802
    %v2832 = vmul.f32 %v2663, %v2807
    %v2833 = vsel %vm780, %v2809, 0.0
    %v2834 = vsel %vm780, %v2810, 0.0
    %v2835 = vadd.f32 %v2833, %v2834
    %v2836 = vsel %vm780, %v2811, 0.0
    %v2837 = vadd.f32 %v2835, %v2836
    %v2838 = vsel %vm780, %v2812, 0.0
    %v2839 = vadd.f32 %v2837, %v2838
    %v2840 = vsel %vm780, %v2813, 0.0
    %v2841 = vadd.f32 %v2839, %v2840
    %v2842 = vsel %vm780, %v2814, 0.0
    %v2843 = vadd.f32 %v2841, %v2842
    %v2844 = vsel %vm780, %v2815, 0.0
    %v2845 = vadd.f32 %v2843, %v2844
    %v2846 = vsel %vm780, %v2816, 0.0
    %v2847 = vadd.f32 %v2845, %v2846
    %v2848 = vsel %vm780, %v2817, 0.0
    %v2849 = vadd.f32 %v2847, %v2848
    %v2850 = vsel %vm780, %v2818, 0.0
    %v2851 = vadd.f32 %v2849, %v2850
    %v2852 = vsel %vm780, %v2819, 0.0
    %v2853 = vadd.f32 %v2851, %v2852
    %v2854 = vsel %vm780, %v2820, 0.0
    %v2855 = vadd.f32 %v2853, %v2854
    %v2856 = vsel %vm780, %v2821, 0.0
    %v2857 = vadd.f32 %v2855, %v2856
    %v2858 = vsel %vm780, %v2822, 0.0
    %v2859 = vadd.f32 %v2857, %v2858
    %v2860 = vsel %vm780, %v2823, 0.0
    %v2861 = vadd.f32 %v2859, %v2860
    %v2862 = vsel %vm780, %v2824, 0.0
    %v2863 = vadd.f32 %v2861, %v2862
    %v2864 = vrot.slane %v2863, 4
    %v2865 = vadd.f32 %v2863, %v2864
    %v2866 = vrot.slane %v2865, 2
    %v2867 = vadd.f32 %v2865, %v2866
    %v2868 = vrot.slane %v2867, 1
    %v2869 = vadd.f32 %v2867, %v2868
    %v2870 = vmul.f32 %v2809, %v2809
    %v2871 = vmul.f32 %v2810, %v2810
    %v2872 = vmul.f32 %v2811, %v2811
    %v2873 = vmul.f32 %v2812, %v2812
    %v2874 = vmul.f32 %v2813, %v2813
    %v2875 = vmul.f32 %v2814, %v2814
    %v2876 = vmul.f32 %v2815, %v2815
    %v2877 = vmul.f32 %v2816, %v2816
    %v2878 = vmul.f32 %v2817, %v2817
    %v2879 = vmul.f32 %v2818, %v2818
    %v2880 = vmul.f32 %v2819, %v2819
    %v2881 = vmul.f32 %v2820, %v2820
    %v2882 = vmul.f32 %v2821, %v2821
    %v2883 = vmul.f32 %v2822, %v2822
    %v2884 = vmul.f32 %v2823, %v2823
    %v2885 = vmul.f32 %v2824, %v2824
    %v2886 = vsel %vm780, %v2870, 0.0
    %v2887 = vsel %vm780, %v2871, 0.0
    %v2888 = vadd.f32 %v2886, %v2887
    %v2889 = vsel %vm780, %v2872, 0.0
    %v2890 = vadd.f32 %v2888, %v2889
    %v2891 = vsel %vm780, %v2873, 0.0
    %v2892 = vadd.f32 %v2890, %v2891
    %v2893 = vsel %vm780, %v2874, 0.0
    %v2894 = vadd.f32 %v2892, %v2893
    %v2895 = vsel %vm780, %v2875, 0.0
    %v2896 = vadd.f32 %v2894, %v2895
    %v2897 = vsel %vm780, %v2876, 0.0
    %v2898 = vadd.f32 %v2896, %v2897
    %v2899 = vsel %vm780, %v2877, 0.0
    %v2900 = vadd.f32 %v2898, %v2899
    %v2901 = vsel %vm780, %v2878, 0.0
    %v2902 = vadd.f32 %v2900, %v2901
    %v2903 = vsel %vm780, %v2879, 0.0
    %v2904 = vadd.f32 %v2902, %v2903
    %v2905 = vsel %vm780, %v2880, 0.0
    %v2906 = vadd.f32 %v2904, %v2905
    %v2907 = vsel %vm780, %v2881, 0.0
    %v2908 = vadd.f32 %v2906, %v2907
    %v2909 = vsel %vm780, %v2882, 0.0
    %v2910 = vadd.f32 %v2908, %v2909
    %v2911 = vsel %vm780, %v2883, 0.0
    %v2912 = vadd.f32 %v2910, %v2911
    %v2913 = vsel %vm780, %v2884, 0.0
    %v2914 = vadd.f32 %v2912, %v2913
    %v2915 = vsel %vm780, %v2885, 0.0
    %v2916 = vadd.f32 %v2914, %v2915
    %v2917 = vrot.slane %v2916, 4
    %v2918 = vadd.f32 %v2916, %v2917
    %v2919 = vrot.slane %v2918, 2
    %v2920 = vadd.f32 %v2918, %v2919
    %v2921 = vrot.slane %v2920, 1
    %v2922 = vadd.f32 %v2920, %v2921
    %v2923 = vmul.f32 %v2869, 0.009259259
    %v2924 = vmul.f32 %v2922, 0.009259259
    %v2925 = vmul.f32 %v2923, %v2923
    %v2926 = vsub.f32 %v2924, %v2925
    %v2927 = vmax.f32 %v2926, 0.0
    %v2928 = vld [vmem:[%s9] sm:$0x1]
    %v2929 = vadd.f32 %v2927, 1e-05
    %v2930 = vrsqrt.pop %v2929
    %v2931 = vmul.f32 %v2930, %v2929
    %v2932 = vmul.f32 %v2931, %v2930
    %v2933 = vmul.f32 0.5, %v2932
    %v2934 = vsub.f32 1.5, %v2933
    %v2935 = vmul.f32 %v2930, %v2934
    %vm2936 = vweird.f32 %v2929
    %vm2937 = vweird.f32 %v2930
    %vm2938 = vmor %vm2936, %vm2937
    %v2939 = vsel %vm2938, %v2930, %v2935
    %v2940 = vmul.f32 %v2928, %v2939
    %v2941 = vld [vmem:[%s10] sm:$0x1]
    %v2942 = vmul.f32 %v2923, %v2940
    %v2943 = vsub.f32 %v2941, %v2942
    %v2945 = vperm.slane %v2940, 0
    %v2947 = vmul.f32 %v2809, %v2945
    %v2948 = vmul.f32 %v2810, %v2945
    %v2949 = vmul.f32 %v2811, %v2945
    %v2950 = vmul.f32 %v2812, %v2945
    %v2951 = vmul.f32 %v2813, %v2945
    %v2952 = vmul.f32 %v2814, %v2945
    %v2953 = vmul.f32 %v2815, %v2945
    %v2954 = vmul.f32 %v2816, %v2945
    %v2955 = vmul.f32 %v2817, %v2945
    %v2956 = vmul.f32 %v2818, %v2945
    %v2957 = vmul.f32 %v2819, %v2945
    %v2958 = vmul.f32 %v2820, %v2945
    %v2959 = vmul.f32 %v2821, %v2945
    %v2960 = vmul.f32 %v2822, %v2945
    %v2961 = vmul.f32 %v2823, %v2945
    %v2962 = vmul.f32 %v2824, %v2945
    %v2964 = vperm.slane %v2943, 0
    %v2966 = vadd.f32 %v2947, %v2964
    %v2967 = vadd.f32 %v2948, %v2964
    %v2968 = vadd.f32 %v2949, %v2964
    %v2969 = vadd.f32 %v2950, %v2964
    %v2970 = vadd.f32 %v2951, %v2964
    %v2971 = vadd.f32 %v2952, %v2964
    %v2972 = vadd.f32 %v2953, %v2964
    %v2973 = vadd.f32 %v2954, %v2964
    %v2974 = vadd.f32 %v2955, %v2964
    %v2975 = vadd.f32 %v2956, %v2964
    %v2976 = vadd.f32 %v2957, %v2964
    %v2977 = vadd.f32 %v2958, %v2964
    %v2978 = vadd.f32 %v2959, %v2964
    %v2979 = vadd.f32 %v2960, %v2964
    %v2980 = vadd.f32 %v2961, %v2964
    %v2981 = vadd.f32 %v2962, %v2964
    %v2982 = vmax.f32 %v2966, 0.0
    %v2983 = vmax.f32 %v2967, 0.0
    %v2984 = vmax.f32 %v2968, 0.0
    %v2985 = vmax.f32 %v2969, 0.0
    %v2986 = vmax.f32 %v2970, 0.0
    %v2987 = vmax.f32 %v2971, 0.0
    %v2988 = vmax.f32 %v2972, 0.0
    %v2989 = vmax.f32 %v2973, 0.0
    %v2990 = vmax.f32 %v2974, 0.0
    %v2991 = vmax.f32 %v2975, 0.0
    %v2992 = vmax.f32 %v2976, 0.0
    %v2993 = vmax.f32 %v2977, 0.0
    %v2994 = vmax.f32 %v2978, 0.0
    %v2995 = vmax.f32 %v2979, 0.0
    %v2996 = vmax.f32 %v2980, 0.0
    %v2997 = vmax.f32 %v2981, 0.0
    %v2998 = vsel %vm780, %v2825, 0.0
    %v2999 = vsel %vm780, %v2826, 0.0
    %v3000 = vadd.f32 %v2998, %v2999
    %v3001 = vsel %vm780, %v2827, 0.0
    %v3002 = vadd.f32 %v3000, %v3001
    %v3003 = vsel %vm780, %v2828, 0.0
    %v3004 = vadd.f32 %v3002, %v3003
    %v3005 = vsel %vm780, %v2829, 0.0
    %v3006 = vadd.f32 %v3004, %v3005
    %v3007 = vsel %vm780, %v2830, 0.0
    %v3008 = vadd.f32 %v3006, %v3007
    %v3009 = vsel %vm780, %v2831, 0.0
    %v3010 = vadd.f32 %v3008, %v3009
    %v3011 = vsel %vm780, %v2832, 0.0
    %v3012 = vadd.f32 %v3010, %v3011
    %v3013 = vrot.slane %v3012, 4
    %v3014 = vadd.f32 %v3012, %v3013
    %v3015 = vrot.slane %v3014, 2
    %v3016 = vadd.f32 %v3014, %v3015
    %v3017 = vrot.slane %v3016, 1
    %v3018 = vadd.f32 %v3016, %v3017
    %v3019 = vmul.f32 %v2825, %v2825
    %v3020 = vmul.f32 %v2826, %v2826
    %v3021 = vmul.f32 %v2827, %v2827
    %v3022 = vmul.f32 %v2828, %v2828
    %v3023 = vmul.f32 %v2829, %v2829
    %v3024 = vmul.f32 %v2830, %v2830
    %v3025 = vmul.f32 %v2831, %v2831
    %v3026 = vmul.f32 %v2832, %v2832
    %v3027 = vsel %vm780, %v3019, 0.0
    %v3028 = vsel %vm780, %v3020, 0.0
    %v3029 = vadd.f32 %v3027, %v3028
    %v3030 = vsel %vm780, %v3021, 0.0
    %v3031 = vadd.f32 %v3029, %v3030
    %v3032 = vsel %vm780, %v3022, 0.0
    %v3033 = vadd.f32 %v3031, %v3032
    %v3034 = vsel %vm780, %v3023, 0.0
    %v3035 = vadd.f32 %v3033, %v3034
    %v3036 = vsel %vm780, %v3024, 0.0
    %v3037 = vadd.f32 %v3035, %v3036
    %v3038 = vsel %vm780, %v3025, 0.0
    %v3039 = vadd.f32 %v3037, %v3038
    %v3040 = vsel %vm780, %v3026, 0.0
    %v3041 = vadd.f32 %v3039, %v3040
    %v3042 = vrot.slane %v3041, 4
    %v3043 = vadd.f32 %v3041, %v3042
    %v3044 = vrot.slane %v3043, 2
    %v3045 = vadd.f32 %v3043, %v3044
    %v3046 = vrot.slane %v3045, 1
    %v3047 = vadd.f32 %v3045, %v3046
    %v3048 = vmul.f32 %v3018, 0.018518519
    %v3049 = vmul.f32 %v3047, 0.018518519
    %v3050 = vmul.f32 %v3048, %v3048
    %v3051 = vsub.f32 %v3049, %v3050
    %v3052 = vmax.f32 %v3051, 0.0
    %v3053 = vadd.f32 %v3052, 1e-05
    %v3054 = vrsqrt.pop %v3053
    %v3055 = vmul.f32 %v3054, %v3053
    %v3056 = vmul.f32 %v3055, %v3054
    %v3057 = vmul.f32 0.5, %v3056
    %v3058 = vsub.f32 1.5, %v3057
    %v3059 = vmul.f32 %v3054, %v3058
    %vm3060 = vweird.f32 %v3053
    %vm3061 = vweird.f32 %v3054
    %vm3062 = vmor %vm3060, %vm3061
    %v3063 = vsel %vm3062, %v3054, %v3059
    %v3064 = vmul.f32 %v2928, %v3063
    %v3065 = vmul.f32 %v3048, %v3064
    %v3066 = vsub.f32 %v2941, %v3065
    %v3068 = vperm.slane %v3064, 0
    %v3070 = vmul.f32 %v2825, %v3068
    %v3071 = vmul.f32 %v2826, %v3068
    %v3072 = vmul.f32 %v2827, %v3068
    %v3073 = vmul.f32 %v2828, %v3068
    %v3074 = vmul.f32 %v2829, %v3068
    %v3075 = vmul.f32 %v2830, %v3068
    %v3076 = vmul.f32 %v2831, %v3068
    %v3077 = vmul.f32 %v2832, %v3068
    %v3079 = vperm.slane %v3066, 0
    %v3081 = vadd.f32 %v3070, %v3079
    %v3082 = vadd.f32 %v3071, %v3079
    %v3083 = vadd.f32 %v3072, %v3079
    %v3084 = vadd.f32 %v3073, %v3079
    %v3085 = vadd.f32 %v3074, %v3079
    %v3086 = vadd.f32 %v3075, %v3079
    %v3087 = vadd.f32 %v3076, %v3079
    %v3088 = vadd.f32 %v3077, %v3079
    %v3089 = vmax.f32 %v3081, 0.0
    %v3090 = vmax.f32 %v3082, 0.0
    %v3091 = vmax.f32 %v3083, 0.0
    %v3092 = vmax.f32 %v3084, 0.0
    %v3093 = vmax.f32 %v3085, 0.0
    %v3094 = vmax.f32 %v3086, 0.0
    %v3095 = vmax.f32 %v3087, 0.0
    %v3096 = vmax.f32 %v3088, 0.0
    %v3121 = vrot.slane %v2982, 1
    %v3122 = vrot.slane %v2983, 1
    %v3123 = vsel %vm1286, %v3121, %v3122
    %v3124 = vrot.slane %v2984, 1
    %v3125 = vsel %vm1286, %v3122, %v3124
    %v3126 = vrot.slane %v2985, 1
    %v3127 = vsel %vm1286, %v3124, %v3126
    %v3128 = vrot.slane %v2986, 1
    %v3129 = vsel %vm1286, %v3126, %v3128
    %v3130 = vrot.slane %v2987, 1
    %v3131 = vsel %vm1286, %v3128, %v3130
    %v3132 = vrot.slane %v2988, 1
    %v3133 = vsel %vm1286, %v3130, %v3132
    %v3134 = vrot.slane %v2989, 1
    %v3135 = vsel %vm1286, %v3132, %v3134
    %v3136 = vrot.slane %v2990, 1
    %v3137 = vsel %vm1286, %v3134, %v3136
    %v3138 = vrot.slane %v2991, 1
    %v3139 = vsel %vm1286, %v3136, %v3138
    %v3140 = vrot.slane %v2992, 1
    %v3141 = vsel %vm1286, %v3138, %v3140
    %v3142 = vrot.slane %v2993, 1
    %v3143 = vsel %vm1286, %v3140, %v3142
    %v3144 = vrot.slane %v2994, 1
    %v3145 = vsel %vm1286, %v3142, %v3144
    %v3146 = vrot.slane %v2995, 1
    %v3147 = vsel %vm1286, %v3144, %v3146
    %v3148 = vrot.slane %v2996, 1
    %v3149 = vsel %vm1286, %v3146, %v3148
    %v3150 = vrot.slane %v2997, 1
    %v3151 = vsel %vm1286, %v3148, %v3150
    %v3152 = vrot.slane %v3089, 1
    %v3153 = vsel %vm1286, %v3150, %v3152
    %v3154 = vrot.slane %v3090, 1
    %v3155 = vsel %vm1286, %v3152, %v3154
    %v3156 = vrot.slane %v3091, 1
    %v3157 = vsel %vm1286, %v3154, %v3156
    %v3158 = vrot.slane %v3092, 1
    %v3159 = vsel %vm1286, %v3156, %v3158
    %v3160 = vrot.slane %v3093, 1
    %v3161 = vsel %vm1286, %v3158, %v3160
    %v3162 = vrot.slane %v3094, 1
    %v3163 = vsel %vm1286, %v3160, %v3162
    %v3164 = vrot.slane %v3095, 1
    %v3165 = vsel %vm1286, %v3162, %v3164
    %v3166 = vrot.slane %v3096, 1
    %v3167 = vsel %vm1286, %v3164, %v3166
    %v3168 = vsel %vm1286, %v3166, %v1382
    %v3193 = vmax.f32 %v2982, %v3123
    %v3194 = vmax.f32 %v2983, %v3125
    %v3195 = vmax.f32 %v2984, %v3127
    %v3196 = vmax.f32 %v2985, %v3129
    %v3197 = vmax.f32 %v2986, %v3131
    %v3198 = vmax.f32 %v2987, %v3133
    %v3199 = vmax.f32 %v2988, %v3135
    %v3200 = vmax.f32 %v2989, %v3137
    %v3201 = vmax.f32 %v2990, %v3139
    %v3202 = vmax.f32 %v2991, %v3141
    %v3203 = vmax.f32 %v2992, %v3143
    %v3204 = vmax.f32 %v2993, %v3145
    %v3205 = vmax.f32 %v2994, %v3147
    %v3206 = vmax.f32 %v2995, %v3149
    %v3207 = vmax.f32 %v2996, %v3151
    %v3208 = vmax.f32 %v2997, %v3153
    %v3209 = vmax.f32 %v3089, %v3155
    %v3210 = vmax.f32 %v3090, %v3157
    %v3211 = vmax.f32 %v3091, %v3159
    %v3212 = vmax.f32 %v3092, %v3161
    %v3213 = vmax.f32 %v3093, %v3163
    %v3214 = vmax.f32 %v3094, %v3165
    %v3215 = vmax.f32 %v3095, %v3167
    %v3216 = vmax.f32 %v3096, %v3168
    %v3217 = vld [vmem:[%s12] sm:$0xff]
    %v3218 = vld [vmem:[%s12 + $0x8] sm:$0xff]
    %v3219 = vld [vmem:[%s12 + $0x10] sm:$0xff]
    %v3220 = vld [vmem:[%s12 + $0x18] sm:$0xff]
    %v3221 = vld [vmem:[%s12 + $0x20] sm:$0xff]
    %v3222 = vld [vmem:[%s12 + $0x28] sm:$0xff]
    %v3223 = vld [vmem:[%s12 + $0x30] sm:$0xff]
    %v3224 = vld [vmem:[%s12 + $0x38] sm:$0xff]
    %v3225 = vld [vmem:[%s12 + $0x40] sm:$0xff]
    %v3226 = vld [vmem:[%s12 + $0x48] sm:$0xff]
    %v3227 = vld [vmem:[%s12 + $0x50] sm:$0xff]
    %v3228 = vld [vmem:[%s12 + $0x58] sm:$0xff]
    %3229 = vset.pattern.permute.xlu0 0
    %3230 = vperm.xlu0 %3229, %v3217
    %v3231 = vpop.permute.xlu0 %3230
    %3232 = vset.pattern.permute.xlu0 0
    %3233 = vperm.xlu0 %3232, %v3218
    %v3234 = vpop.permute.xlu0 %3233
    %3235 = vset.pattern.permute.xlu0 0
    %3236 = vperm.xlu0 %3235, %v3219
    %v3237 = vpop.permute.xlu0 %3236
    %3238 = vset.pattern.permute.xlu0 0
    %3239 = vperm.xlu0 %3238, %v3220
    %v3240 = vpop.permute.xlu0 %3239
    %3241 = vset.pattern.permute.xlu0 0
    %3242 = vperm.xlu0 %3241, %v3221
    %v3243 = vpop.permute.xlu0 %3242
    %3244 = vset.pattern.permute.xlu0 0
    %3245 = vperm.xlu0 %3244, %v3222
    %v3246 = vpop.permute.xlu0 %3245
    %3247 = vset.pattern.permute.xlu0 0
    %3248 = vperm.xlu0 %3247, %v3223
    %v3249 = vpop.permute.xlu0 %3248
    %3250 = vset.pattern.permute.xlu0 0
    %3251 = vperm.xlu0 %3250, %v3224
    %v3252 = vpop.permute.xlu0 %3251
    %3253 = vset.pattern.permute.xlu0 0
    %3254 = vperm.xlu0 %3253, %v3225
    %v3255 = vpop.permute.xlu0 %3254
    %3256 = vset.pattern.permute.xlu0 0
    %3257 = vperm.xlu0 %3256, %v3226
    %v3258 = vpop.permute.xlu0 %3257
    %3259 = vset.pattern.permute.xlu0 0
    %3260 = vperm.xlu0 %3259, %v3227
    %v3261 = vpop.permute.xlu0 %3260
    %3262 = vset.pattern.permute.xlu0 0
    %3263 = vperm.xlu0 %3262, %v3228
    %v3264 = vpop.permute.xlu0 %3263
    %vm3265 = vcmp.eq.s32.totalorder %v1481, %v3231
    %vm3266 = vcmp.eq.s32.totalorder %v1482, %v3231
    %vm3267 = vcmp.eq.s32.totalorder %v1481, %v3234
    %vm3268 = vcmp.eq.s32.totalorder %v1482, %v3234
    %vm3269 = vcmp.eq.s32.totalorder %v1481, %v3237
    %vm3270 = vcmp.eq.s32.totalorder %v1482, %v3237
    %vm3271 = vcmp.eq.s32.totalorder %v1481, %v3240
    %vm3272 = vcmp.eq.s32.totalorder %v1482, %v3240
    %vm3273 = vcmp.eq.s32.totalorder %v1481, %v3243
    %vm3274 = vcmp.eq.s32.totalorder %v1482, %v3243
    %vm3275 = vcmp.eq.s32.totalorder %v1481, %v3246
    %vm3276 = vcmp.eq.s32.totalorder %v1482, %v3246
    %vm3277 = vcmp.eq.s32.totalorder %v1481, %v3249
    %vm3278 = vcmp.eq.s32.totalorder %v1482, %v3249
    %vm3279 = vcmp.eq.s32.totalorder %v1481, %v3252
    %vm3280 = vcmp.eq.s32.totalorder %v1482, %v3252
    %vm3281 = vcmp.eq.s32.totalorder %v1481, %v3255
    %vm3282 = vcmp.eq.s32.totalorder %v1482, %v3255
    %vm3283 = vcmp.eq.s32.totalorder %v1481, %v3258
    %vm3284 = vcmp.eq.s32.totalorder %v1482, %v3258
    %vm3285 = vcmp.eq.s32.totalorder %v1481, %v3261
    %vm3286 = vcmp.eq.s32.totalorder %v1482, %v3261
    %vm3287 = vcmp.eq.s32.totalorder %v1481, %v3264
    %vm3288 = vcmp.eq.s32.totalorder %v1482, %v3264
    %v3289 = vsel %vm3265, 1, 0
    %v3290 = vsel %vm3266, 1, 0
    %v3291 = vsel %vm3267, 1, 0
    %v3292 = vsel %vm3268, 1, 0
    %v3293 = vsel %vm3269, 1, 0
    %v3294 = vsel %vm3270, 1, 0
    %v3295 = vsel %vm3271, 1, 0
    %v3296 = vsel %vm3272, 1, 0
    %v3297 = vsel %vm3273, 1, 0
    %v3298 = vsel %vm3274, 1, 0
    %v3299 = vsel %vm3275, 1, 0
    %v3300 = vsel %vm3276, 1, 0
    %v3301 = vsel %vm3277, 1, 0
    %v3302 = vsel %vm3278, 1, 0
    %v3303 = vsel %vm3279, 1, 0
    %v3304 = vsel %vm3280, 1, 0
    %v3305 = vsel %vm3281, 1, 0
    %v3306 = vsel %vm3282, 1, 0
    %v3307 = vsel %vm3283, 1, 0
    %v3308 = vsel %vm3284, 1, 0
    %v3309 = vsel %vm3285, 1, 0
    %v3310 = vsel %vm3286, 1, 0
    %v3311 = vsel %vm3287, 1, 0
    %v3312 = vsel %vm3288, 1, 0
    %v3313 = vcvt.s32.f32 %v3289
    %v3314 = vcvt.s32.f32 %v3290
    %v3315 = vcvt.s32.f32 %v3291
    %v3316 = vcvt.s32.f32 %v3292
    %v3317 = vcvt.s32.f32 %v3293
    %v3318 = vcvt.s32.f32 %v3294
    %v3319 = vcvt.s32.f32 %v3295
    %v3320 = vcvt.s32.f32 %v3296
    %v3321 = vcvt.s32.f32 %v3297
    %v3322 = vcvt.s32.f32 %v3298
    %v3323 = vcvt.s32.f32 %v3299
    %v3324 = vcvt.s32.f32 %v3300
    %v3325 = vcvt.s32.f32 %v3301
    %v3326 = vcvt.s32.f32 %v3302
    %v3327 = vcvt.s32.f32 %v3303
    %v3328 = vcvt.s32.f32 %v3304
    %v3329 = vcvt.s32.f32 %v3305
    %v3330 = vcvt.s32.f32 %v3306
    %v3331 = vcvt.s32.f32 %v3307
    %v3332 = vcvt.s32.f32 %v3308
    %v3333 = vcvt.s32.f32 %v3309
    %v3334 = vcvt.s32.f32 %v3310
    %v3335 = vcvt.s32.f32 %v3311
    %v3336 = vcvt.s32.f32 %v3312
    %v3338 = vsel %vm780, %v3314, 0
    %v3341 = vsel %vm780, %v3316, 0
    %v3344 = vsel %vm780, %v3318, 0
    %v3347 = vsel %vm780, %v3320, 0
    %v3350 = vsel %vm780, %v3322, 0
    %v3353 = vsel %vm780, %v3324, 0
    %v3356 = vsel %vm780, %v3326, 0
    %v3359 = vsel %vm780, %v3328, 0
    %v3362 = vsel %vm780, %v3330, 0
    %v3365 = vsel %vm780, %v3332, 0
    %v3368 = vsel %vm780, %v3334, 0
    %v3371 = vsel %vm780, %v3336, 0
    %3373 = vmatpush.msra.mxu0 %v3208
    %3374 = vmatpush.msra.mxu0 %v3207
    %3375 = vmatpush.msra.mxu0 %v3206
    %3376 = vmatpush.msra.mxu0 %v3205
    %3377 = vmatpush.msra.mxu0 %v3204
    %3378 = vmatpush.msra.mxu0 %v3203
    %3379 = vmatpush.msra.mxu0 %v3202
    %3380 = vmatpush.msra.mxu0 %v3201
    %3381 = vmatpush.msra.mxu0 %v3200
    %3382 = vmatpush.msra.mxu0 %v3199
    %3383 = vmatpush.msra.mxu0 %v3198
    %3384 = vmatpush.msra.mxu0 %v3197
    %3385 = vmatpush.msra.mxu0 %v3196
    %3386 = vmatpush.msra.mxu0 %v3195
    %3387 = vmatpush.msra.mxu0 %v3194
    %3388 = vmatpush.msra.mxu0 %v3193
    %3389 = vmatmul.f32.gmra.mxu0 %v3313
    %v3390 = vpop.f32.mrf.mxu0
    %v3391 = vadd.f32 0.0, %v3390
    %3392 = vmatmul.f32.gmra.mxu0 %v3315
    %v3393 = vpop.f32.mrf.mxu0
    %v3394 = vadd.f32 0.0, %v3393
    %3395 = vmatmul.f32.gmra.mxu0 %v3317
    %v3396 = vpop.f32.mrf.mxu0
    %v3397 = vadd.f32 0.0, %v3396
    %3398 = vmatmul.f32.gmra.mxu0 %v3319
    %v3399 = vpop.f32.mrf.mxu0
    %v3400 = vadd.f32 0.0, %v3399
    %3401 = vmatmul.f32.gmra.mxu0 %v3321
    %v3402 = vpop.f32.mrf.mxu0
    %v3403 = vadd.f32 0.0, %v3402
    %3404 = vmatmul.f32.gmra.mxu0 %v3323
    %v3405 = vpop.f32.mrf.mxu0
    %v3406 = vadd.f32 0.0, %v3405
    %3407 = vmatmul.f32.gmra.mxu0 %v3325
    %v3408 = vpop.f32.mrf.mxu0
    %v3409 = vadd.f32 0.0, %v3408
    %3410 = vmatmul.f32.gmra.mxu0 %v3327
    %v3411 = vpop.f32.mrf.mxu0
    %v3412 = vadd.f32 0.0, %v3411
    %3413 = vmatmul.f32.gmra.mxu0 %v3329
    %v3414 = vpop.f32.mrf.mxu0
    %v3415 = vadd.f32 0.0, %v3414
    %3416 = vmatmul.f32.gmra.mxu0 %v3331
    %v3417 = vpop.f32.mrf.mxu0
    %v3418 = vadd.f32 0.0, %v3417
    %3419 = vmatmul.f32.gmra.mxu0 %v3333
    %v3420 = vpop.f32.mrf.mxu0
    %v3421 = vadd.f32 0.0, %v3420
    %3422 = vmatmul.f32.gmra.mxu0 %v3335
    %v3423 = vpop.f32.mrf.mxu0
    %v3424 = vadd.f32 0.0, %v3423
    %3425 = vdwg.mxu0
    %3426 = vmatpush.msra.mxu0 0.0
    %3427 = vmatpush.msra.mxu0 0.0
    %3428 = vmatpush.msra.mxu0 0.0
    %3429 = vmatpush.msra.mxu0 0.0
    %3430 = vmatpush.msra.mxu0 0.0
    %3431 = vmatpush.msra.mxu0 0.0
    %3432 = vmatpush.msra.mxu0 0.0
    %3433 = vmatpush.msra.mxu0 0.0
    %3434 = vmatpush.msra.mxu0 %v3216
    %3435 = vmatpush.msra.mxu0 %v3215
    %3436 = vmatpush.msra.mxu0 %v3214
    %3437 = vmatpush.msra.mxu0 %v3213
    %3438 = vmatpush.msra.mxu0 %v3212
    %3439 = vmatpush.msra.mxu0 %v3211
    %3440 = vmatpush.msra.mxu0 %v3210
    %3441 = vmatpush.msra.mxu0 %v3209
    %3442 = vmatmul.f32.gmra.mxu0 %v3338
    %v3443 = vpop.f32.mrf.mxu0
    %v3444 = vadd.f32 %v3391, %v3443
    %3445 = vmatmul.f32.gmra.mxu0 %v3341
    %v3446 = vpop.f32.mrf.mxu0
    %v3447 = vadd.f32 %v3394, %v3446
    %3448 = vmatmul.f32.gmra.mxu0 %v3344
    %v3449 = vpop.f32.mrf.mxu0
    %v3450 = vadd.f32 %v3397, %v3449
    %3451 = vmatmul.f32.gmra.mxu0 %v3347
    %v3452 = vpop.f32.mrf.mxu0
    %v3453 = vadd.f32 %v3400, %v3452
    %3454 = vmatmul.f32.gmra.mxu0 %v3350
    %v3455 = vpop.f32.mrf.mxu0
    %v3456 = vadd.f32 %v3403, %v3455
    %3457 = vmatmul.f32.gmra.mxu0 %v3353
    %v3458 = vpop.f32.mrf.mxu0
    %v3459 = vadd.f32 %v3406, %v3458
    %3460 = vmatmul.f32.gmra.mxu0 %v3356
    %v3461 = vpop.f32.mrf.mxu0
    %v3462 = vadd.f32 %v3409, %v3461
    %3463 = vmatmul.f32.gmra.mxu0 %v3359
    %v3464 = vpop.f32.mrf.mxu0
    %v3465 = vadd.f32 %v3412, %v3464
    %3466 = vmatmul.f32.gmra.mxu0 %v3362
    %v3467 = vpop.f32.mrf.mxu0
    %v3468 = vadd.f32 %v3415, %v3467
    %3469 = vmatmul.f32.gmra.mxu0 %v3365
    %v3470 = vpop.f32.mrf.mxu0
    %v3471 = vadd.f32 %v3418, %v3470
    %3472 = vmatmul.f32.gmra.mxu0 %v3368
    %v3473 = vpop.f32.mrf.mxu0
    %v3474 = vadd.f32 %v3421, %v3473
    %3475 = vmatmul.f32.gmra.mxu0 %v3371
    %v3476 = vpop.f32.mrf.mxu0
    %v3477 = vadd.f32 %v3424, %v3476
    %3478 = vdwg.mxu0
    %v3491 = vrot.slane %v3444, 1
    %v3492 = vrot.slane %v3447, 1
    %v3493 = vsel %vm1286, %v3491, %v3492
    %v3494 = vrot.slane %v3450, 1
    %v3495 = vsel %vm1286, %v3492, %v3494
    %v3496 = vrot.slane %v3453, 1
    %v3497 = vsel %vm1286, %v3494, %v3496
    %v3498 = vrot.slane %v3456, 1
    %v3499 = vsel %vm1286, %v3496, %v3498
    %v3500 = vrot.slane %v3459, 1
    %v3501 = vsel %vm1286, %v3498, %v3500
    %v3502 = vrot.slane %v3462, 1
    %v3503 = vsel %vm1286, %v3500, %v3502
    %v3504 = vrot.slane %v3465, 1
    %v3505 = vsel %vm1286, %v3502, %v3504
    %v3506 = vrot.slane %v3468, 1
    %v3507 = vsel %vm1286, %v3504, %v3506
    %v3508 = vrot.slane %v3471, 1
    %v3509 = vsel %vm1286, %v3506, %v3508
    %v3510 = vrot.slane %v3474, 1
    %v3511 = vsel %vm1286, %v3508, %v3510
    %v3512 = vrot.slane %v3477, 1
    %v3513 = vsel %vm1286, %v3510, %v3512
    %v3514 = vsel %vm1286, %v3512, %v1382
    %3515 = vrot.lane.b32.xlu0 %v3493, 64
    %v3516 = vpop.permute.xlu0 %3515
    %3517 = vrot.lane.b32.xlu0 %v3495, 64
    %v3518 = vpop.permute.xlu0 %3517
    %3519 = vrot.lane.b32.xlu0 %v3497, 64
    %v3520 = vpop.permute.xlu0 %3519
    %3521 = vrot.lane.b32.xlu0 %v3499, 64
    %v3522 = vpop.permute.xlu0 %3521
    %3523 = vrot.lane.b32.xlu0 %v3501, 64
    %v3524 = vpop.permute.xlu0 %3523
    %3525 = vrot.lane.b32.xlu0 %v3503, 64
    %v3526 = vpop.permute.xlu0 %3525
    %3527 = vrot.lane.b32.xlu0 %v3505, 64
    %v3528 = vpop.permute.xlu0 %3527
    %3529 = vrot.lane.b32.xlu0 %v3507, 64
    %v3530 = vpop.permute.xlu0 %3529
    %3531 = vrot.lane.b32.xlu0 %v3509, 64
    %v3532 = vpop.permute.xlu0 %3531
    %3533 = vrot.lane.b32.xlu0 %v3511, 64
    %v3534 = vpop.permute.xlu0 %3533
    %3535 = vrot.lane.b32.xlu0 %v3513, 64
    %v3536 = vpop.permute.xlu0 %3535
    %3537 = vrot.lane.b32.xlu0 %v3514, 64
    %v3538 = vpop.permute.xlu0 %3537
    %v3551 = vrot.slane %v3444, 2
    %v3552 = vrot.slane %v3447, 2
    %v3553 = vsel %vm2207, %v3551, %v3552
    %v3554 = vrot.slane %v3450, 2
    %v3555 = vsel %vm2207, %v3552, %v3554
    %v3556 = vrot.slane %v3453, 2
    %v3557 = vsel %vm2207, %v3554, %v3556
    %v3558 = vrot.slane %v3456, 2
    %v3559 = vsel %vm2207, %v3556, %v3558
    %v3560 = vrot.slane %v3459, 2
    %v3561 = vsel %vm2207, %v3558, %v3560
    %v3562 = vrot.slane %v3462, 2
    %v3563 = vsel %vm2207, %v3560, %v3562
    %v3564 = vrot.slane %v3465, 2
    %v3565 = vsel %vm2207, %v3562, %v3564
    %v3566 = vrot.slane %v3468, 2
    %v3567 = vsel %vm2207, %v3564, %v3566
    %v3568 = vrot.slane %v3471, 2
    %v3569 = vsel %vm2207, %v3566, %v3568
    %v3570 = vrot.slane %v3474, 2
    %v3571 = vsel %vm2207, %v3568, %v3570
    %v3572 = vrot.slane %v3477, 2
    %v3573 = vsel %vm2207, %v3570, %v3572
    %v3574 = vsel %vm2207, %v3572, %v2255
    %v3587 = vrot.slane %v3444, 3
    %v3588 = vrot.slane %v3447, 3
    %v3589 = vsel %vm2281, %v3587, %v3588
    %v3590 = vrot.slane %v3450, 3
    %v3591 = vsel %vm2281, %v3588, %v3590
    %v3592 = vrot.slane %v3453, 3
    %v3593 = vsel %vm2281, %v3590, %v3592
    %v3594 = vrot.slane %v3456, 3
    %v3595 = vsel %vm2281, %v3592, %v3594
    %v3596 = vrot.slane %v3459, 3
    %v3597 = vsel %vm2281, %v3594, %v3596
    %v3598 = vrot.slane %v3462, 3
    %v3599 = vsel %vm2281, %v3596, %v3598
    %v3600 = vrot.slane %v3465, 3
    %v3601 = vsel %vm2281, %v3598, %v3600
    %v3602 = vrot.slane %v3468, 3
    %v3603 = vsel %vm2281, %v3600, %v3602
    %v3604 = vrot.slane %v3471, 3
    %v3605 = vsel %vm2281, %v3602, %v3604
    %v3606 = vrot.slane %v3474, 3
    %v3607 = vsel %vm2281, %v3604, %v3606
    %v3608 = vrot.slane %v3477, 3
    %v3609 = vsel %vm2281, %v3606, %v3608
    %v3610 = vsel %vm2281, %v3608, %v2329
    %3611 = vrot.lane.b32.xlu0 %v3589, 64
    %v3612 = vpop.permute.xlu0 %3611
    %3613 = vrot.lane.b32.xlu0 %v3591, 64
    %v3614 = vpop.permute.xlu0 %3613
    %3615 = vrot.lane.b32.xlu0 %v3593, 64
    %v3616 = vpop.permute.xlu0 %3615
    %3617 = vrot.lane.b32.xlu0 %v3595, 64
    %v3618 = vpop.permute.xlu0 %3617
    %3619 = vrot.lane.b32.xlu0 %v3597, 64
    %v3620 = vpop.permute.xlu0 %3619
    %3621 = vrot.lane.b32.xlu0 %v3599, 64
    %v3622 = vpop.permute.xlu0 %3621
    %3623 = vrot.lane.b32.xlu0 %v3601, 64
    %v3624 = vpop.permute.xlu0 %3623
    %3625 = vrot.lane.b32.xlu0 %v3603, 64
    %v3626 = vpop.permute.xlu0 %3625
    %3627 = vrot.lane.b32.xlu0 %v3605, 64
    %v3628 = vpop.permute.xlu0 %3627
    %3629 = vrot.lane.b32.xlu0 %v3607, 64
    %v3630 = vpop.permute.xlu0 %3629
    %3631 = vrot.lane.b32.xlu0 %v3609, 64
    %v3632 = vpop.permute.xlu0 %3631
    %3633 = vrot.lane.b32.xlu0 %v3610, 64
    %v3634 = vpop.permute.xlu0 %3633
    %v3647 = vsel %vm780, %v3444, %v3516
    %v3648 = vsel %vm780, %v3447, %v3518
    %v3649 = vsel %vm780, %v3450, %v3520
    %v3650 = vsel %vm780, %v3453, %v3522
    %v3651 = vsel %vm780, %v3456, %v3524
    %v3652 = vsel %vm780, %v3459, %v3526
    %v3653 = vsel %vm780, %v3462, %v3528
    %v3654 = vsel %vm780, %v3465, %v3530
    %v3655 = vsel %vm780, %v3468, %v3532
    %v3656 = vsel %vm780, %v3471, %v3534
    %v3657 = vsel %vm780, %v3474, %v3536
    %v3658 = vsel %vm780, %v3477, %v3538
    %v3659 = vsel %vm780, %v3553, %v3612
    %v3660 = vsel %vm780, %v3555, %v3614
    %v3661 = vsel %vm780, %v3557, %v3616
    %v3662 = vsel %vm780, %v3559, %v3618
    %v3663 = vsel %vm780, %v3561, %v3620
    %v3664 = vsel %vm780, %v3563, %v3622
    %v3665 = vsel %vm780, %v3565, %v3624
    %v3666 = vsel %vm780, %v3567, %v3626
    %v3667 = vsel %vm780, %v3569, %v3628
    %v3668 = vsel %vm780, %v3571, %v3630
    %v3669 = vsel %vm780, %v3573, %v3632
    %v3670 = vsel %vm780, %v3574, %v3634
    %v3671 = vld [vmem:[%s13] sm:$0xff]
    %v3672 = vld [vmem:[%s13 + $0x8] sm:$0xff]
    %v3673 = vld [vmem:[%s13 + $0x10] sm:$0xff]
    %v3674 = vld [vmem:[%s13 + $0x18] sm:$0xff]
    %v3675 = vld [vmem:[%s13 + $0x20] sm:$0xff]
    %v3676 = vld [vmem:[%s13 + $0x28] sm:$0xff]
    %v3677 = vld [vmem:[%s13 + $0x30] sm:$0xff]
    %v3678 = vld [vmem:[%s13 + $0x38] sm:$0xff]
    %v3679 = vld [vmem:[%s13 + $0x40] sm:$0xff]
    %v3680 = vld [vmem:[%s13 + $0x48] sm:$0xff]
    %v3681 = vld [vmem:[%s13 + $0x50] sm:$0xff]
    %v3682 = vld [vmem:[%s13 + $0x58] sm:$0xff]
    %v3683 = vld [vmem:[%s13 + $0x60] sm:$0xff]
    %v3684 = vld [vmem:[%s13 + $0x68] sm:$0xff]
    %v3685 = vld [vmem:[%s13 + $0x70] sm:$0xff]
    %v3686 = vld [vmem:[%s13 + $0x78] sm:$0xff]
    %v3687 = vld [vmem:[%s13 + $0x80] sm:$0xff]
    %v3688 = vld [vmem:[%s13 + $0x88] sm:$0xff]
    %v3689 = vld [vmem:[%s13 + $0x90] sm:$0xff]
    %v3690 = vld [vmem:[%s13 + $0x98] sm:$0xff]
    %v3691 = vld [vmem:[%s13 + $0xa0] sm:$0xff]
    %v3692 = vld [vmem:[%s13 + $0xa8] sm:$0xff]
    %v3693 = vld [vmem:[%s13 + $0xb0] sm:$0xff]
    %v3694 = vld [vmem:[%s13 + $0xb8] sm:$0xff]
    %v3695 = vld [vmem:[%s13 + $0xc0] sm:$0xff]
    %v3696 = vld [vmem:[%s13 + $0xc8] sm:$0xff]
    %v3697 = vld [vmem:[%s13 + $0xd0] sm:$0xff]
    %v3698 = vld [vmem:[%s13 + $0xd8] sm:$0xff]
    %v3699 = vld [vmem:[%s13 + $0xe0] sm:$0xff]
    %v3700 = vld [vmem:[%s13 + $0xe8] sm:$0xff]
    %v3701 = vld [vmem:[%s13 + $0xf0] sm:$0xff]
    %v3702 = vld [vmem:[%s13 + $0xf8] sm:$0xff]
    %v3703 = vld [vmem:[%s14] sm:$0x1]
    %v3705 = vperm.slane %v3703, 0
    %3707 = vmatpush.msra.mxu0 %v3686
    %3708 = vmatpush.msra.mxu0 %v3685
    %3709 = vmatpush.msra.mxu0 %v3684
    %3710 = vmatpush.msra.mxu0 %v3683
    %3711 = vmatpush.msra.mxu0 %v3682
    %3712 = vmatpush.msra.mxu0 %v3681
    %3713 = vmatpush.msra.mxu0 %v3680
    %3714 = vmatpush.msra.mxu0 %v3679
    %3715 = vmatpush.msra.mxu0 %v3678
    %3716 = vmatpush.msra.mxu0 %v3677
    %3717 = vmatpush.msra.mxu0 %v3676
    %3718 = vmatpush.msra.mxu0 %v3675
    %3719 = vmatpush.msra.mxu0 %v3674
    %3720 = vmatpush.msra.mxu0 %v3673
    %3721 = vmatpush.msra.mxu0 %v3672
    %3722 = vmatpush.msra.mxu0 %v3671
    %3723 = vmatmul.f32.gmra.mxu0 %v3647
    %v3724 = vpop.f32.mrf.mxu0
    %v3725 = vadd.f32 %v3705, %v3724
    %3726 = vmatmul.f32.gmra.mxu0 %v3648
    %v3727 = vpop.f32.mrf.mxu0
    %v3728 = vadd.f32 %v3705, %v3727
    %3729 = vmatmul.f32.gmra.mxu0 %v3649
    %v3730 = vpop.f32.mrf.mxu0
    %v3731 = vadd.f32 %v3705, %v3730
    %3732 = vmatmul.f32.gmra.mxu0 %v3650
    %v3733 = vpop.f32.mrf.mxu0
    %v3734 = vadd.f32 %v3705, %v3733
    %3735 = vmatmul.f32.gmra.mxu0 %v3651
    %v3736 = vpop.f32.mrf.mxu0
    %v3737 = vadd.f32 %v3705, %v3736
    %3738 = vmatmul.f32.gmra.mxu0 %v3652
    %v3739 = vpop.f32.mrf.mxu0
    %v3740 = vadd.f32 %v3705, %v3739
    %3741 = vmatmul.f32.gmra.mxu0 %v3653
    %v3742 = vpop.f32.mrf.mxu0
    %v3743 = vadd.f32 %v3705, %v3742
    %3744 = vmatmul.f32.gmra.mxu0 %v3654
    %v3745 = vpop.f32.mrf.mxu0
    %v3746 = vadd.f32 %v3705, %v3745
    %3747 = vmatmul.f32.gmra.mxu0 %v3655
    %v3748 = vpop.f32.mrf.mxu0
    %v3749 = vadd.f32 %v3705, %v3748
    %3750 = vmatmul.f32.gmra.mxu0 %v3656
    %v3751 = vpop.f32.mrf.mxu0
    %v3752 = vadd.f32 %v3705, %v3751
    %3753 = vmatmul.f32.gmra.mxu0 %v3657
    %v3754 = vpop.f32.mrf.mxu0
    %v3755 = vadd.f32 %v3705, %v3754
    %3756 = vmatmul.f32.gmra.mxu0 %v3658
    %v3757 = vpop.f32.mrf.mxu0
    %v3758 = vadd.f32 %v3705, %v3757
    %3759 = vdwg.mxu0
    %3760 = vmatpush.msra.mxu0 %v3702
    %3761 = vmatpush.msra.mxu0 %v3701
    %3762 = vmatpush.msra.mxu0 %v3700
    %3763 = vmatpush.msra.mxu0 %v3699
    %3764 = vmatpush.msra.mxu0 %v3698
    %3765 = vmatpush.msra.mxu0 %v3697
    %3766 = vmatpush.msra.mxu0 %v3696
    %3767 = vmatpush.msra.mxu0 %v3695
    %3768 = vmatpush.msra.mxu0 %v3694
    %3769 = vmatpush.msra.mxu0 %v3693
    %3770 = vmatpush.msra.mxu0 %v3692
    %3771 = vmatpush.msra.mxu0 %v3691
    %3772 = vmatpush.msra.mxu0 %v3690
    %3773 = vmatpush.msra.mxu0 %v3689
    %3774 = vmatpush.msra.mxu0 %v3688
    %3775 = vmatpush.msra.mxu0 %v3687
    %3776 = vmatmul.f32.gmra.mxu0 %v3659
    %v3777 = vpop.f32.mrf.mxu0
    %v3778 = vadd.f32 %v3725, %v3777
    %3779 = vmatmul.f32.gmra.mxu0 %v3660
    %v3780 = vpop.f32.mrf.mxu0
    %v3781 = vadd.f32 %v3728, %v3780
    %3782 = vmatmul.f32.gmra.mxu0 %v3661
    %v3783 = vpop.f32.mrf.mxu0
    %v3784 = vadd.f32 %v3731, %v3783
    %3785 = vmatmul.f32.gmra.mxu0 %v3662
    %v3786 = vpop.f32.mrf.mxu0
    %v3787 = vadd.f32 %v3734, %v3786
    %3788 = vmatmul.f32.gmra.mxu0 %v3663
    %v3789 = vpop.f32.mrf.mxu0
    %v3790 = vadd.f32 %v3737, %v3789
    %3791 = vmatmul.f32.gmra.mxu0 %v3664
    %v3792 = vpop.f32.mrf.mxu0
    %v3793 = vadd.f32 %v3740, %v3792
    %3794 = vmatmul.f32.gmra.mxu0 %v3665
    %v3795 = vpop.f32.mrf.mxu0
    %v3796 = vadd.f32 %v3743, %v3795
    %3797 = vmatmul.f32.gmra.mxu0 %v3666
    %v3798 = vpop.f32.mrf.mxu0
    %v3799 = vadd.f32 %v3746, %v3798
    %3800 = vmatmul.f32.gmra.mxu0 %v3667
    %v3801 = vpop.f32.mrf.mxu0
    %v3802 = vadd.f32 %v3749, %v3801
    %3803 = vmatmul.f32.gmra.mxu0 %v3668
    %v3804 = vpop.f32.mrf.mxu0
    %v3805 = vadd.f32 %v3752, %v3804
    %3806 = vmatmul.f32.gmra.mxu0 %v3669
    %v3807 = vpop.f32.mrf.mxu0
    %v3808 = vadd.f32 %v3755, %v3807
    %3809 = vmatmul.f32.gmra.mxu0 %v3670
    %v3810 = vpop.f32.mrf.mxu0
    %v3811 = vadd.f32 %v3758, %v3810
    %3812 = vdwg.mxu0
    %v3813 = vld [vmem:[%s17] sm:$0xff]
    %v3814 = vld [vmem:[%s17 + $0x8] sm:$0xff]
    %v3815 = vld [vmem:[%s17 + $0x10] sm:$0xff]
    %v3816 = vld [vmem:[%s17 + $0x18] sm:$0xff]
    %v3817 = vld [vmem:[%s17 + $0x20] sm:$0xff]
    %v3818 = vld [vmem:[%s17 + $0x28] sm:$0xff]
    %v3819 = vld [vmem:[%s17 + $0x30] sm:$0xff]
    %v3820 = vld [vmem:[%s17 + $0x38] sm:$0xff]
    %v3821 = vld [vmem:[%s17 + $0x40] sm:$0xff]
    %v3822 = vld [vmem:[%s17 + $0x48] sm:$0xff]
    %v3823 = vld [vmem:[%s17 + $0x50] sm:$0xff]
    %v3824 = vld [vmem:[%s17 + $0x58] sm:$0xff]
    %3826 = vset.pattern.permute.xlu0 0
    %3827 = vperm.xlu0 %3826, %v3813
    %v3828 = vpop.permute.xlu0 %3827
    %3831 = vset.pattern.permute.xlu0 0
    %3832 = vperm.xlu0 %3831, %v3814
    %v3833 = vpop.permute.xlu0 %3832
    %3836 = vset.pattern.permute.xlu0 0
    %3837 = vperm.xlu0 %3836, %v3815
    %v3838 = vpop.permute.xlu0 %3837
    %3841 = vset.pattern.permute.xlu0 0
    %3842 = vperm.xlu0 %3841, %v3816
    %v3843 = vpop.permute.xlu0 %3842
    %3846 = vset.pattern.permute.xlu0 0
    %3847 = vperm.xlu0 %3846, %v3817
    %v3848 = vpop.permute.xlu0 %3847
    %3851 = vset.pattern.permute.xlu0 0
    %3852 = vperm.xlu0 %3851, %v3818
    %v3853 = vpop.permute.xlu0 %3852
    %3856 = vset.pattern.permute.xlu0 0
    %3857 = vperm.xlu0 %3856, %v3819
    %v3858 = vpop.permute.xlu0 %3857
    %3861 = vset.pattern.permute.xlu0 0
    %3862 = vperm.xlu0 %3861, %v3820
    %v3863 = vpop.permute.xlu0 %3862
    %3866 = vset.pattern.permute.xlu0 0
    %3867 = vperm.xlu0 %3866, %v3821
    %v3868 = vpop.permute.xlu0 %3867
    %3871 = vset.pattern.permute.xlu0 0
    %3872 = vperm.xlu0 %3871, %v3822
    %v3873 = vpop.permute.xlu0 %3872
    %3876 = vset.pattern.permute.xlu0 0
    %3877 = vperm.xlu0 %3876, %v3823
    %v3878 = vpop.permute.xlu0 %3877
    %3881 = vset.pattern.permute.xlu0 0
    %3882 = vperm.xlu0 %3881, %v3824
    %v3883 = vpop.permute.xlu0 %3882
    %v3885 = vmul.f32 %v3778, %v3828
    %v3886 = vmul.f32 %v3781, %v3833
    %v3887 = vmul.f32 %v3784, %v3838
    %v3888 = vmul.f32 %v3787, %v3843
    %v3889 = vmul.f32 %v3790, %v3848
    %v3890 = vmul.f32 %v3793, %v3853
    %v3891 = vmul.f32 %v3796, %v3858
    %v3892 = vmul.f32 %v3799, %v3863
    %v3893 = vmul.f32 %v3802, %v3868
    %v3894 = vmul.f32 %v3805, %v3873
    %v3895 = vmul.f32 %v3808, %v3878
    %v3896 = vmul.f32 %v3811, %v3883
    %v3897 = vsel %vm780, %v3885, 0.0
    %v3898 = vsel %vm780, %v3886, 0.0
    %v3899 = vadd.f32 %v3897, %v3898
    %v3900 = vsel %vm780, %v3887, 0.0
    %v3901 = vadd.f32 %v3899, %v3900
    %v3902 = vsel %vm780, %v3888, 0.0
    %v3903 = vadd.f32 %v3901, %v3902
    %v3904 = vsel %vm780, %v3889, 0.0
    %v3905 = vadd.f32 %v3903, %v3904
    %v3906 = vsel %vm780, %v3890, 0.0
    %v3907 = vadd.f32 %v3905, %v3906
    %v3908 = vsel %vm780, %v3891, 0.0
    %v3909 = vadd.f32 %v3907, %v3908
    %v3910 = vsel %vm780, %v3892, 0.0
    %v3911 = vadd.f32 %v3909, %v3910
    %v3912 = vrot.slane %v3911, 4
    %v3913 = vadd.f32 %v3911, %v3912
    %v3914 = vrot.slane %v3913, 2
    %v3915 = vadd.f32 %v3913, %v3914
    %v3916 = vrot.slane %v3915, 1
    %v3917 = vadd.f32 %v3915, %v3916
    %v3918 = vmul.f32 %v3885, %v3885
    %v3919 = vmul.f32 %v3886, %v3886
    %v3920 = vmul.f32 %v3887, %v3887
    %v3921 = vmul.f32 %v3888, %v3888
    %v3922 = vmul.f32 %v3889, %v3889
    %v3923 = vmul.f32 %v3890, %v3890
    %v3924 = vmul.f32 %v3891, %v3891
    %v3925 = vmul.f32 %v3892, %v3892
    %v3926 = vsel %vm780, %v3918, 0.0
    %v3927 = vsel %vm780, %v3919, 0.0
    %v3928 = vadd.f32 %v3926, %v3927
    %v3929 = vsel %vm780, %v3920, 0.0
    %v3930 = vadd.f32 %v3928, %v3929
    %v3931 = vsel %vm780, %v3921, 0.0
    %v3932 = vadd.f32 %v3930, %v3931
    %v3933 = vsel %vm780, %v3922, 0.0
    %v3934 = vadd.f32 %v3932, %v3933
    %v3935 = vsel %vm780, %v3923, 0.0
    %v3936 = vadd.f32 %v3934, %v3935
    %v3937 = vsel %vm780, %v3924, 0.0
    %v3938 = vadd.f32 %v3936, %v3937
    %v3939 = vsel %vm780, %v3925, 0.0
    %v3940 = vadd.f32 %v3938, %v3939
    %v3941 = vrot.slane %v3940, 4
    %v3942 = vadd.f32 %v3940, %v3941
    %v3943 = vrot.slane %v3942, 2
    %v3944 = vadd.f32 %v3942, %v3943
    %v3945 = vrot.slane %v3944, 1
    %v3946 = vadd.f32 %v3944, %v3945
    %v3947 = vmul.f32 %v3917, 0.025
    %v3948 = vmul.f32 %v3946, 0.025
    %v3949 = vmul.f32 %v3947, %v3947
    %v3950 = vsub.f32 %v3948, %v3949
    %v3951 = vmax.f32 %v3950, 0.0
    %v3952 = vld [vmem:[%s15] sm:$0x1]
    %v3953 = vadd.f32 %v3951, 1e-05
    %v3954 = vrsqrt.pop %v3953
    %v3955 = vmul.f32 %v3954, %v3953
    %v3956 = vmul.f32 %v3955, %v3954
    %v3957 = vmul.f32 0.5, %v3956
    %v3958 = vsub.f32 1.5, %v3957
    %v3959 = vmul.f32 %v3954, %v3958
    %vm3960 = vweird.f32 %v3953
    %vm3961 = vweird.f32 %v3954
    %vm3962 = vmor %vm3960, %vm3961
    %v3963 = vsel %vm3962, %v3954, %v3959
    %v3964 = vmul.f32 %v3952, %v3963
    %v3965 = vld [vmem:[%s16] sm:$0x1]
    %v3966 = vmul.f32 %v3947, %v3964
    %v3967 = vsub.f32 %v3965, %v3966
    %v3969 = vperm.slane %v3964, 0
    %v3971 = vmul.f32 %v3885, %v3969
    %v3972 = vmul.f32 %v3886, %v3969
    %v3973 = vmul.f32 %v3887, %v3969
    %v3974 = vmul.f32 %v3888, %v3969
    %v3975 = vmul.f32 %v3889, %v3969
    %v3976 = vmul.f32 %v3890, %v3969
    %v3977 = vmul.f32 %v3891, %v3969
    %v3978 = vmul.f32 %v3892, %v3969
    %v3980 = vperm.slane %v3967, 0
    %v3982 = vadd.f32 %v3971, %v3980
    %v3983 = vadd.f32 %v3972, %v3980
    %v3984 = vadd.f32 %v3973, %v3980
    %v3985 = vadd.f32 %v3974, %v3980
    %v3986 = vadd.f32 %v3975, %v3980
    %v3987 = vadd.f32 %v3976, %v3980
    %v3988 = vadd.f32 %v3977, %v3980
    %v3989 = vadd.f32 %v3978, %v3980
    %v3990 = vmax.f32 %v3982, 0.0
    %v3991 = vmax.f32 %v3983, 0.0
    %v3992 = vmax.f32 %v3984, 0.0
    %v3993 = vmax.f32 %v3985, 0.0
    %v3994 = vmax.f32 %v3986, 0.0
    %v3995 = vmax.f32 %v3987, 0.0
    %v3996 = vmax.f32 %v3988, 0.0
    %v3997 = vmax.f32 %v3989, 0.0
    %v3998 = vsel %vm780, %v3893, 0.0
    %v3999 = vsel %vm780, %v3894, 0.0
    %v4000 = vadd.f32 %v3998, %v3999
    %v4001 = vsel %vm780, %v3895, 0.0
    %v4002 = vadd.f32 %v4000, %v4001
    %v4003 = vsel %vm780, %v3896, 0.0
    %v4004 = vadd.f32 %v4002, %v4003
    %v4005 = vrot.slane %v4004, 4
    %v4006 = vadd.f32 %v4004, %v4005
    %v4007 = vrot.slane %v4006, 2
    %v4008 = vadd.f32 %v4006, %v4007
    %v4009 = vrot.slane %v4008, 1
    %v4010 = vadd.f32 %v4008, %v4009
    %v4011 = vmul.f32 %v3893, %v3893
    %v4012 = vmul.f32 %v3894, %v3894
    %v4013 = vmul.f32 %v3895, %v3895
    %v4014 = vmul.f32 %v3896, %v3896
    %v4015 = vsel %vm780, %v4011, 0.0
    %v4016 = vsel %vm780, %v4012, 0.0
    %v4017 = vadd.f32 %v4015, %v4016
    %v4018 = vsel %vm780, %v4013, 0.0
    %v4019 = vadd.f32 %v4017, %v4018
    %v4020 = vsel %vm780, %v4014, 0.0
    %v4021 = vadd.f32 %v4019, %v4020
    %v4022 = vrot.slane %v4021, 4
    %v4023 = vadd.f32 %v4021, %v4022
    %v4024 = vrot.slane %v4023, 2
    %v4025 = vadd.f32 %v4023, %v4024
    %v4026 = vrot.slane %v4025, 1
    %v4027 = vadd.f32 %v4025, %v4026
    %v4028 = vmul.f32 %v4010, 0.05
    %v4029 = vmul.f32 %v4027, 0.05
    %v4030 = vmul.f32 %v4028, %v4028
    %v4031 = vsub.f32 %v4029, %v4030
    %v4032 = vmax.f32 %v4031, 0.0
    %v4033 = vadd.f32 %v4032, 1e-05
    %v4034 = vrsqrt.pop %v4033
    %v4035 = vmul.f32 %v4034, %v4033
    %v4036 = vmul.f32 %v4035, %v4034
    %v4037 = vmul.f32 0.5, %v4036
    %v4038 = vsub.f32 1.5, %v4037
    %v4039 = vmul.f32 %v4034, %v4038
    %vm4040 = vweird.f32 %v4033
    %vm4041 = vweird.f32 %v4034
    %vm4042 = vmor %vm4040, %vm4041
    %v4043 = vsel %vm4042, %v4034, %v4039
    %v4044 = vmul.f32 %v3952, %v4043
    %v4045 = vmul.f32 %v4028, %v4044
    %v4046 = vsub.f32 %v3965, %v4045
    %v4048 = vperm.slane %v4044, 0
    %v4050 = vmul.f32 %v3893, %v4048
    %v4051 = vmul.f32 %v3894, %v4048
    %v4052 = vmul.f32 %v3895, %v4048
    %v4053 = vmul.f32 %v3896, %v4048
    %v4055 = vperm.slane %v4046, 0
    %v4057 = vadd.f32 %v4050, %v4055
    %v4058 = vadd.f32 %v4051, %v4055
    %v4059 = vadd.f32 %v4052, %v4055
    %v4060 = vadd.f32 %v4053, %v4055
    %v4061 = vmax.f32 %v4057, 0.0
    %v4062 = vmax.f32 %v4058, 0.0
    %v4063 = vmax.f32 %v4059, 0.0
    %v4064 = vmax.f32 %v4060, 0.0
    %v4077 = vrot.slane %v3990, 1
    %v4078 = vrot.slane %v3991, 1
    %v4079 = vsel %vm1286, %v4077, %v4078
    %v4080 = vrot.slane %v3992, 1
    %v4081 = vsel %vm1286, %v4078, %v4080
    %v4082 = vrot.slane %v3993, 1
    %v4083 = vsel %vm1286, %v4080, %v4082
    %v4084 = vrot.slane %v3994, 1
    %v4085 = vsel %vm1286, %v4082, %v4084
    %v4086 = vrot.slane %v3995, 1
    %v4087 = vsel %vm1286, %v4084, %v4086
    %v4088 = vrot.slane %v3996, 1
    %v4089 = vsel %vm1286, %v4086, %v4088
    %v4090 = vrot.slane %v3997, 1
    %v4091 = vsel %vm1286, %v4088, %v4090
    %v4092 = vrot.slane %v4061, 1
    %v4093 = vsel %vm1286, %v4090, %v4092
    %v4094 = vrot.slane %v4062, 1
    %v4095 = vsel %vm1286, %v4092, %v4094
    %v4096 = vrot.slane %v4063, 1
    %v4097 = vsel %vm1286, %v4094, %v4096
    %v4098 = vrot.slane %v4064, 1
    %v4099 = vsel %vm1286, %v4096, %v4098
    %v4100 = vsel %vm1286, %v4098, %v1382
    %v4113 = vmax.f32 %v3990, %v4079
    %v4114 = vmax.f32 %v3991, %v4081
    %v4115 = vmax.f32 %v3992, %v4083
    %v4116 = vmax.f32 %v3993, %v4085
    %v4117 = vmax.f32 %v3994, %v4087
    %v4118 = vmax.f32 %v3995, %v4089
    %v4119 = vmax.f32 %v3996, %v4091
    %v4120 = vmax.f32 %v3997, %v4093
    %v4121 = vmax.f32 %v4061, %v4095
    %v4122 = vmax.f32 %v4062, %v4097
    %v4123 = vmax.f32 %v4063, %v4099
    %v4124 = vmax.f32 %v4064, %v4100
    %v4125 = vld [vmem:[%s18] sm:$0xff]
    %v4126 = vld [vmem:[%s18 + $0x8] sm:$0xff]
    %v4127 = vld [vmem:[%s18 + $0x10] sm:$0xff]
    %v4128 = vld [vmem:[%s18 + $0x18] sm:$0xff]
    %v4129 = vld [vmem:[%s18 + $0x20] sm:$0xff]
    %v4130 = vld [vmem:[%s18 + $0x28] sm:$0xff]
    %4131 = vset.pattern.permute.xlu0 0
    %4132 = vperm.xlu0 %4131, %v4125
    %v4133 = vpop.permute.xlu0 %4132
    %4134 = vset.pattern.permute.xlu0 0
    %4135 = vperm.xlu0 %4134, %v4126
    %v4136 = vpop.permute.xlu0 %4135
    %4137 = vset.pattern.permute.xlu0 0
    %4138 = vperm.xlu0 %4137, %v4127
    %v4139 = vpop.permute.xlu0 %4138
    %4140 = vset.pattern.permute.xlu0 0
    %4141 = vperm.xlu0 %4140, %v4128
    %v4142 = vpop.permute.xlu0 %4141
    %4143 = vset.pattern.permute.xlu0 0
    %4144 = vperm.xlu0 %4143, %v4129
    %v4145 = vpop.permute.xlu0 %4144
    %4146 = vset.pattern.permute.xlu0 0
    %4147 = vperm.xlu0 %4146, %v4130
    %v4148 = vpop.permute.xlu0 %4147
    %vm4149 = vcmp.eq.s32.totalorder %v1481, %v4133
    %vm4150 = vcmp.eq.s32.totalorder %v1481, %v4136
    %vm4151 = vcmp.eq.s32.totalorder %v1481, %v4139
    %vm4152 = vcmp.eq.s32.totalorder %v1481, %v4142
    %vm4153 = vcmp.eq.s32.totalorder %v1481, %v4145
    %vm4154 = vcmp.eq.s32.totalorder %v1481, %v4148
    %v4155 = vsel %vm4149, 1, 0
    %v4156 = vsel %vm4150, 1, 0
    %v4157 = vsel %vm4151, 1, 0
    %v4158 = vsel %vm4152, 1, 0
    %v4159 = vsel %vm4153, 1, 0
    %v4160 = vsel %vm4154, 1, 0
    %v4161 = vcvt.s32.f32 %v4155
    %v4162 = vcvt.s32.f32 %v4156
    %v4163 = vcvt.s32.f32 %v4157
    %v4164 = vcvt.s32.f32 %v4158
    %v4165 = vcvt.s32.f32 %v4159
    %v4166 = vcvt.s32.f32 %v4160
    %vm4167 = vcmask 785408
    %v4169 = vsel %vm4167, %v4161, 0
    %v4172 = vsel %vm4167, %v4162, 0
    %v4175 = vsel %vm4167, %v4163, 0
    %v4178 = vsel %vm4167, %v4164, 0
    %v4181 = vsel %vm4167, %v4165, 0
    %v4184 = vsel %vm4167, %v4166, 0
    %4186 = vmatpush.msra.mxu0 0.0
    %4187 = vmatpush.msra.mxu0 0.0
    %4188 = vmatpush.msra.mxu0 0.0
    %4189 = vmatpush.msra.mxu0 0.0
    %4190 = vmatpush.msra.mxu0 %v4124
    %4191 = vmatpush.msra.mxu0 %v4123
    %4192 = vmatpush.msra.mxu0 %v4122
    %4193 = vmatpush.msra.mxu0 %v4121
    %4194 = vmatpush.msra.mxu0 %v4120
    %4195 = vmatpush.msra.mxu0 %v4119
    %4196 = vmatpush.msra.mxu0 %v4118
    %4197 = vmatpush.msra.mxu0 %v4117
    %4198 = vmatpush.msra.mxu0 %v4116
    %4199 = vmatpush.msra.mxu0 %v4115
    %4200 = vmatpush.msra.mxu0 %v4114
    %4201 = vmatpush.msra.mxu0 %v4113
    %4202 = vmatmul.f32.gmra.mxu0 %v4169
    %v4203 = vpop.f32.mrf.mxu0
    %v4204 = vadd.f32 0.0, %v4203
    %4205 = vmatmul.f32.gmra.mxu0 %v4172
    %v4206 = vpop.f32.mrf.mxu0
    %v4207 = vadd.f32 0.0, %v4206
    %4208 = vmatmul.f32.gmra.mxu0 %v4175
    %v4209 = vpop.f32.mrf.mxu0
    %v4210 = vadd.f32 0.0, %v4209
    %4211 = vmatmul.f32.gmra.mxu0 %v4178
    %v4212 = vpop.f32.mrf.mxu0
    %v4213 = vadd.f32 0.0, %v4212
    %4214 = vmatmul.f32.gmra.mxu0 %v4181
    %v4215 = vpop.f32.mrf.mxu0
    %v4216 = vadd.f32 0.0, %v4215
    %4217 = vmatmul.f32.gmra.mxu0 %v4184
    %v4218 = vpop.f32.mrf.mxu0
    %v4219 = vadd.f32 0.0, %v4218
    %4220 = vdwg.mxu0
    %v4227 = vrot.slane %v4204, 1
    %v4228 = vrot.slane %v4207, 1
    %v4229 = vsel %vm1286, %v4227, %v4228
    %v4230 = vrot.slane %v4210, 1
    %v4231 = vsel %vm1286, %v4228, %v4230
    %v4232 = vrot.slane %v4213, 1
    %v4233 = vsel %vm1286, %v4230, %v4232
    %v4234 = vrot.slane %v4216, 1
    %v4235 = vsel %vm1286, %v4232, %v4234
    %v4236 = vrot.slane %v4219, 1
    %v4237 = vsel %vm1286, %v4234, %v4236
    %v4238 = vsel %vm1286, %v4236, %v1382
    %4239 = vrot.lane.b32.xlu0 %v4229, 64
    %v4240 = vpop.permute.xlu0 %4239
    %4241 = vrot.lane.b32.xlu0 %v4231, 64
    %v4242 = vpop.permute.xlu0 %4241
    %4243 = vrot.lane.b32.xlu0 %v4233, 64
    %v4244 = vpop.permute.xlu0 %4243
    %4245 = vrot.lane.b32.xlu0 %v4235, 64
    %v4246 = vpop.permute.xlu0 %4245
    %4247 = vrot.lane.b32.xlu0 %v4237, 64
    %v4248 = vpop.permute.xlu0 %4247
    %4249 = vrot.lane.b32.xlu0 %v4238, 64
    %v4250 = vpop.permute.xlu0 %4249
    %v4257 = vrot.slane %v4204, 2
    %v4258 = vrot.slane %v4207, 2
    %v4259 = vsel %vm2207, %v4257, %v4258
    %v4260 = vrot.slane %v4210, 2
    %v4261 = vsel %vm2207, %v4258, %v4260
    %v4262 = vrot.slane %v4213, 2
    %v4263 = vsel %vm2207, %v4260, %v4262
    %v4264 = vrot.slane %v4216, 2
    %v4265 = vsel %vm2207, %v4262, %v4264
    %v4266 = vrot.slane %v4219, 2
    %v4267 = vsel %vm2207, %v4264, %v4266
    %v4268 = vsel %vm2207, %v4266, %v2255
    %v4275 = vrot.slane %v4204, 3
    %v4276 = vrot.slane %v4207, 3
    %v4277 = vsel %vm2281, %v4275, %v4276
    %v4278 = vrot.slane %v4210, 3
    %v4279 = vsel %vm2281, %v4276, %v4278
    %v4280 = vrot.slane %v4213, 3
    %v4281 = vsel %vm2281, %v4278, %v4280
    %v4282 = vrot.slane %v4216, 3
    %v4283 = vsel %vm2281, %v4280, %v4282
    %v4284 = vrot.slane %v4219, 3
    %v4285 = vsel %vm2281, %v4282, %v4284
    %v4286 = vsel %vm2281, %v4284, %v2329
    %4287 = vrot.lane.b32.xlu0 %v4277, 64
    %v4288 = vpop.permute.xlu0 %4287
    %4289 = vrot.lane.b32.xlu0 %v4279, 64
    %v4290 = vpop.permute.xlu0 %4289
    %4291 = vrot.lane.b32.xlu0 %v4281, 64
    %v4292 = vpop.permute.xlu0 %4291
    %4293 = vrot.lane.b32.xlu0 %v4283, 64
    %v4294 = vpop.permute.xlu0 %4293
    %4295 = vrot.lane.b32.xlu0 %v4285, 64
    %v4296 = vpop.permute.xlu0 %4295
    %4297 = vrot.lane.b32.xlu0 %v4286, 64
    %v4298 = vpop.permute.xlu0 %4297
    %v4305 = vsel %vm780, %v4204, %v4240
    %v4306 = vsel %vm780, %v4207, %v4242
    %v4307 = vsel %vm780, %v4210, %v4244
    %v4308 = vsel %vm780, %v4213, %v4246
    %v4309 = vsel %vm780, %v4216, %v4248
    %v4310 = vsel %vm780, %v4219, %v4250
    %v4311 = vsel %vm780, %v4259, %v4288
    %v4312 = vsel %vm780, %v4261, %v4290
    %v4313 = vsel %vm780, %v4263, %v4292
    %v4314 = vsel %vm780, %v4265, %v4294
    %v4315 = vsel %vm780, %v4267, %v4296
    %v4316 = vsel %vm780, %v4268, %v4298
    %v4317 = vld [vmem:[%s19] sm:$0xff]
    %v4318 = vld [vmem:[%s19 + $0x8] sm:$0xff]
    %v4319 = vld [vmem:[%s19 + $0x10] sm:$0xff]
    %v4320 = vld [vmem:[%s19 + $0x18] sm:$0xff]
    %v4321 = vld [vmem:[%s19 + $0x20] sm:$0xff]
    %v4322 = vld [vmem:[%s19 + $0x28] sm:$0xff]
    %v4323 = vld [vmem:[%s19 + $0x30] sm:$0xff]
    %v4324 = vld [vmem:[%s19 + $0x38] sm:$0xff]
    %v4325 = vld [vmem:[%s19 + $0x40] sm:$0xff]
    %v4326 = vld [vmem:[%s19 + $0x48] sm:$0xff]
    %v4327 = vld [vmem:[%s19 + $0x50] sm:$0xff]
    %v4328 = vld [vmem:[%s19 + $0x58] sm:$0xff]
    %v4329 = vld [vmem:[%s19 + $0x60] sm:$0xff]
    %v4330 = vld [vmem:[%s19 + $0x68] sm:$0xff]
    %v4331 = vld [vmem:[%s19 + $0x70] sm:$0xff]
    %v4332 = vld [vmem:[%s19 + $0x78] sm:$0xff]
    %v4333 = vld [vmem:[%s19 + $0x80] sm:$0xff]
    %v4334 = vld [vmem:[%s19 + $0x88] sm:$0xff]
    %v4335 = vld [vmem:[%s19 + $0x90] sm:$0xff]
    %v4336 = vld [vmem:[%s19 + $0x98] sm:$0xff]
    %v4337 = vld [vmem:[%s19 + $0xa0] sm:$0xff]
    %v4338 = vld [vmem:[%s19 + $0xa8] sm:$0xff]
    %v4339 = vld [vmem:[%s19 + $0xb0] sm:$0xff]
    %v4340 = vld [vmem:[%s19 + $0xb8] sm:$0xff]
    %v4341 = vld [vmem:[%s19 + $0xc0] sm:$0xff]
    %v4342 = vld [vmem:[%s19 + $0xc8] sm:$0xff]
    %v4343 = vld [vmem:[%s19 + $0xd0] sm:$0xff]
    %v4344 = vld [vmem:[%s19 + $0xd8] sm:$0xff]
    %v4345 = vld [vmem:[%s19 + $0xe0] sm:$0xff]
    %v4346 = vld [vmem:[%s19 + $0xe8] sm:$0xff]
    %v4347 = vld [vmem:[%s19 + $0xf0] sm:$0xff]
    %v4348 = vld [vmem:[%s19 + $0xf8] sm:$0xff]
    %v4349 = vld [vmem:[%s20] sm:$0x1]
    %v4351 = vperm.slane %v4349, 0
    %4353 = vmatpush.msra.mxu0 %v4332
    %4354 = vmatpush.msra.mxu0 %v4331
    %4355 = vmatpush.msra.mxu0 %v4330
    %4356 = vmatpush.msra.mxu0 %v4329
    %4357 = vmatpush.msra.mxu0 %v4328
    %4358 = vmatpush.msra.mxu0 %v4327
    %4359 = vmatpush.msra.mxu0 %v4326
    %4360 = vmatpush.msra.mxu0 %v4325
    %4361 = vmatpush.msra.mxu0 %v4324
    %4362 = vmatpush.msra.mxu0 %v4323
    %4363 = vmatpush.msra.mxu0 %v4322
    %4364 = vmatpush.msra.mxu0 %v4321
    %4365 = vmatpush.msra.mxu0 %v4320
    %4366 = vmatpush.msra.mxu0 %v4319
    %4367 = vmatpush.msra.mxu0 %v4318
    %4368 = vmatpush.msra.mxu0 %v4317
    %4369 = vmatmul.f32.gmra.mxu0 %v4305
    %v4370 = vpop.f32.mrf.mxu0
    %v4371 = vadd.f32 %v4351, %v4370
    %4372 = vmatmul.f32.gmra.mxu0 %v4306
    %v4373 = vpop.f32.mrf.mxu0
    %v4374 = vadd.f32 %v4351, %v4373
    %4375 = vmatmul.f32.gmra.mxu0 %v4307
    %v4376 = vpop.f32.mrf.mxu0
    %v4377 = vadd.f32 %v4351, %v4376
    %4378 = vmatmul.f32.gmra.mxu0 %v4308
    %v4379 = vpop.f32.mrf.mxu0
    %v4380 = vadd.f32 %v4351, %v4379
    %4381 = vmatmul.f32.gmra.mxu0 %v4309
    %v4382 = vpop.f32.mrf.mxu0
    %v4383 = vadd.f32 %v4351, %v4382
    %4384 = vmatmul.f32.gmra.mxu0 %v4310
    %v4385 = vpop.f32.mrf.mxu0
    %v4386 = vadd.f32 %v4351, %v4385
    %4387 = vdwg.mxu0
    %4388 = vmatpush.msra.mxu0 %v4348
    %4389 = vmatpush.msra.mxu0 %v4347
    %4390 = vmatpush.msra.mxu0 %v4346
    %4391 = vmatpush.msra.mxu0 %v4345
    %4392 = vmatpush.msra.mxu0 %v4344
    %4393 = vmatpush.msra.mxu0 %v4343
    %4394 = vmatpush.msra.mxu0 %v4342
    %4395 = vmatpush.msra.mxu0 %v4341
    %4396 = vmatpush.msra.mxu0 %v4340
    %4397 = vmatpush.msra.mxu0 %v4339
    %4398 = vmatpush.msra.mxu0 %v4338
    %4399 = vmatpush.msra.mxu0 %v4337
    %4400 = vmatpush.msra.mxu0 %v4336
    %4401 = vmatpush.msra.mxu0 %v4335
    %4402 = vmatpush.msra.mxu0 %v4334
    %4403 = vmatpush.msra.mxu0 %v4333
    %4404 = vmatmul.f32.gmra.mxu0 %v4311
    %v4405 = vpop.f32.mrf.mxu0
    %v4406 = vadd.f32 %v4371, %v4405
    %4407 = vmatmul.f32.gmra.mxu0 %v4312
    %v4408 = vpop.f32.mrf.mxu0
    %v4409 = vadd.f32 %v4374, %v4408
    %4410 = vmatmul.f32.gmra.mxu0 %v4313
    %v4411 = vpop.f32.mrf.mxu0
    %v4412 = vadd.f32 %v4377, %v4411
    %4413 = vmatmul.f32.gmra.mxu0 %v4314
    %v4414 = vpop.f32.mrf.mxu0
    %v4415 = vadd.f32 %v4380, %v4414
    %4416 = vmatmul.f32.gmra.mxu0 %v4315
    %v4417 = vpop.f32.mrf.mxu0
    %v4418 = vadd.f32 %v4383, %v4417
    %4419 = vmatmul.f32.gmra.mxu0 %v4316
    %v4420 = vpop.f32.mrf.mxu0
    %v4421 = vadd.f32 %v4386, %v4420
    %4422 = vdwg.mxu0
    %v4423 = vld [vmem:[%s23] sm:$0xff]
    %v4424 = vld [vmem:[%s23 + $0x8] sm:$0xff]
    %v4425 = vld [vmem:[%s23 + $0x10] sm:$0xff]
    %v4426 = vld [vmem:[%s23 + $0x18] sm:$0xff]
    %v4427 = vld [vmem:[%s23 + $0x20] sm:$0xff]
    %v4428 = vld [vmem:[%s23 + $0x28] sm:$0xff]
    %4430 = vset.pattern.permute.xlu0 0
    %4431 = vperm.xlu0 %4430, %v4423
    %v4432 = vpop.permute.xlu0 %4431
    %4435 = vset.pattern.permute.xlu0 0
    %4436 = vperm.xlu0 %4435, %v4424
    %v4437 = vpop.permute.xlu0 %4436
    %4440 = vset.pattern.permute.xlu0 0
    %4441 = vperm.xlu0 %4440, %v4425
    %v4442 = vpop.permute.xlu0 %4441
    %4445 = vset.pattern.permute.xlu0 0
    %4446 = vperm.xlu0 %4445, %v4426
    %v4447 = vpop.permute.xlu0 %4446
    %4450 = vset.pattern.permute.xlu0 0
    %4451 = vperm.xlu0 %4450, %v4427
    %v4452 = vpop.permute.xlu0 %4451
    %4455 = vset.pattern.permute.xlu0 0
    %4456 = vperm.xlu0 %4455, %v4428
    %v4457 = vpop.permute.xlu0 %4456
    %v4459 = vmul.f32 %v4406, %v4432
    %v4460 = vmul.f32 %v4409, %v4437
    %v4461 = vmul.f32 %v4412, %v4442
    %v4462 = vmul.f32 %v4415, %v4447
    %v4463 = vmul.f32 %v4418, %v4452
    %v4464 = vmul.f32 %v4421, %v4457
    %v4465 = vsel %vm780, %v4459, 0.0
    %v4466 = vsel %vm780, %v4460, 0.0
    %v4467 = vadd.f32 %v4465, %v4466
    %v4468 = vsel %vm780, %v4461, 0.0
    %v4469 = vadd.f32 %v4467, %v4468
    %v4470 = vsel %vm780, %v4462, 0.0
    %v4471 = vadd.f32 %v4469, %v4470
    %v4472 = vrot.slane %v4471, 4
    %v4473 = vadd.f32 %v4471, %v4472
    %v4474 = vrot.slane %v4473, 2
    %v4475 = vadd.f32 %v4473, %v4474
    %v4476 = vrot.slane %v4475, 1
    %v4477 = vadd.f32 %v4475, %v4476
    %v4478 = vmul.f32 %v4459, %v4459
    %v4479 = vmul.f32 %v4460, %v4460
    %v4480 = vmul.f32 %v4461, %v4461
    %v4481 = vmul.f32 %v4462, %v4462
    %v4482 = vsel %vm780, %v4478, 0.0
    %v4483 = vsel %vm780, %v4479, 0.0
    %v4484 = vadd.f32 %v4482, %v4483
    %v4485 = vsel %vm780, %v4480, 0.0
    %v4486 = vadd.f32 %v4484, %v4485
    %v4487 = vsel %vm780, %v4481, 0.0
    %v4488 = vadd.f32 %v4486, %v4487
    %v4489 = vrot.slane %v4488, 4
    %v4490 = vadd.f32 %v4488, %v4489
    %v4491 = vrot.slane %v4490, 2
    %v4492 = vadd.f32 %v4490, %v4491
    %v4493 = vrot.slane %v4492, 1
    %v4494 = vadd.f32 %v4492, %v4493
    %v4495 = vmul.f32 %v4477, 0.125
    %v4496 = vmul.f32 %v4494, 0.125
    %v4497 = vmul.f32 %v4495, %v4495
    %v4498 = vsub.f32 %v4496, %v4497
    %v4499 = vmax.f32 %v4498, 0.0
    %v4500 = vld [vmem:[%s21] sm:$0x1]
    %v4501 = vadd.f32 %v4499, 1e-05
    %v4502 = vrsqrt.pop %v4501
    %v4503 = vmul.f32 %v4502, %v4501
    %v4504 = vmul.f32 %v4503, %v4502
    %v4505 = vmul.f32 0.5, %v4504
    %v4506 = vsub.f32 1.5, %v4505
    %v4507 = vmul.f32 %v4502, %v4506
    %vm4508 = vweird.f32 %v4501
    %vm4509 = vweird.f32 %v4502
    %vm4510 = vmor %vm4508, %vm4509
    %v4511 = vsel %vm4510, %v4502, %v4507
    %v4512 = vmul.f32 %v4500, %v4511
    %v4513 = vld [vmem:[%s22] sm:$0x1]
    %v4514 = vmul.f32 %v4495, %v4512
    %v4515 = vsub.f32 %v4513, %v4514
    %v4517 = vperm.slane %v4512, 0
    %v4519 = vmul.f32 %v4459, %v4517
    %v4520 = vmul.f32 %v4460, %v4517
    %v4521 = vmul.f32 %v4461, %v4517
    %v4522 = vmul.f32 %v4462, %v4517
    %v4524 = vperm.slane %v4515, 0
    %v4526 = vadd.f32 %v4519, %v4524
    %v4527 = vadd.f32 %v4520, %v4524
    %v4528 = vadd.f32 %v4521, %v4524
    %v4529 = vadd.f32 %v4522, %v4524
    %v4530 = vmax.f32 %v4526, 0.0
    %v4531 = vmax.f32 %v4527, 0.0
    %v4532 = vmax.f32 %v4528, 0.0
    %v4533 = vmax.f32 %v4529, 0.0
    %v4534 = vsel %vm780, %v4463, 0.0
    %v4535 = vsel %vm780, %v4464, 0.0
    %v4536 = vadd.f32 %v4534, %v4535
    %v4537 = vrot.slane %v4536, 4
    %v4538 = vadd.f32 %v4536, %v4537
    %v4539 = vrot.slane %v4538, 2
    %v4540 = vadd.f32 %v4538, %v4539
    %v4541 = vrot.slane %v4540, 1
    %v4542 = vadd.f32 %v4540, %v4541
    %v4543 = vmul.f32 %v4463, %v4463
    %v4544 = vmul.f32 %v4464, %v4464
    %v4545 = vsel %vm780, %v4543, 0.0
    %v4546 = vsel %vm780, %v4544, 0.0
    %v4547 = vadd.f32 %v4545, %v4546
    %v4548 = vrot.slane %v4547, 4
    %v4549 = vadd.f32 %v4547, %v4548
    %v4550 = vrot.slane %v4549, 2
    %v4551 = vadd.f32 %v4549, %v4550
    %v4552 = vrot.slane %v4551, 1
    %v4553 = vadd.f32 %v4551, %v4552
    %v4554 = vmul.f32 %v4542, 0.25
    %v4555 = vmul.f32 %v4553, 0.25
    %v4556 = vmul.f32 %v4554, %v4554
    %v4557 = vsub.f32 %v4555, %v4556
    %v4558 = vmax.f32 %v4557, 0.0
    %v4559 = vadd.f32 %v4558, 1e-05
    %v4560 = vrsqrt.pop %v4559
    %v4561 = vmul.f32 %v4560, %v4559
    %v4562 = vmul.f32 %v4561, %v4560
    %v4563 = vmul.f32 0.5, %v4562
    %v4564 = vsub.f32 1.5, %v4563
    %v4565 = vmul.f32 %v4560, %v4564
    %vm4566 = vweird.f32 %v4559
    %vm4567 = vweird.f32 %v4560
    %vm4568 = vmor %vm4566, %vm4567
    %v4569 = vsel %vm4568, %v4560, %v4565
    %v4570 = vmul.f32 %v4500, %v4569
    %v4571 = vmul.f32 %v4554, %v4570
    %v4572 = vsub.f32 %v4513, %v4571
    %v4574 = vperm.slane %v4570, 0
    %v4576 = vmul.f32 %v4463, %v4574
    %v4577 = vmul.f32 %v4464, %v4574
    %v4579 = vperm.slane %v4572, 0
    %v4581 = vadd.f32 %v4576, %v4579
    %v4582 = vadd.f32 %v4577, %v4579
    %v4583 = vmax.f32 %v4581, 0.0
    %v4584 = vmax.f32 %v4582, 0.0
    %v4591 = vrot.slane %v4530, 1
    %v4592 = vrot.slane %v4531, 1
    %v4593 = vsel %vm1286, %v4591, %v4592
    %v4594 = vrot.slane %v4532, 1
    %v4595 = vsel %vm1286, %v4592, %v4594
    %v4596 = vrot.slane %v4533, 1
    %v4597 = vsel %vm1286, %v4594, %v4596
    %v4598 = vrot.slane %v4583, 1
    %v4599 = vsel %vm1286, %v4596, %v4598
    %v4600 = vrot.slane %v4584, 1
    %v4601 = vsel %vm1286, %v4598, %v4600
    %v4602 = vsel %vm1286, %v4600, %v1382
    %v4609 = vmax.f32 %v4530, %v4593
    %v4610 = vmax.f32 %v4531, %v4595
    %v4611 = vmax.f32 %v4532, %v4597
    %v4612 = vmax.f32 %v4533, %v4599
    %v4613 = vmax.f32 %v4583, %v4601
    %v4614 = vmax.f32 %v4584, %v4602
    %v4615 = vld [vmem:[%s24] sm:$0xff]
    %v4616 = vld [vmem:[%s24 + $0x8] sm:$0xff]
    %v4617 = vld [vmem:[%s24 + $0x10] sm:$0xff]
    %v4618 = vld [vmem:[%s24 + $0x18] sm:$0xff]
    %v4619 = vld [vmem:[%s24 + $0x20] sm:$0xff]
    %v4620 = vld [vmem:[%s24 + $0x28] sm:$0xff]
    %4621 = vset.pattern.permute.xlu0 0
    %4622 = vperm.xlu0 %4621, %v4615
    %v4623 = vpop.permute.xlu0 %4622
    %4624 = vset.pattern.permute.xlu0 0
    %4625 = vperm.xlu0 %4624, %v4616
    %v4626 = vpop.permute.xlu0 %4625
    %4627 = vset.pattern.permute.xlu0 0
    %4628 = vperm.xlu0 %4627, %v4617
    %v4629 = vpop.permute.xlu0 %4628
    %4630 = vset.pattern.permute.xlu0 0
    %4631 = vperm.xlu0 %4630, %v4618
    %v4632 = vpop.permute.xlu0 %4631
    %4633 = vset.pattern.permute.xlu0 0
    %4634 = vperm.xlu0 %4633, %v4619
    %v4635 = vpop.permute.xlu0 %4634
    %4636 = vset.pattern.permute.xlu0 0
    %4637 = vperm.xlu0 %4636, %v4620
    %v4638 = vpop.permute.xlu0 %4637
    %vm4639 = vcmp.eq.s32.totalorder %v1481, %v4623
    %vm4640 = vcmp.eq.s32.totalorder %v1481, %v4626
    %vm4641 = vcmp.eq.s32.totalorder %v1481, %v4629
    %vm4642 = vcmp.eq.s32.totalorder %v1481, %v4632
    %vm4643 = vcmp.eq.s32.totalorder %v1481, %v4635
    %vm4644 = vcmp.eq.s32.totalorder %v1481, %v4638
    %v4645 = vsel %vm4639, 1, 0
    %v4646 = vsel %vm4640, 1, 0
    %v4647 = vsel %vm4641, 1, 0
    %v4648 = vsel %vm4642, 1, 0
    %v4649 = vsel %vm4643, 1, 0
    %v4650 = vsel %vm4644, 1, 0
    %v4651 = vcvt.s32.f32 %v4645
    %v4652 = vcvt.s32.f32 %v4646
    %v4653 = vcvt.s32.f32 %v4647
    %v4654 = vcvt.s32.f32 %v4648
    %v4655 = vcvt.s32.f32 %v4649
    %v4656 = vcvt.s32.f32 %v4650
    %vm4657 = vcmask 392192
    %v4659 = vsel %vm4657, %v4651, 0
    %v4662 = vsel %vm4657, %v4652, 0
    %v4665 = vsel %vm4657, %v4653, 0
    %v4668 = vsel %vm4657, %v4654, 0
    %v4671 = vsel %vm4657, %v4655, 0
    %v4674 = vsel %vm4657, %v4656, 0
    %4676 = vmatpush.msra.mxu0 0.0
    %4677 = vmatpush.msra.mxu0 0.0
    %4678 = vmatpush.msra.mxu0 0.0
    %4679 = vmatpush.msra.mxu0 0.0
    %4680 = vmatpush.msra.mxu0 0.0
    %4681 = vmatpush.msra.mxu0 0.0
    %4682 = vmatpush.msra.mxu0 0.0
    %4683 = vmatpush.msra.mxu0 0.0
    %4684 = vmatpush.msra.mxu0 0.0
    %4685 = vmatpush.msra.mxu0 0.0
    %4686 = vmatpush.msra.mxu0 %v4614
    %4687 = vmatpush.msra.mxu0 %v4613
    %4688 = vmatpush.msra.mxu0 %v4612
    %4689 = vmatpush.msra.mxu0 %v4611
    %4690 = vmatpush.msra.mxu0 %v4610
    %4691 = vmatpush.msra.mxu0 %v4609
    %4692 = vmatmul.f32.gmra.mxu0 %v4659
    %v4693 = vpop.f32.mrf.mxu0
    %v4694 = vadd.f32 0.0, %v4693
    %4695 = vmatmul.f32.gmra.mxu0 %v4662
    %v4696 = vpop.f32.mrf.mxu0
    %v4697 = vadd.f32 0.0, %v4696
    %4698 = vmatmul.f32.gmra.mxu0 %v4665
    %v4699 = vpop.f32.mrf.mxu0
    %v4700 = vadd.f32 0.0, %v4699
    %4701 = vmatmul.f32.gmra.mxu0 %v4668
    %v4702 = vpop.f32.mrf.mxu0
    %v4703 = vadd.f32 0.0, %v4702
    %4704 = vmatmul.f32.gmra.mxu0 %v4671
    %v4705 = vpop.f32.mrf.mxu0
    %v4706 = vadd.f32 0.0, %v4705
    %4707 = vmatmul.f32.gmra.mxu0 %v4674
    %v4708 = vpop.f32.mrf.mxu0
    %v4709 = vadd.f32 0.0, %v4708
    %4710 = vdwg.mxu0
    %v4712 = vrot.slane %v4697, 7
    %v4715 = vrot.slane %v4700, 6
    %v4718 = vrot.slane %v4703, 5
    %v4721 = vrot.slane %v4706, 4
    %v4724 = vrot.slane %v4709, 3
    %vm4726 = vcmask 1040384
    %v4727 = vsel %vm4726, %v4694, %v4712
    %vm4728 = vcmask 1041408
    %v4729 = vsel %vm4728, %v4727, %v4715
    %vm4730 = vcmask 1042432
    %v4731 = vsel %vm4730, %v4729, %v4718
    %v4732 = vsel %vm279, %v4731, %v4721
    %v4733 = vsel %vm2281, %v4732, %v4724
    %vm4734 = vcmask 521216
    %4735 = vst.msk [vmem:[#allocation2] sm:$0x3f] %vm4734, %v4733
    // Predicated region
    $region102: #{_encode_group.1} parent=1 // pred_check
      _
    $region103: #{_encode_group.1} parent=1 // pred_check_branch
      %4737 = sbr.rel (0) target = $region105
    $region104: #{_encode_group.1} parent=1 // pred_region
      %4739 = vsyncadd [#allocation3], 0
      %s4741 = sshll.u32 [#allocation2], 4
      %s4742 = int_to_ptr.vmem [resolvable:$true] %s4741
      %s4743 = sshll.u32 %s25, 4
      %s4744 = int_to_ptr.hbm [resolvable:$true] %s4743
      %4746 = dma.vmem_to_hbm [thread:$0]  %s4742, 128, %s4744, [#allocation3]
    $region105: #{_encode_group.1} parent=1 // pred_fallthru
      _
    // Predicated region
    $region106: #{_encode_group.1} parent=1 // pred_check
      _
    $region107: #{_encode_group.1} parent=1 // pred_check_branch
      %4748 = sbr.rel (0) target = $region109
    $region108: #{_encode_group.1} parent=1 // pred_region
      %4750 = dma.done [#allocation3], 128
    $region109: #{_encode_group.1} parent=1 // pred_fallthru
      _
    %4751 = vsyncpa [#allocation3], 1

</llo_original>
